<compile_context>
chip_gen: v5e
topology: v5e:2x2
jax: 0.10.0
libtpu: 0.0.40
codegen_flags: <defaults>
</compile_context>

<pallas_src>
import jax
import jax.numpy as jnp
from jax.experimental import pallas as pl
from jax.experimental.pallas import tpu as pltpu


D_IN = 784
H1, H2, H3 = 256, 128, 64


def _leaky_relu(v, slope=0.2):
    return jnp.where(v > 0, v, slope * v)


def discriminator_kernel(x_ref,
                         w1_ref, b1_ref,
                         w2_ref, b2_ref,
                         w3_ref, b3_ref,
                         w4_ref, b4_ref,
                         o_ref):
    # x arrives as f32 straight from HBM; cast to bf16 in VMEM (cheap VPU op)
    # so the MXU runs in bf16 with f32 accumulation.
    x = x_ref[...].astype(jnp.bfloat16)                       # (TB, 784)

    # Layer 1: 784 -> 256 (bf16 MXU, f32 accumulate; bias/activation in f32).
    h = jnp.dot(x, w1_ref[...], preferred_element_type=jnp.float32) + b1_ref[...]
    h = _leaky_relu(h)                                        # (TB, 256) f32
    # Dropout(p=0.2): identity in eval mode.

    # Layer 2: 256 -> 128.
    h = jnp.dot(h.astype(jnp.bfloat16), w2_ref[...],
                preferred_element_type=jnp.float32) + b2_ref[...]
    h = _leaky_relu(h)                                        # (TB, 128) f32

    # Layer 3: 128 -> 64.
    h = jnp.dot(h.astype(jnp.bfloat16), w3_ref[...],
                preferred_element_type=jnp.float32) + b3_ref[...]
    h = _leaky_relu(h)                                        # (TB, 64) f32

    # Layer 4: 64 -> 1. A (TB,64)@(64,1) matmul wastes an MXU pass; use a VPU
    # multiply + XLU lane reduction and keep the natural (TB, 1) shape.
    z = jnp.sum(h * w4_ref[...], axis=-1, keepdims=True) + b4_ref[...]  # (TB,1)

    # Numerically stable, exact sigmoid (tiny tensor -> divide is free).
    e = jnp.exp(-jnp.abs(z))
    num = jnp.where(z >= 0, 1.0, e)
    o_ref[...] = num / (1.0 + e)                              # (TB, 1) f32


def _pick_batch_tile(batch):
    """Adaptive batch tile: 256..1024 rows.

    Keeps >= 2 grid tiles whenever the batch spans more than one 256-row base
    tile (so v7x's second TensorCore is busy), while large tiles amortize the
    ~0.35 us per-grid-step overhead. VMEM stays tiny (<10 MiB at 1024 rows).
    """
    base = 256
    n_base = pl.cdiv(batch, base)
    return min(1024, base * max(1, pl.cdiv(n_base, 2)))


def _resident(shape):
    # Small resident operand: whole array at every grid step.
    # TODO(synk): pipeline_mode=pl.Buffered(1) would drop the dead second
    # pipeline buffer (~0.5 MiB VMEM); omitted to keep the lowering maximally
    # conservative -- the perf impact is negligible.
    return pl.BlockSpec(shape, lambda i: (0,) * len(shape))


def discriminator_forward(x, params, *, batch_tile=None):
    """x: (B, 784) float32. Returns (B, 1) float32 sigmoid probabilities."""
    B, D = x.shape
    assert D == D_IN
    (w1, b1), (w2, b2), (w3, b3), (w4, b4) = params

    if batch_tile is None:
        batch_tile = _pick_batch_tile(B)
    num_tiles = pl.cdiv(B, batch_tile)

    # Only the (tiny) weights are pre-cast to bf16; x streams in f32 and is
    # cast inside the kernel (no extra HBM pass over the dominant stream).
    w1_b = w1.astype(jnp.bfloat16)                 # (784, 256)
    w2_b = w2.astype(jnp.bfloat16)                 # (256, 128)
    w3_b = w3.astype(jnp.bfloat16)                 # (128, 64)
    w4_row = w4.reshape(1, H3).astype(jnp.float32)  # (1, 64) stays f32 (VPU path)
    b4_s = b4.reshape(1, 1).astype(jnp.float32)

    flops = 2 * B * (D_IN * H1 + H1 * H2 + H2 * H3 + H3)
    bytes_accessed = (B * D_IN * 4                                   # x (f32)
                      + (D_IN * H1 + H1 * H2 + H2 * H3) * 2          # bf16 weights
                      + H3 * 4                                       # w4 row (f32)
                      + (H1 + H2 + H3 + 1) * 4                       # biases
                      + B * 4)                                       # output
    cost = pl.CostEstimate(flops=flops, transcendentals=B,
                           bytes_accessed=bytes_accessed)

    out = pl.pallas_call(
        discriminator_kernel,
        out_shape=jax.ShapeDtypeStruct((B, 1), jnp.float32),
        grid_spec=pltpu.PrefetchScalarGridSpec(
            num_scalar_prefetch=0,
            grid=(num_tiles,),
            in_specs=[
                # x tile: last dim == full array dim (784), so no 128-alignment
                # requirement; the partial last batch block is masked by Pallas.
                pl.BlockSpec((batch_tile, D_IN), lambda i: (i, 0)),
                _resident(w1_b.shape), _resident(b1.shape),
                _resident(w2_b.shape), _resident(b2.shape),
                _resident(w3_b.shape), _resident(b3.shape),
                _resident(w4_row.shape), _resident(b4_s.shape),
            ],
            out_specs=pl.BlockSpec((batch_tile, 1), lambda i: (i, 0)),
        ),
        compiler_params=pltpu.CompilerParams(
            dimension_semantics=("parallel",)),
        cost_estimate=cost,
    )(x, w1_b, b1, w2_b, b2, w3_b, b3, w4_row, b4_s)

    return out                                     # already (B, 1)


def init_params(key):
    """Deterministic init mimicking PyTorch Linear default (U[-1/sqrt(fan_in), +])."""
    dims = [(784, 256), (256, 128), (128, 64), (64, 1)]
    params = []
    for idx, (fan_in, fan_out) in enumerate(dims):
        kw, kb = jax.random.split(jax.random.fold_in(key, idx))
        bound = 1.0 / (fan_in ** 0.5)
        w = jax.random.uniform(kw, (fan_in, fan_out), jnp.float32, -bound, bound)
        b = jax.random.uniform(kb, (1, fan_out), jnp.float32, -bound, bound)
        params.append((w, b))
    return params


def reference_forward(x, params):
    h = x
    for i, (w, b) in enumerate(params):
        h = h @ w + b
        if i < len(params) - 1:
            h = jnp.where(h > 0, h, 0.2 * h)
    return jax.nn.sigmoid(h)


if __name__ == "__main__":
    key = jax.random.PRNGKey(0)
    params = init_params(key)

    # B deliberately NOT a multiple of the batch tile: exercises the masked
    # ragged tail. With the adaptive picker this gives batch_tile=256 and a
    # 2-step parallel grid (keeps both v7x TensorCores busy).
    B = 300
    x = jax.random.normal(jax.random.fold_in(key, 100), (B, 784), jnp.float32)

    out = discriminator_forward(x, params)
    out = jax.block_until_ready(out)

    ref = reference_forward(x, params)
    assert out.shape == (B, 1), out.shape
    err = float(jnp.max(jnp.abs(out - ref)))
    # Remaining error comes solely from bf16 MXU inputs (sigmoid is exact).
    assert err < 2e-2, f"mismatch: max abs err = {err}"

    print("KERNEL_OK")
</pallas_src>

<mosaic_0001>
module attributes {stable_mosaic.version = 11 : i64} {
  func.func @discriminator_kernel(%arg0: i32, %arg1: memref<256x784xf32, #tpu.memory_space<vmem>>, %arg2: memref<784x256xbf16, #tpu.memory_space<vmem>>, %arg3: memref<1x256xf32, #tpu.memory_space<vmem>>, %arg4: memref<256x128xbf16, #tpu.memory_space<vmem>>, %arg5: memref<1x128xf32, #tpu.memory_space<vmem>>, %arg6: memref<128x64xbf16, #tpu.memory_space<vmem>>, %arg7: memref<1x64xf32, #tpu.memory_space<vmem>>, %arg8: memref<1x64xf32, #tpu.memory_space<vmem>>, %arg9: memref<1x1xf32, #tpu.memory_space<vmem>>, %arg10: memref<256x1xf32, #tpu.memory_space<vmem>>) attributes {dimension_semantics = [#tpu.dimension_semantics<parallel>], iteration_bounds = array<i64: 2>, scalar_prefetch = 0 : i64, scratch_operands = 0 : i64, tpu.core_type = #tpu.core_type<tc>, window_params = [{transform_indices = @transform_0, window_bounds = array<i64: 256, 784>}, {pipeline_mode = #tpu.pipeline_mode<synchronous>, transform_indices = @transform_1, window_bounds = array<i64: 784, 256>}, {pipeline_mode = #tpu.pipeline_mode<synchronous>, transform_indices = @transform_2, window_bounds = array<i64: 1, 256>}, {pipeline_mode = #tpu.pipeline_mode<synchronous>, transform_indices = @transform_3, window_bounds = array<i64: 256, 128>}, {pipeline_mode = #tpu.pipeline_mode<synchronous>, transform_indices = @transform_4, window_bounds = array<i64: 1, 128>}, {pipeline_mode = #tpu.pipeline_mode<synchronous>, transform_indices = @transform_5, window_bounds = array<i64: 128, 64>}, {pipeline_mode = #tpu.pipeline_mode<synchronous>, transform_indices = @transform_6, window_bounds = array<i64: 1, 64>}, {pipeline_mode = #tpu.pipeline_mode<synchronous>, transform_indices = @transform_7, window_bounds = array<i64: 1, 64>}, {pipeline_mode = #tpu.pipeline_mode<synchronous>, transform_indices = @transform_8, window_bounds = array<i64: 1, 1>}, {transform_indices = @transform_9, window_bounds = array<i64: 256, 1>}]} {
    %c0 = arith.constant 0 : index
    %c0_0 = arith.constant 0 : index
    %0 = vector.load %arg1[%c0, %c0_0] : memref<256x784xf32, #tpu.memory_space<vmem>>, vector<256x784xf32>
    %1 = arith.truncf %0 : vector<256x784xf32> to vector<256x784xbf16>
    %c0_1 = arith.constant 0 : index
    %c0_2 = arith.constant 0 : index
    %2 = vector.load %arg2[%c0_1, %c0_2] : memref<784x256xbf16, #tpu.memory_space<vmem>>, vector<784x256xbf16>
    %cst = arith.constant dense<0.000000e+00> : vector<256x256xf32>
    %3 = tpu.matmul %1, %2, %cst {dimension_numbers = #tpu.dot_dimension_numbers<[1], [0], [0], [1], [0, 0, 1, 1], [], []>} : vector<256x784xbf16>, vector<784x256xbf16>, vector<256x256xf32> -> vector<256x256xf32>
    %c0_3 = arith.constant 0 : index
    %c0_4 = arith.constant 0 : index
    %4 = vector.load %arg3[%c0_3, %c0_4] : memref<1x256xf32, #tpu.memory_space<vmem>>, vector<1x256xf32>
    %5 = vector.broadcast %4 : vector<1x256xf32> to vector<256x256xf32>
    %6 = arith.addf %3, %5 : vector<256x256xf32>
    %cst_5 = arith.constant 0.000000e+00 : f32
    %7 = vector.broadcast %cst_5 : f32 to vector<256x256xf32>
    %8 = arith.cmpf ogt, %6, %7 : vector<256x256xf32>
    %cst_6 = arith.constant 2.000000e-01 : f32
    %9 = vector.broadcast %cst_6 : f32 to vector<256x256xf32>
    %10 = arith.mulf %9, %6 : vector<256x256xf32>
    %11 = arith.select %8, %6, %10 : vector<256x256xi1>, vector<256x256xf32>
    %12 = arith.truncf %11 : vector<256x256xf32> to vector<256x256xbf16>
    %c0_7 = arith.constant 0 : index
    %c0_8 = arith.constant 0 : index
    %13 = vector.load %arg4[%c0_7, %c0_8] : memref<256x128xbf16, #tpu.memory_space<vmem>>, vector<256x128xbf16>
    %cst_9 = arith.constant dense<0.000000e+00> : vector<256x128xf32>
    %14 = tpu.matmul %12, %13, %cst_9 {dimension_numbers = #tpu.dot_dimension_numbers<[1], [0], [0], [1], [0, 0, 1, 1], [], []>} : vector<256x256xbf16>, vector<256x128xbf16>, vector<256x128xf32> -> vector<256x128xf32>
    %c0_10 = arith.constant 0 : index
    %c0_11 = arith.constant 0 : index
    %15 = vector.load %arg5[%c0_10, %c0_11] : memref<1x128xf32, #tpu.memory_space<vmem>>, vector<1x128xf32>
    %16 = vector.broadcast %15 : vector<1x128xf32> to vector<256x128xf32>
    %17 = arith.addf %14, %16 : vector<256x128xf32>
    %cst_12 = arith.constant 0.000000e+00 : f32
    %18 = vector.broadcast %cst_12 : f32 to vector<256x128xf32>
    %19 = arith.cmpf ogt, %17, %18 : vector<256x128xf32>
    %cst_13 = arith.constant 2.000000e-01 : f32
    %20 = vector.broadcast %cst_13 : f32 to vector<256x128xf32>
    %21 = arith.mulf %20, %17 : vector<256x128xf32>
    %22 = arith.select %19, %17, %21 : vector<256x128xi1>, vector<256x128xf32>
    %23 = arith.truncf %22 : vector<256x128xf32> to vector<256x128xbf16>
    %c0_14 = arith.constant 0 : index
    %c0_15 = arith.constant 0 : index
    %24 = vector.load %arg6[%c0_14, %c0_15] : memref<128x64xbf16, #tpu.memory_space<vmem>>, vector<128x64xbf16>
    %cst_16 = arith.constant dense<0.000000e+00> : vector<256x64xf32>
    %25 = tpu.matmul %23, %24, %cst_16 {dimension_numbers = #tpu.dot_dimension_numbers<[1], [0], [0], [1], [0, 0, 1, 1], [], []>} : vector<256x128xbf16>, vector<128x64xbf16>, vector<256x64xf32> -> vector<256x64xf32>
    %c0_17 = arith.constant 0 : index
    %c0_18 = arith.constant 0 : index
    %26 = vector.load %arg7[%c0_17, %c0_18] : memref<1x64xf32, #tpu.memory_space<vmem>>, vector<1x64xf32>
    %27 = vector.broadcast %26 : vector<1x64xf32> to vector<256x64xf32>
    %28 = arith.addf %25, %27 : vector<256x64xf32>
    %cst_19 = arith.constant 0.000000e+00 : f32
    %29 = vector.broadcast %cst_19 : f32 to vector<256x64xf32>
    %30 = arith.cmpf ogt, %28, %29 : vector<256x64xf32>
    %cst_20 = arith.constant 2.000000e-01 : f32
    %31 = vector.broadcast %cst_20 : f32 to vector<256x64xf32>
    %32 = arith.mulf %31, %28 : vector<256x64xf32>
    %33 = arith.select %30, %28, %32 : vector<256x64xi1>, vector<256x64xf32>
    %c0_21 = arith.constant 0 : index
    %c0_22 = arith.constant 0 : index
    %34 = vector.load %arg8[%c0_21, %c0_22] : memref<1x64xf32, #tpu.memory_space<vmem>>, vector<1x64xf32>
    %35 = vector.broadcast %34 : vector<1x64xf32> to vector<256x64xf32>
    %36 = arith.mulf %33, %35 : vector<256x64xf32>
    %cst_23 = arith.constant dense<0.000000e+00> : vector<256xf32>
    %37 = vector.multi_reduction <add>, %36, %cst_23 [1] : vector<256x64xf32> to vector<256xf32>
    %38 = vector.shape_cast %37 : vector<256xf32> to vector<256x1xf32>
    %c0_24 = arith.constant 0 : index
    %c0_25 = arith.constant 0 : index
    %39 = vector.load %arg9[%c0_24, %c0_25] : memref<1x1xf32, #tpu.memory_space<vmem>>, vector<1x1xf32>
    %40 = vector.broadcast %39 : vector<1x1xf32> to vector<256x1xf32>
    %41 = arith.addf %38, %40 : vector<256x1xf32>
    %42 = math.absf %41 : vector<256x1xf32>
    %cst_26 = arith.constant 0.000000e+00 : f32
    %43 = vector.broadcast %cst_26 : f32 to vector<256x1xf32>
    %44 = arith.subf %43, %42 : vector<256x1xf32>
    %45 = math.exp %44 : vector<256x1xf32>
    %cst_27 = arith.constant 0.000000e+00 : f32
    %46 = vector.broadcast %cst_27 : f32 to vector<256x1xf32>
    %47 = arith.cmpf oge, %41, %46 : vector<256x1xf32>
    %cst_28 = arith.constant 1.000000e+00 : f32
    %48 = vector.broadcast %cst_28 : f32 to vector<256x1xf32>
    %49 = arith.select %47, %48, %45 : vector<256x1xi1>, vector<256x1xf32>
    %cst_29 = arith.constant 1.000000e+00 : f32
    %50 = vector.broadcast %cst_29 : f32 to vector<256x1xf32>
    %51 = arith.addf %50, %45 : vector<256x1xf32>
    %52 = arith.divf %49, %51 : vector<256x1xf32>
    %c0_30 = arith.constant 0 : index
    %c0_31 = arith.constant 0 : index
    %53 = vector.load %arg10[%c0_30, %c0_31] : memref<256x1xf32, #tpu.memory_space<vmem>>, vector<256x1xf32>
    tpu.vector_store %arg10[%c0_30, %c0_31], %52 {strides = array<i32>} : memref<256x1xf32, #tpu.memory_space<vmem>>, vector<256x1xf32>,
    return
  }
  func.func @transform_0(%arg0: i32) -> (i32, i32) {
    %c0_i32 = arith.constant 0 : i32
    %c0_i32_0 = arith.constant 0 : i32
    return %arg0, %c0_i32 : i32, i32
  }
  func.func @transform_1(%arg0: i32) -> (i32, i32) {
    %c0_i32 = arith.constant 0 : i32
    %c0_i32_0 = arith.constant 0 : i32
    %c0_i32_1 = arith.constant 0 : i32
    return %c0_i32, %c0_i32_0 : i32, i32
  }
  func.func @transform_2(%arg0: i32) -> (i32, i32) {
    %c0_i32 = arith.constant 0 : i32
    %c0_i32_0 = arith.constant 0 : i32
    %c0_i32_1 = arith.constant 0 : i32
    return %c0_i32, %c0_i32_0 : i32, i32
  }
  func.func @transform_3(%arg0: i32) -> (i32, i32) {
    %c0_i32 = arith.constant 0 : i32
    %c0_i32_0 = arith.constant 0 : i32
    %c0_i32_1 = arith.constant 0 : i32
    return %c0_i32, %c0_i32_0 : i32, i32
  }
  func.func @transform_4(%arg0: i32) -> (i32, i32) {
    %c0_i32 = arith.constant 0 : i32
    %c0_i32_0 = arith.constant 0 : i32
    %c0_i32_1 = arith.constant 0 : i32
    return %c0_i32, %c0_i32_0 : i32, i32
  }
  func.func @transform_5(%arg0: i32) -> (i32, i32) {
    %c0_i32 = arith.constant 0 : i32
    %c0_i32_0 = arith.constant 0 : i32
    %c0_i32_1 = arith.constant 0 : i32
    return %c0_i32, %c0_i32_0 : i32, i32
  }
  func.func @transform_6(%arg0: i32) -> (i32, i32) {
    %c0_i32 = arith.constant 0 : i32
    %c0_i32_0 = arith.constant 0 : i32
    %c0_i32_1 = arith.constant 0 : i32
    return %c0_i32, %c0_i32_0 : i32, i32
  }
  func.func @transform_7(%arg0: i32) -> (i32, i32) {
    %c0_i32 = arith.constant 0 : i32
    %c0_i32_0 = arith.constant 0 : i32
    %c0_i32_1 = arith.constant 0 : i32
    return %c0_i32, %c0_i32_0 : i32, i32
  }
  func.func @transform_8(%arg0: i32) -> (i32, i32) {
    %c0_i32 = arith.constant 0 : i32
    %c0_i32_0 = arith.constant 0 : i32
    %c0_i32_1 = arith.constant 0 : i32
    return %c0_i32, %c0_i32_0 : i32, i32
  }
  func.func @transform_9(%arg0: i32) -> (i32, i32) {
    %c0_i32 = arith.constant 0 : i32
    %c0_i32_0 = arith.constant 0 : i32
    return %arg0, %c0_i32 : i32, i32
  }
}

</mosaic_0001>

<llo_original>
// kernel: tpu_custom_call.1
$region0: #{tpu_custom_call.1}
  #allocation0 [shape = 'u32[]', space=smem, size = 0x4, offset = 0x4, fixed_abs, tag = 'smem constant byte address 0x4 - core index']
  #allocation1 [shape = 'u32[72,128]{1,0:T(1,128)}', space=vmem, size = 0x9000, scoped, tag = 'internal scratch']
  #allocation2 [shape = 'f32[1,1]{1,0:T(1,128)S(1)}', space=vmem, size = 0x200, scoped, tag = 'scoped memory for tpu_custom_call.1']
  %s0 = inlined_call_operand.hbm [shape: f32[300,784], index: 0, kind: input, shape index: {}]
  %s1 = inlined_call_operand.hbm [shape: bf16[784,256], index: 1, kind: input, shape index: {}]
  %s2 = inlined_call_operand.hbm [shape: f32[1,256], index: 2, kind: input, shape index: {}]
  %s3 = inlined_call_operand.hbm [shape: bf16[256,128], index: 3, kind: input, shape index: {}]
  %s4 = inlined_call_operand.hbm [shape: f32[1,128], index: 4, kind: input, shape index: {}]
  %s5 = inlined_call_operand.vmem [shape: bf16[128,64], index: 5, kind: input, shape index: {}]
  %s6 = inlined_call_operand.hbm [shape: f32[1,64], index: 6, kind: input, shape index: {}]
  %s7 = inlined_call_operand.hbm [shape: f32[1,64], index: 7, kind: input, shape index: {}]
  %s8 = inlined_call_operand.<no memory space> [shape: f32[1,1], index: 8, kind: input, shape index: {}]
  %s9 = inlined_call_operand.vmem [shape: f32[300,1], index: 9, kind: output, shape index: {}]
  %s10 = sld [smem:[#allocation0]]
  $region145: #{tpu_custom_call.1} parent=0
    _
  %s12 = ssub.s32 1, %s10
  %s13 = scalar_select 0, %s12, %s10
  %v14 = vstv %s8
  %15 = vst [vmem:[#allocation2] sm:$0x1] %v14
  $region1: #{tpu_custom_call.1} parent=0
    #allocation3 [shape = 'u8[1835008]{0}', space=vmem, size = 0x1c0000, scoped, tag = 'input window, operand 0']
    #allocation4 [shape = 's32[2]{0}', space=sflag, size = 0x8, scoped, tag = 'scoped memory for tpu_custom_call.1']
    #allocation5 [shape = 'u8[401408]{0}', space=vmem, size = 0x62000, scoped, tag = 'input window, operand 1, single buffered']
    #allocation6 [shape = 's32[1]{0}', space=sflag, size = 0x4, scoped, tag = 'scoped memory for tpu_custom_call.1']
    #allocation7 [shape = 'u8[1024]{0}', space=vmem, size = 0x400, scoped, tag = 'input window, operand 2, single buffered']
    #allocation8 [shape = 'u8[65536]{0}', space=vmem, size = 0x10000, scoped, tag = 'input window, operand 3, single buffered']
    #allocation9 [shape = 's32[1]{0}', space=sflag, size = 0x4, scoped, tag = 'scoped memory for tpu_custom_call.1']
    #allocation10 [shape = 'u8[512]{0}', space=vmem, size = 0x400, scoped, tag = 'input window, operand 4, single buffered']
    #allocation11 [shape = 'u8[512]{0}', space=vmem, size = 0x400, scoped, tag = 'input window, operand 6, single buffered']
    #allocation12 [shape = 's32[1]{0}', space=sflag, size = 0x4, scoped, tag = 'scoped memory for tpu_custom_call.1']
    #allocation13 [shape = 'u8[512]{0}', space=vmem, size = 0x400, scoped, tag = 'input window, operand 7, single buffered']
    #allocation14 [shape = 'u8[262144]{0}', space=vmem, size = 0x40000, scoped, tag = 'output window, operand 0']
    %16 = vsyncpa [#allocation4], 0
    %s17 = scalar_lea.sflag [#allocation4], 1
    %18 = vsyncpa %s17, 0
    %19 = vsyncpa [#allocation6], 0
    %20 = vsyncpa [#allocation9], 0
    %21 = vsyncpa [#allocation12], 0
    loop: start=0, step=1, limit=4
    $region2: #{tpu_custom_call.1} parent=1 // loop_pre_header
      _
    $region3: #{tpu_custom_call.1} parent=1 // loop_header
      %s23 = sphi 0, %s27
      %p24 = scmp.ge.s32.totalorder %s23, 4
      %s33 = sphi 0, %s35
      %s36 = sphi 0, %s33
      %s37 = sphi 0, %s36
      %s53 = sphi 0, %s37
      %s57 = sphi 0, %s57
      %s59 = sphi 0, %s57
      %s60 = sphi 0, %s59
      %s74 = sphi 0, %s60
      %s78 = sphi 0, %s78
      %s80 = sphi 0, %s78
      %s81 = sphi 0, %s80
      %s95 = sphi 0, %s81
      %s99 = sphi 0, %s99
      %s101 = sphi 0, %s99
      %s102 = sphi 0, %s101
      %s116 = sphi 0, %s102
      %s120 = sphi 0, %s120
      %s122 = sphi 0, %s120
      %s123 = sphi 0, %s122
      %s137 = sphi 0, %s123
      %s141 = sphi 0, %s141
      %s143 = sphi 0, %s141
      %s144 = sphi 0, %s143
      %s158 = sphi 0, %s144
      %s162 = sphi 0, %s162
      %s164 = sphi 0, %s162
      %s165 = sphi 0, %s164
      %s179 = sphi 0, %s165
      %s183 = sphi 0, %s183
      %s185 = sphi 0, %s183
      %s186 = sphi 0, %s185
      %s200 = sphi 0, %s186
      %s204 = sphi 0, %s204
      %s206 = sphi 0, %s204
      %s207 = sphi 0, %s206
      %s221 = sphi 0, %s207
      %s227 = sphi 0, %s229
      %s230 = sphi 0, %s227
      %s231 = sphi 0, %s230
      %s247 = sphi 0, %s231
    $region4: #{tpu_custom_call.1} parent=1 // loop_header_branch
      %26 = sbr.rel (%p24) target = $region8
    $region5: #{tpu_custom_call.1} parent=1 // loop_body
      %s28 = ssub.s32 %s23, 1
      %s29 = ssub.s32 %s23, 2
      %s30 = sadd.s32 %s23, 1
      %s31 = ssub.s32 %s23, %s30
      %p32 = scmp.eq.s32.totalorder %s31, 0
      %s34 = sadd.s32 %s33, 1
      %s35 = scalar_select %p32, %s33, %s34
      %p38 = pneg %p32
      %p39 = scmp.eq.s32.totalorder %s23, 1
      %p40 = por %p38, %p39
      %p41 = scmp.ne.s32.totalorder %s33, %s36
      %p42 = scmp.eq.s32.totalorder %s23, 0
      %p43 = por %p41, %p42
      %p44 = scmp.ne.s32.totalorder %s33, %s36
      %p45 = scmp.eq.s32.totalorder %s28, 1
      %p46 = por %p44, %p45
      %p47 = scmp.ne.s32.totalorder %s36, %s37
      %p48 = scmp.eq.s32.totalorder %s28, 0
      %p49 = por %p47, %p48
      %p50 = scmp.ne.s32.totalorder %s36, %s37
      %p51 = scmp.eq.s32.totalorder %s29, 1
      %p52 = por %p50, %p51
      %p54 = scmp.ne.s32.totalorder %s37, %s53
      %p55 = scmp.eq.s32.totalorder %s29, 0
      %p56 = por %p54, %p55
      %s58 = sadd.s32 %s57, 1
      %p61 = scmp.eq.s32.totalorder %s23, 1
      %p62 = scmp.ne.s32.totalorder %s57, %s59
      %p63 = scmp.eq.s32.totalorder %s23, 0
      %p64 = por %p62, %p63
      %p65 = scmp.ne.s32.totalorder %s57, %s59
      %p66 = scmp.eq.s32.totalorder %s28, 1
      %p67 = por %p65, %p66
      %p68 = scmp.ne.s32.totalorder %s59, %s60
      %p69 = scmp.eq.s32.totalorder %s28, 0
      %p70 = por %p68, %p69
      %p71 = scmp.ne.s32.totalorder %s59, %s60
      %p72 = scmp.eq.s32.totalorder %s29, 1
      %p73 = por %p71, %p72
      %p75 = scmp.ne.s32.totalorder %s60, %s74
      %p76 = scmp.eq.s32.totalorder %s29, 0
      %p77 = por %p75, %p76
      %s79 = sadd.s32 %s78, 1
      %p82 = scmp.eq.s32.totalorder %s23, 1
      %p83 = scmp.ne.s32.totalorder %s78, %s80
      %p84 = scmp.eq.s32.totalorder %s23, 0
      %p85 = por %p83, %p84
      %p86 = scmp.ne.s32.totalorder %s78, %s80
      %p87 = scmp.eq.s32.totalorder %s28, 1
      %p88 = por %p86, %p87
      %p89 = scmp.ne.s32.totalorder %s80, %s81
      %p90 = scmp.eq.s32.totalorder %s28, 0
      %p91 = por %p89, %p90
      %p92 = scmp.ne.s32.totalorder %s80, %s81
      %p93 = scmp.eq.s32.totalorder %s29, 1
      %p94 = por %p92, %p93
      %p96 = scmp.ne.s32.totalorder %s81, %s95
      %p97 = scmp.eq.s32.totalorder %s29, 0
      %p98 = por %p96, %p97
      %s100 = sadd.s32 %s99, 1
      %p103 = scmp.eq.s32.totalorder %s23, 1
      %p104 = scmp.ne.s32.totalorder %s99, %s101
      %p105 = scmp.eq.s32.totalorder %s23, 0
      %p106 = por %p104, %p105
      %p107 = scmp.ne.s32.totalorder %s99, %s101
      %p108 = scmp.eq.s32.totalorder %s28, 1
      %p109 = por %p107, %p108
      %p110 = scmp.ne.s32.totalorder %s101, %s102
      %p111 = scmp.eq.s32.totalorder %s28, 0
      %p112 = por %p110, %p111
      %p113 = scmp.ne.s32.totalorder %s101, %s102
      %p114 = scmp.eq.s32.totalorder %s29, 1
      %p115 = por %p113, %p114
      %p117 = scmp.ne.s32.totalorder %s102, %s116
      %p118 = scmp.eq.s32.totalorder %s29, 0
      %p119 = por %p117, %p118
      %s121 = sadd.s32 %s120, 1
      %p124 = scmp.eq.s32.totalorder %s23, 1
      %p125 = scmp.ne.s32.totalorder %s120, %s122
      %p126 = scmp.eq.s32.totalorder %s23, 0
      %p127 = por %p125, %p126
      %p128 = scmp.ne.s32.totalorder %s120, %s122
      %p129 = scmp.eq.s32.totalorder %s28, 1
      %p130 = por %p128, %p129
      %p131 = scmp.ne.s32.totalorder %s122, %s123
      %p132 = scmp.eq.s32.totalorder %s28, 0
      %p133 = por %p131, %p132
      %p134 = scmp.ne.s32.totalorder %s122, %s123
      %p135 = scmp.eq.s32.totalorder %s29, 1
      %p136 = por %p134, %p135
      %p138 = scmp.ne.s32.totalorder %s123, %s137
      %p139 = scmp.eq.s32.totalorder %s29, 0
      %p140 = por %p138, %p139
      %s142 = sadd.s32 %s141, 1
      %p145 = scmp.eq.s32.totalorder %s23, 1
      %p146 = scmp.ne.s32.totalorder %s141, %s143
      %p147 = scmp.eq.s32.totalorder %s23, 0
      %p148 = por %p146, %p147
      %p149 = scmp.ne.s32.totalorder %s141, %s143
      %p150 = scmp.eq.s32.totalorder %s28, 1
      %p151 = por %p149, %p150
      %p152 = scmp.ne.s32.totalorder %s143, %s144
      %p153 = scmp.eq.s32.totalorder %s28, 0
      %p154 = por %p152, %p153
      %p155 = scmp.ne.s32.totalorder %s143, %s144
      %p156 = scmp.eq.s32.totalorder %s29, 1
      %p157 = por %p155, %p156
      %p159 = scmp.ne.s32.totalorder %s144, %s158
      %p160 = scmp.eq.s32.totalorder %s29, 0
      %p161 = por %p159, %p160
      %s163 = sadd.s32 %s162, 1
      %p166 = scmp.eq.s32.totalorder %s23, 1
      %p167 = scmp.ne.s32.totalorder %s162, %s164
      %p168 = scmp.eq.s32.totalorder %s23, 0
      %p169 = por %p167, %p168
      %p170 = scmp.ne.s32.totalorder %s162, %s164
      %p171 = scmp.eq.s32.totalorder %s28, 1
      %p172 = por %p170, %p171
      %p173 = scmp.ne.s32.totalorder %s164, %s165
      %p174 = scmp.eq.s32.totalorder %s28, 0
      %p175 = por %p173, %p174
      %p176 = scmp.ne.s32.totalorder %s164, %s165
      %p177 = scmp.eq.s32.totalorder %s29, 1
      %p178 = por %p176, %p177
      %p180 = scmp.ne.s32.totalorder %s165, %s179
      %p181 = scmp.eq.s32.totalorder %s29, 0
      %p182 = por %p180, %p181
      %s184 = sadd.s32 %s183, 1
      %p187 = scmp.eq.s32.totalorder %s23, 1
      %p188 = scmp.ne.s32.totalorder %s183, %s185
      %p189 = scmp.eq.s32.totalorder %s23, 0
      %p190 = por %p188, %p189
      %p191 = scmp.ne.s32.totalorder %s183, %s185
      %p192 = scmp.eq.s32.totalorder %s28, 1
      %p193 = por %p191, %p192
      %p194 = scmp.ne.s32.totalorder %s185, %s186
      %p195 = scmp.eq.s32.totalorder %s28, 0
      %p196 = por %p194, %p195
      %p197 = scmp.ne.s32.totalorder %s185, %s186
      %p198 = scmp.eq.s32.totalorder %s29, 1
      %p199 = por %p197, %p198
      %p201 = scmp.ne.s32.totalorder %s186, %s200
      %p202 = scmp.eq.s32.totalorder %s29, 0
      %p203 = por %p201, %p202
      %s205 = sadd.s32 %s204, 1
      %p208 = scmp.eq.s32.totalorder %s23, 1
      %p209 = scmp.ne.s32.totalorder %s204, %s206
      %p210 = scmp.eq.s32.totalorder %s23, 0
      %p211 = por %p209, %p210
      %p212 = scmp.ne.s32.totalorder %s204, %s206
      %p213 = scmp.eq.s32.totalorder %s28, 1
      %p214 = por %p212, %p213
      %p215 = scmp.ne.s32.totalorder %s206, %s207
      %p216 = scmp.eq.s32.totalorder %s28, 0
      %p217 = por %p215, %p216
      %p218 = scmp.ne.s32.totalorder %s206, %s207
      %p219 = scmp.eq.s32.totalorder %s29, 1
      %p220 = por %p218, %p219
      %p222 = scmp.ne.s32.totalorder %s207, %s221
      %p223 = scmp.eq.s32.totalorder %s29, 0
      %p224 = por %p222, %p223
      %s225 = ssub.s32 %s23, %s30
      %p226 = scmp.eq.s32.totalorder %s225, 0
      %s228 = sadd.s32 %s227, 1
      %s229 = scalar_select %p226, %s227, %s228
      %p232 = pneg %p226
      %p233 = scmp.eq.s32.totalorder %s23, 1
      %p234 = por %p232, %p233
      %p235 = scmp.ne.s32.totalorder %s227, %s230
      %p236 = scmp.eq.s32.totalorder %s23, 0
      %p237 = por %p235, %p236
      %p238 = scmp.ne.s32.totalorder %s227, %s230
      %p239 = scmp.eq.s32.totalorder %s28, 1
      %p240 = por %p238, %p239
      %p241 = scmp.ne.s32.totalorder %s230, %s231
      %p242 = scmp.eq.s32.totalorder %s28, 0
      %p243 = por %p241, %p242
      %p244 = scmp.ne.s32.totalorder %s230, %s231
      %p245 = scmp.eq.s32.totalorder %s29, 1
      %p246 = por %p244, %p245
      %p248 = scmp.ne.s32.totalorder %s231, %s247
      %p249 = scmp.eq.s32.totalorder %s29, 0
      %p250 = por %p248, %p249
      %p251 = scmp.le.s32.totalorder 1, %s23
      %p252 = scmp.lt.s32.totalorder %s23, 3
      %p253 = pnand %p251, %p252
      %p254 = pneg %p253
      // Predicated region
      $region9: #{tpu_custom_call.1} parent=5 // pred_check
        _
      $region10: #{tpu_custom_call.1} parent=5 // pred_check_branch
        %256 = sbr.rel (%p253) target = $region12
      $region11: #{tpu_custom_call.1} parent=5 // pred_region
        %s257 = ssub.s32 %s23, 1
        // Predicated region
        $region13: #{tpu_custom_call.1} parent=11 // pred_check
          %p258 = pneg %p70
        $region14: #{tpu_custom_call.1} parent=11 // pred_check_branch
          %260 = sbr.rel (%p258) target = $region16
        $region15: #{tpu_custom_call.1} parent=11 // pred_region
          %262 = vsyncadd [#allocation6], 0
          %s263 = sshll.u32 %s1, 4
          %s264 = int_to_ptr.hbm [resolvable:$true] %s263
          %s265 = sshll.u32 [#allocation5], 4
          %s266 = int_to_ptr.vmem [resolvable:$true] %s265
          %271 = dma.hbm_to_vmem [thread:$0]  %s264, 12544, %s266, [#allocation6], 128, 128, 8
        $region16: #{tpu_custom_call.1} parent=11 // pred_fallthru
          _
        // Predicated region
        $region17: #{tpu_custom_call.1} parent=11 // pred_check
          %p272 = pneg %p91
        $region18: #{tpu_custom_call.1} parent=11 // pred_check_branch
          %274 = sbr.rel (%p272) target = $region20
        $region19: #{tpu_custom_call.1} parent=11 // pred_region
          %276 = vsyncadd [#allocation6], 0
          %s278 = sshll.u32 %s2, 4
          %s279 = int_to_ptr.hbm [resolvable:$true] %s278
          %s280 = sshll.u32 [#allocation7], 4
          %s281 = int_to_ptr.vmem [resolvable:$true] %s280
          %283 = dma.hbm_to_vmem [thread:$0]  %s279, 32, %s281, [#allocation6]
        $region20: #{tpu_custom_call.1} parent=11 // pred_fallthru
          _
        // Predicated region
        $region21: #{tpu_custom_call.1} parent=11 // pred_check
          %p284 = pneg %p112
        $region22: #{tpu_custom_call.1} parent=11 // pred_check_branch
          %286 = sbr.rel (%p284) target = $region24
        $region23: #{tpu_custom_call.1} parent=11 // pred_region
          %288 = vsyncadd [#allocation9], 0
          %s289 = sshll.u32 %s3, 4
          %s290 = int_to_ptr.hbm [resolvable:$true] %s289
          %s291 = sshll.u32 [#allocation8], 4
          %s292 = int_to_ptr.vmem [resolvable:$true] %s291
          %297 = dma.hbm_to_vmem [thread:$0]  %s290, 2048, %s292, [#allocation9], 64, 64, 4
        $region24: #{tpu_custom_call.1} parent=11 // pred_fallthru
          _
        // Predicated region
        $region25: #{tpu_custom_call.1} parent=11 // pred_check
          %p298 = pneg %p133
        $region26: #{tpu_custom_call.1} parent=11 // pred_check_branch
          %300 = sbr.rel (%p298) target = $region28
        $region27: #{tpu_custom_call.1} parent=11 // pred_region
          %302 = vsyncadd [#allocation9], 0
          %s304 = sshll.u32 %s4, 4
          %s305 = int_to_ptr.hbm [resolvable:$true] %s304
          %s306 = sshll.u32 [#allocation10], 4
          %s307 = int_to_ptr.vmem [resolvable:$true] %s306
          %309 = dma.hbm_to_vmem [thread:$0]  %s305, 16, %s307, [#allocation9]
        $region28: #{tpu_custom_call.1} parent=11 // pred_fallthru
          _
        // Predicated region
        $region29: #{tpu_custom_call.1} parent=11 // pred_check
          %p310 = pneg %p154
        $region30: #{tpu_custom_call.1} parent=11 // pred_check_branch
          %312 = sbr.rel (%p310) target = $region32
        $region31: #{tpu_custom_call.1} parent=11 // pred_region
          _
        $region32: #{tpu_custom_call.1} parent=11 // pred_fallthru
          _
        // Predicated region
        $region33: #{tpu_custom_call.1} parent=11 // pred_check
          %p313 = pneg %p175
        $region34: #{tpu_custom_call.1} parent=11 // pred_check_branch
          %315 = sbr.rel (%p313) target = $region36
        $region35: #{tpu_custom_call.1} parent=11 // pred_region
          %317 = vsyncadd [#allocation12], 0
          %s319 = sshll.u32 %s6, 4
          %s320 = int_to_ptr.hbm [resolvable:$true] %s319
          %s321 = sshll.u32 [#allocation11], 4
          %s322 = int_to_ptr.vmem [resolvable:$true] %s321
          %324 = dma.hbm_to_vmem [thread:$0]  %s320, 16, %s322, [#allocation12]
        $region36: #{tpu_custom_call.1} parent=11 // pred_fallthru
          _
        // Predicated region
        $region37: #{tpu_custom_call.1} parent=11 // pred_check
          %p325 = pneg %p196
        $region38: #{tpu_custom_call.1} parent=11 // pred_check_branch
          %327 = sbr.rel (%p325) target = $region40
        $region39: #{tpu_custom_call.1} parent=11 // pred_region
          %329 = vsyncadd [#allocation12], 0
          %s331 = sshll.u32 %s7, 4
          %s332 = int_to_ptr.hbm [resolvable:$true] %s331
          %s333 = sshll.u32 [#allocation13], 4
          %s334 = int_to_ptr.vmem [resolvable:$true] %s333
          %336 = dma.hbm_to_vmem [thread:$0]  %s332, 16, %s334, [#allocation12]
        $region40: #{tpu_custom_call.1} parent=11 // pred_fallthru
          _
        // Predicated region
        $region41: #{tpu_custom_call.1} parent=11 // pred_check
          %p337 = pneg %p217
        $region42: #{tpu_custom_call.1} parent=11 // pred_check_branch
          %339 = sbr.rel (%p337) target = $region44
        $region43: #{tpu_custom_call.1} parent=11 // pred_region
          _
        $region44: #{tpu_custom_call.1} parent=11 // pred_fallthru
          _
      $region12: #{tpu_custom_call.1} parent=5 // pred_fallthru
        _
      %p340 = scmp.lt.s32.totalorder %s23, 2
      // Predicated region
      $region45: #{tpu_custom_call.1} parent=5 // pred_check
        %p341 = pneg %p340
      $region46: #{tpu_custom_call.1} parent=5 // pred_check_branch
        %343 = sbr.rel (%p341) target = $region48
      $region47: #{tpu_custom_call.1} parent=5 // pred_region
        // Predicated region
        $region49: #{tpu_custom_call.1} parent=47 // pred_check
          %p344 = pneg %p43
        $region50: #{tpu_custom_call.1} parent=47 // pred_check_branch
          %346 = sbr.rel (%p344) target = $region52
        $region51: #{tpu_custom_call.1} parent=47 // pred_region
          %s347 = sand.u32 %s33, 1
          %s348 = scalar_lea.sflag [#allocation4], %s347
          %s349 = sand.u32 %s33, 1
          %s350 = smul.addr %s349, 1792
          %s351 = scalar_lea.vmem [#allocation3], %s350
          %s352 = smul.u32 32, %s23
          %s353 = ssub.s32 38, %s352
          %p354 = scmp.lt.s32.totalorder %s353, 32
          %s355 = scalar_select %p354, %s353, 32
          %s356 = smul.u32 8, %s355
          %s357 = smul.u32 %s356, 7
          %s358 = ssub.s32 1792, %s357
          %s359 = sshll.u32 %s358, 4
          %360 = vsyncadd %s348, %s359
          %p361 = scmp.ne.s32.totalorder 0, %s357
          %s362 = smul.addr %s352, 7
          %s363 = smul.addr %s362, 8
          %s364 = scalar_lea.hbm %s0, %s363
          %s365 = smul.u32 56, %s355
          %s366 = sshll.u32 %s364, 4
          %s367 = int_to_ptr.hbm [resolvable:$true] %s366
          %s368 = sshll.u32 %s351, 4
          %s369 = int_to_ptr.vmem [resolvable:$true] %s368
          %s370 = sshll.u32 %s365, 4
          %374 = dma.hbm_to_vmem [thread:$0]  (%p361), %s367, %s370, %s369, %s348, 896, 896, 56
        $region52: #{tpu_custom_call.1} parent=47 // pred_fallthru
          _
      $region48: #{tpu_custom_call.1} parent=5 // pred_fallthru
        _
      %p375 = scmp.le.s32.totalorder 1, %s23
      %p376 = scmp.lt.s32.totalorder %s23, 3
      %p377 = pnand %p375, %p376
      %p378 = pneg %p377
      // Predicated region
      $region53: #{tpu_custom_call.1} parent=5 // pred_check
        _
      $region54: #{tpu_custom_call.1} parent=5 // pred_check_branch
        %380 = sbr.rel (%p377) target = $region56
      $region55: #{tpu_custom_call.1} parent=5 // pred_region
        %s381 = ssub.s32 %s23, 1
        %s382 = sand.u32 %s36, 1
        %s383 = scalar_lea.sflag [#allocation4], %s382
        %s384 = sand.u32 %s36, 1
        %s385 = smul.addr %s384, 1792
        %s386 = scalar_lea.vmem [#allocation3], %s385
        // Predicated region
        $region57: #{tpu_custom_call.1} parent=55 // pred_check
          %p387 = pneg %p49
        $region58: #{tpu_custom_call.1} parent=55 // pred_check_branch
          %389 = sbr.rel (%p387) target = $region60
        $region59: #{tpu_custom_call.1} parent=55 // pred_region
          %391 = dma.done %s383, 28672
        $region60: #{tpu_custom_call.1} parent=55 // pred_fallthru
          _
        // Predicated region
        $region61: #{tpu_custom_call.1} parent=55 // pred_check
          %p392 = pneg %p70
        $region62: #{tpu_custom_call.1} parent=55 // pred_check_branch
          %394 = sbr.rel (%p392) target = $region64
        $region63: #{tpu_custom_call.1} parent=55 // pred_region
          %396 = dma.done [#allocation6], 12544
        $region64: #{tpu_custom_call.1} parent=55 // pred_fallthru
          _
        // Predicated region
        $region65: #{tpu_custom_call.1} parent=55 // pred_check
          %p397 = pneg %p91
        $region66: #{tpu_custom_call.1} parent=55 // pred_check_branch
          %399 = sbr.rel (%p397) target = $region68
        $region67: #{tpu_custom_call.1} parent=55 // pred_region
          %401 = dma.done [#allocation6], 32
        $region68: #{tpu_custom_call.1} parent=55 // pred_fallthru
          _
        // Predicated region
        $region69: #{tpu_custom_call.1} parent=55 // pred_check
          %p402 = pneg %p112
        $region70: #{tpu_custom_call.1} parent=55 // pred_check_branch
          %404 = sbr.rel (%p402) target = $region72
        $region71: #{tpu_custom_call.1} parent=55 // pred_region
          %406 = dma.done [#allocation9], 2048
        $region72: #{tpu_custom_call.1} parent=55 // pred_fallthru
          _
        // Predicated region
        $region73: #{tpu_custom_call.1} parent=55 // pred_check
          %p407 = pneg %p133
        $region74: #{tpu_custom_call.1} parent=55 // pred_check_branch
          %409 = sbr.rel (%p407) target = $region76
        $region75: #{tpu_custom_call.1} parent=55 // pred_region
          %411 = dma.done [#allocation9], 16
        $region76: #{tpu_custom_call.1} parent=55 // pred_fallthru
          _
        // Predicated region
        $region77: #{tpu_custom_call.1} parent=55 // pred_check
          %p412 = pneg %p175
        $region78: #{tpu_custom_call.1} parent=55 // pred_check_branch
          %414 = sbr.rel (%p412) target = $region80
        $region79: #{tpu_custom_call.1} parent=55 // pred_region
          %416 = dma.done [#allocation12], 16
        $region80: #{tpu_custom_call.1} parent=55 // pred_fallthru
          _
        // Predicated region
        $region81: #{tpu_custom_call.1} parent=55 // pred_check
          %p417 = pneg %p196
        $region82: #{tpu_custom_call.1} parent=55 // pred_check_branch
          %419 = sbr.rel (%p417) target = $region84
        $region83: #{tpu_custom_call.1} parent=55 // pred_region
          %421 = dma.done [#allocation12], 16
        $region84: #{tpu_custom_call.1} parent=55 // pred_fallthru
          _
        %s422 = sand.u32 %s36, 1
        %s423 = scalar_lea.sflag [#allocation4], %s422
        %s424 = sand.u32 %s36, 1
        %s425 = smul.addr %s424, 1792
        %s426 = scalar_lea.vmem [#allocation3], %s425
        %p427 = pneg %p49
        %p428 = pneg %p46
        %p429 = pneg %p70
        %p430 = pneg %p67
        %p431 = pneg %p91
        %p432 = pneg %p88
        %p433 = pneg %p112
        %p434 = pneg %p109
        %p435 = pneg %p133
        %p436 = pneg %p130
        %p437 = pneg %p154
        %p438 = pneg %p151
        %p439 = pneg %p175
        %p440 = pneg %p172
        %p441 = pneg %p196
        %p442 = pneg %p193
        %p443 = pneg %p217
        %p444 = pneg %p214
        %p445 = pneg %p243
        %p446 = pneg %p240
        %s447 = sand.u32 %s230, 1
        %s448 = sand.u32 %s230, 1
        %s449 = smul.addr %s448, 256
        %s450 = scalar_lea.vmem [#allocation14], %s449
        %s451 = smul.u32 32, %s28
        %s452 = ssub.s32 38, %s451
        %p453 = scmp.lt.s32.totalorder %s452, 32
        %s454 = scalar_select %p453, %s452, 32
        %s455 = smul.u32 8, %s454
        %s456 = smul.u32 %s455, 7
        %s457 = smul.u32 32, %s28
        %s458 = ssub.s32 38, %s457
        %p459 = scmp.lt.s32.totalorder %s458, 32
        %s460 = scalar_select %p459, %s458, 32
        %s461 = smul.u32 8, %s460
        %v463 = vld [vmem:[%s386] sm:$0xff]
        %v464 = vld [vmem:[%s386 + $0x8] sm:$0xff]
        %v465 = vld [vmem:[%s386 + $0x10] sm:$0xff]
        %v466 = vld [vmem:[%s386 + $0x18] sm:$0xff]
        %v467 = vld [vmem:[%s386 + $0x20] sm:$0xff]
        %v468 = vld [vmem:[%s386 + $0x28] sm:$0xff]
        %v469 = vld [vmem:[%s386 + $0x30] sm:$0xff]
        %v470 = vld [vmem:[%s386 + $0x38] sm:$0xff]
        %v471 = vld [vmem:[%s386 + $0x40] sm:$0xff]
        %v472 = vld [vmem:[%s386 + $0x48] sm:$0xff]
        %v473 = vld [vmem:[%s386 + $0x50] sm:$0xff]
        %v474 = vld [vmem:[%s386 + $0x58] sm:$0xff]
        %v475 = vld [vmem:[%s386 + $0x60] sm:$0xff]
        %v476 = vld [vmem:[%s386 + $0x68] sm:$0xff]
        %v477 = vld [vmem:[%s386 + $0x70] sm:$0xff]
        %v478 = vld [vmem:[%s386 + $0x78] sm:$0xff]
        %v479 = vld [vmem:[%s386 + $0x80] sm:$0xff]
        %v480 = vld [vmem:[%s386 + $0x88] sm:$0xff]
        %v481 = vld [vmem:[%s386 + $0x90] sm:$0xff]
        %v482 = vld [vmem:[%s386 + $0x98] sm:$0xff]
        %v483 = vld [vmem:[%s386 + $0xa0] sm:$0xff]
        %v484 = vld [vmem:[%s386 + $0xa8] sm:$0xff]
        %v485 = vld [vmem:[%s386 + $0xb0] sm:$0xff]
        %v486 = vld [vmem:[%s386 + $0xb8] sm:$0xff]
        %v487 = vld [vmem:[%s386 + $0xc0] sm:$0xff]
        %v488 = vld [vmem:[%s386 + $0xc8] sm:$0xff]
        %v489 = vld [vmem:[%s386 + $0xd0] sm:$0xff]
        %v490 = vld [vmem:[%s386 + $0xd8] sm:$0xff]
        %v491 = vld [vmem:[%s386 + $0xe0] sm:$0xff]
        %v492 = vld [vmem:[%s386 + $0xe8] sm:$0xff]
        %v493 = vld [vmem:[%s386 + $0xf0] sm:$0xff]
        %v494 = vld [vmem:[%s386 + $0xf8] sm:$0xff]
        %v495 = vld [vmem:[%s386 + $0x100] sm:$0xff]
        %v496 = vld [vmem:[%s386 + $0x108] sm:$0xff]
        %v497 = vld [vmem:[%s386 + $0x110] sm:$0xff]
        %v498 = vld [vmem:[%s386 + $0x118] sm:$0xff]
        %v499 = vld [vmem:[%s386 + $0x120] sm:$0xff]
        %v500 = vld [vmem:[%s386 + $0x128] sm:$0xff]
        %v501 = vld [vmem:[%s386 + $0x130] sm:$0xff]
        %v502 = vld [vmem:[%s386 + $0x138] sm:$0xff]
        %v503 = vld [vmem:[%s386 + $0x140] sm:$0xff]
        %v504 = vld [vmem:[%s386 + $0x148] sm:$0xff]
        %v505 = vld [vmem:[%s386 + $0x150] sm:$0xff]
        %v506 = vld [vmem:[%s386 + $0x158] sm:$0xff]
        %v507 = vld [vmem:[%s386 + $0x160] sm:$0xff]
        %v508 = vld [vmem:[%s386 + $0x168] sm:$0xff]
        %v509 = vld [vmem:[%s386 + $0x170] sm:$0xff]
        %v510 = vld [vmem:[%s386 + $0x178] sm:$0xff]
        %v511 = vld [vmem:[%s386 + $0x180] sm:$0xff]
        %v512 = vld [vmem:[%s386 + $0x188] sm:$0xff]
        %v513 = vld [vmem:[%s386 + $0x190] sm:$0xff]
        %v514 = vld [vmem:[%s386 + $0x198] sm:$0xff]
        %v515 = vld [vmem:[%s386 + $0x1a0] sm:$0xff]
        %v516 = vld [vmem:[%s386 + $0x1a8] sm:$0xff]
        %v517 = vld [vmem:[%s386 + $0x1b0] sm:$0xff]
        %v518 = vld [vmem:[%s386 + $0x1b8] sm:$0xff]
        %v519 = vld [vmem:[%s386 + $0x1c0] sm:$0xff]
        %v520 = vld [vmem:[%s386 + $0x1c8] sm:$0xff]
        %v521 = vld [vmem:[%s386 + $0x1d0] sm:$0xff]
        %v522 = vld [vmem:[%s386 + $0x1d8] sm:$0xff]
        %v523 = vld [vmem:[%s386 + $0x1e0] sm:$0xff]
        %v524 = vld [vmem:[%s386 + $0x1e8] sm:$0xff]
        %v525 = vld [vmem:[%s386 + $0x1f0] sm:$0xff]
        %v526 = vld [vmem:[%s386 + $0x1f8] sm:$0xff]
        %v527 = vld [vmem:[%s386 + $0x200] sm:$0xff]
        %v528 = vld [vmem:[%s386 + $0x208] sm:$0xff]
        %v529 = vld [vmem:[%s386 + $0x210] sm:$0xff]
        %v530 = vld [vmem:[%s386 + $0x218] sm:$0xff]
        %v531 = vld [vmem:[%s386 + $0x220] sm:$0xff]
        %v532 = vld [vmem:[%s386 + $0x228] sm:$0xff]
        %v533 = vld [vmem:[%s386 + $0x230] sm:$0xff]
        %v534 = vld [vmem:[%s386 + $0x238] sm:$0xff]
        %v535 = vld [vmem:[%s386 + $0x240] sm:$0xff]
        %v536 = vld [vmem:[%s386 + $0x248] sm:$0xff]
        %v537 = vld [vmem:[%s386 + $0x250] sm:$0xff]
        %v538 = vld [vmem:[%s386 + $0x258] sm:$0xff]
        %v539 = vld [vmem:[%s386 + $0x260] sm:$0xff]
        %v540 = vld [vmem:[%s386 + $0x268] sm:$0xff]
        %v541 = vld [vmem:[%s386 + $0x270] sm:$0xff]
        %v542 = vld [vmem:[%s386 + $0x278] sm:$0xff]
        %v543 = vld [vmem:[%s386 + $0x280] sm:$0xff]
        %v544 = vld [vmem:[%s386 + $0x288] sm:$0xff]
        %v545 = vld [vmem:[%s386 + $0x290] sm:$0xff]
        %v546 = vld [vmem:[%s386 + $0x298] sm:$0xff]
        %v547 = vld [vmem:[%s386 + $0x2a0] sm:$0xff]
        %v548 = vld [vmem:[%s386 + $0x2a8] sm:$0xff]
        %v549 = vld [vmem:[%s386 + $0x2b0] sm:$0xff]
        %v550 = vld [vmem:[%s386 + $0x2b8] sm:$0xff]
        %v551 = vld [vmem:[%s386 + $0x2c0] sm:$0xff]
        %v552 = vld [vmem:[%s386 + $0x2c8] sm:$0xff]
        %v553 = vld [vmem:[%s386 + $0x2d0] sm:$0xff]
        %v554 = vld [vmem:[%s386 + $0x2d8] sm:$0xff]
        %v555 = vld [vmem:[%s386 + $0x2e0] sm:$0xff]
        %v556 = vld [vmem:[%s386 + $0x2e8] sm:$0xff]
        %v557 = vld [vmem:[%s386 + $0x2f0] sm:$0xff]
        %v558 = vld [vmem:[%s386 + $0x2f8] sm:$0xff]
        %v559 = vld [vmem:[%s386 + $0x300] sm:$0xff]
        %v560 = vld [vmem:[%s386 + $0x308] sm:$0xff]
        %v561 = vld [vmem:[%s386 + $0x310] sm:$0xff]
        %v562 = vld [vmem:[%s386 + $0x318] sm:$0xff]
        %v563 = vld [vmem:[%s386 + $0x320] sm:$0xff]
        %v564 = vld [vmem:[%s386 + $0x328] sm:$0xff]
        %v565 = vld [vmem:[%s386 + $0x330] sm:$0xff]
        %v566 = vld [vmem:[%s386 + $0x338] sm:$0xff]
        %v567 = vld [vmem:[%s386 + $0x340] sm:$0xff]
        %v568 = vld [vmem:[%s386 + $0x348] sm:$0xff]
        %v569 = vld [vmem:[%s386 + $0x350] sm:$0xff]
        %v570 = vld [vmem:[%s386 + $0x358] sm:$0xff]
        %v571 = vld [vmem:[%s386 + $0x360] sm:$0xff]
        %v572 = vld [vmem:[%s386 + $0x368] sm:$0xff]
        %v573 = vld [vmem:[%s386 + $0x370] sm:$0xff]
        %v574 = vld [vmem:[%s386 + $0x378] sm:$0xff]
        %v575 = vld [vmem:[%s386 + $0x380] sm:$0xff]
        %v576 = vld [vmem:[%s386 + $0x388] sm:$0xff]
        %v577 = vld [vmem:[%s386 + $0x390] sm:$0xff]
        %v578 = vld [vmem:[%s386 + $0x398] sm:$0xff]
        %v579 = vld [vmem:[%s386 + $0x3a0] sm:$0xff]
        %v580 = vld [vmem:[%s386 + $0x3a8] sm:$0xff]
        %v581 = vld [vmem:[%s386 + $0x3b0] sm:$0xff]
        %v582 = vld [vmem:[%s386 + $0x3b8] sm:$0xff]
        %v583 = vld [vmem:[%s386 + $0x3c0] sm:$0xff]
        %v584 = vld [vmem:[%s386 + $0x3c8] sm:$0xff]
        %v585 = vld [vmem:[%s386 + $0x3d0] sm:$0xff]
        %v586 = vld [vmem:[%s386 + $0x3d8] sm:$0xff]
        %v587 = vld [vmem:[%s386 + $0x3e0] sm:$0xff]
        %v588 = vld [vmem:[%s386 + $0x3e8] sm:$0xff]
        %v589 = vld [vmem:[%s386 + $0x3f0] sm:$0xff]
        %v590 = vld [vmem:[%s386 + $0x3f8] sm:$0xff]
        %v591 = vld [vmem:[%s386 + $0x400] sm:$0xff]
        %v592 = vld [vmem:[%s386 + $0x408] sm:$0xff]
        %v593 = vld [vmem:[%s386 + $0x410] sm:$0xff]
        %v594 = vld [vmem:[%s386 + $0x418] sm:$0xff]
        %v595 = vld [vmem:[%s386 + $0x420] sm:$0xff]
        %v596 = vld [vmem:[%s386 + $0x428] sm:$0xff]
        %v597 = vld [vmem:[%s386 + $0x430] sm:$0xff]
        %v598 = vld [vmem:[%s386 + $0x438] sm:$0xff]
        %v599 = vld [vmem:[%s386 + $0x440] sm:$0xff]
        %v600 = vld [vmem:[%s386 + $0x448] sm:$0xff]
        %v601 = vld [vmem:[%s386 + $0x450] sm:$0xff]
        %v602 = vld [vmem:[%s386 + $0x458] sm:$0xff]
        %v603 = vld [vmem:[%s386 + $0x460] sm:$0xff]
        %v604 = vld [vmem:[%s386 + $0x468] sm:$0xff]
        %v605 = vld [vmem:[%s386 + $0x470] sm:$0xff]
        %v606 = vld [vmem:[%s386 + $0x478] sm:$0xff]
        %v607 = vld [vmem:[%s386 + $0x480] sm:$0xff]
        %v608 = vld [vmem:[%s386 + $0x488] sm:$0xff]
        %v609 = vld [vmem:[%s386 + $0x490] sm:$0xff]
        %v610 = vld [vmem:[%s386 + $0x498] sm:$0xff]
        %v611 = vld [vmem:[%s386 + $0x4a0] sm:$0xff]
        %v612 = vld [vmem:[%s386 + $0x4a8] sm:$0xff]
        %v613 = vld [vmem:[%s386 + $0x4b0] sm:$0xff]
        %v614 = vld [vmem:[%s386 + $0x4b8] sm:$0xff]
        %v615 = vld [vmem:[%s386 + $0x4c0] sm:$0xff]
        %v616 = vld [vmem:[%s386 + $0x4c8] sm:$0xff]
        %v617 = vld [vmem:[%s386 + $0x4d0] sm:$0xff]
        %v618 = vld [vmem:[%s386 + $0x4d8] sm:$0xff]
        %v619 = vld [vmem:[%s386 + $0x4e0] sm:$0xff]
        %v620 = vld [vmem:[%s386 + $0x4e8] sm:$0xff]
        %v621 = vld [vmem:[%s386 + $0x4f0] sm:$0xff]
        %v622 = vld [vmem:[%s386 + $0x4f8] sm:$0xff]
        %v623 = vld [vmem:[%s386 + $0x500] sm:$0xff]
        %v624 = vld [vmem:[%s386 + $0x508] sm:$0xff]
        %v625 = vld [vmem:[%s386 + $0x510] sm:$0xff]
        %v626 = vld [vmem:[%s386 + $0x518] sm:$0xff]
        %v627 = vld [vmem:[%s386 + $0x520] sm:$0xff]
        %v628 = vld [vmem:[%s386 + $0x528] sm:$0xff]
        %v629 = vld [vmem:[%s386 + $0x530] sm:$0xff]
        %v630 = vld [vmem:[%s386 + $0x538] sm:$0xff]
        %v631 = vld [vmem:[%s386 + $0x540] sm:$0xff]
        %v632 = vld [vmem:[%s386 + $0x548] sm:$0xff]
        %v633 = vld [vmem:[%s386 + $0x550] sm:$0xff]
        %v634 = vld [vmem:[%s386 + $0x558] sm:$0xff]
        %v635 = vld [vmem:[%s386 + $0x560] sm:$0xff]
        %v636 = vld [vmem:[%s386 + $0x568] sm:$0xff]
        %v637 = vld [vmem:[%s386 + $0x570] sm:$0xff]
        %v638 = vld [vmem:[%s386 + $0x578] sm:$0xff]
        %v639 = vld [vmem:[%s386 + $0x580] sm:$0xff]
        %v640 = vld [vmem:[%s386 + $0x588] sm:$0xff]
        %v641 = vld [vmem:[%s386 + $0x590] sm:$0xff]
        %v642 = vld [vmem:[%s386 + $0x598] sm:$0xff]
        %v643 = vld [vmem:[%s386 + $0x5a0] sm:$0xff]
        %v644 = vld [vmem:[%s386 + $0x5a8] sm:$0xff]
        %v645 = vld [vmem:[%s386 + $0x5b0] sm:$0xff]
        %v646 = vld [vmem:[%s386 + $0x5b8] sm:$0xff]
        %v647 = vld [vmem:[%s386 + $0x5c0] sm:$0xff]
        %v648 = vld [vmem:[%s386 + $0x5c8] sm:$0xff]
        %v649 = vld [vmem:[%s386 + $0x5d0] sm:$0xff]
        %v650 = vld [vmem:[%s386 + $0x5d8] sm:$0xff]
        %v651 = vld [vmem:[%s386 + $0x5e0] sm:$0xff]
        %v652 = vld [vmem:[%s386 + $0x5e8] sm:$0xff]
        %v653 = vld [vmem:[%s386 + $0x5f0] sm:$0xff]
        %v654 = vld [vmem:[%s386 + $0x5f8] sm:$0xff]
        %v655 = vld [vmem:[%s386 + $0x600] sm:$0xff]
        %v656 = vld [vmem:[%s386 + $0x608] sm:$0xff]
        %v657 = vld [vmem:[%s386 + $0x610] sm:$0xff]
        %v658 = vld [vmem:[%s386 + $0x618] sm:$0xff]
        %v659 = vld [vmem:[%s386 + $0x620] sm:$0xff]
        %v660 = vld [vmem:[%s386 + $0x628] sm:$0xff]
        %v661 = vld [vmem:[%s386 + $0x630] sm:$0xff]
        %v662 = vld [vmem:[%s386 + $0x638] sm:$0xff]
        %v663 = vld [vmem:[%s386 + $0x640] sm:$0xff]
        %v664 = vld [vmem:[%s386 + $0x648] sm:$0xff]
        %v665 = vld [vmem:[%s386 + $0x650] sm:$0xff]
        %v666 = vld [vmem:[%s386 + $0x658] sm:$0xff]
        %v667 = vld [vmem:[%s386 + $0x660] sm:$0xff]
        %v668 = vld [vmem:[%s386 + $0x668] sm:$0xff]
        %v669 = vld [vmem:[%s386 + $0x670] sm:$0xff]
        %v670 = vld [vmem:[%s386 + $0x678] sm:$0xff]
        %v671 = vld [vmem:[%s386 + $0x680] sm:$0xff]
        %v672 = vld [vmem:[%s386 + $0x688] sm:$0xff]
        %v673 = vld [vmem:[%s386 + $0x690] sm:$0xff]
        %v674 = vld [vmem:[%s386 + $0x698] sm:$0xff]
        %v675 = vld [vmem:[%s386 + $0x6a0] sm:$0xff]
        %v676 = vld [vmem:[%s386 + $0x6a8] sm:$0xff]
        %v677 = vld [vmem:[%s386 + $0x6b0] sm:$0xff]
        %v678 = vld [vmem:[%s386 + $0x6b8] sm:$0xff]
        %v679 = vld [vmem:[%s386 + $0x6c0] sm:$0xff]
        %v680 = vld [vmem:[%s386 + $0x6c8] sm:$0xff]
        %v681 = vld [vmem:[%s386 + $0x6d0] sm:$0xff]
        %v682 = vld [vmem:[%s386 + $0x6d8] sm:$0xff]
        %v683 = vld [vmem:[%s386 + $0x6e0] sm:$0xff]
        %v684 = vld [vmem:[%s386 + $0x6e8] sm:$0xff]
        %v685 = vld [vmem:[%s386 + $0x6f0] sm:$0xff]
        %v686 = vld [vmem:[%s386 + $0x6f8] sm:$0xff]
        %v687 = vpack.c.bf16 %v470, %v463
        %v688 = vpack.c.bf16 %v471, %v464
        %v689 = vpack.c.bf16 %v472, %v465
        %v690 = vpack.c.bf16 %v473, %v466
        %v691 = vpack.c.bf16 %v474, %v467
        %v692 = vpack.c.bf16 %v475, %v468
        %v693 = vpack.c.bf16 %v476, %v469
        %v694 = vpack.c.bf16 %v484, %v477
        %v695 = vpack.c.bf16 %v485, %v478
        %v696 = vpack.c.bf16 %v486, %v479
        %v697 = vpack.c.bf16 %v487, %v480
        %v698 = vpack.c.bf16 %v488, %v481
        %v699 = vpack.c.bf16 %v489, %v482
        %v700 = vpack.c.bf16 %v490, %v483
        %v701 = vpack.c.bf16 %v498, %v491
        %v702 = vpack.c.bf16 %v499, %v492
        %v703 = vpack.c.bf16 %v500, %v493
        %v704 = vpack.c.bf16 %v501, %v494
        %v705 = vpack.c.bf16 %v502, %v495
        %v706 = vpack.c.bf16 %v503, %v496
        %v707 = vpack.c.bf16 %v504, %v497
        %v708 = vpack.c.bf16 %v512, %v505
        %v709 = vpack.c.bf16 %v513, %v506
        %v710 = vpack.c.bf16 %v514, %v507
        %v711 = vpack.c.bf16 %v515, %v508
        %v712 = vpack.c.bf16 %v516, %v509
        %v713 = vpack.c.bf16 %v517, %v510
        %v714 = vpack.c.bf16 %v518, %v511
        %v715 = vpack.c.bf16 %v526, %v519
        %v716 = vpack.c.bf16 %v527, %v520
        %v717 = vpack.c.bf16 %v528, %v521
        %v718 = vpack.c.bf16 %v529, %v522
        %v719 = vpack.c.bf16 %v530, %v523
        %v720 = vpack.c.bf16 %v531, %v524
        %v721 = vpack.c.bf16 %v532, %v525
        %v722 = vpack.c.bf16 %v540, %v533
        %v723 = vpack.c.bf16 %v541, %v534
        %v724 = vpack.c.bf16 %v542, %v535
        %v725 = vpack.c.bf16 %v543, %v536
        %v726 = vpack.c.bf16 %v544, %v537
        %v727 = vpack.c.bf16 %v545, %v538
        %v728 = vpack.c.bf16 %v546, %v539
        %v729 = vpack.c.bf16 %v554, %v547
        %v730 = vpack.c.bf16 %v555, %v548
        %v731 = vpack.c.bf16 %v556, %v549
        %v732 = vpack.c.bf16 %v557, %v550
        %v733 = vpack.c.bf16 %v558, %v551
        %v734 = vpack.c.bf16 %v559, %v552
        %v735 = vpack.c.bf16 %v560, %v553
        %v736 = vpack.c.bf16 %v568, %v561
        %v737 = vpack.c.bf16 %v569, %v562
        %v738 = vpack.c.bf16 %v570, %v563
        %v739 = vpack.c.bf16 %v571, %v564
        %v740 = vpack.c.bf16 %v572, %v565
        %v741 = vpack.c.bf16 %v573, %v566
        %v742 = vpack.c.bf16 %v574, %v567
        %v743 = vpack.c.bf16 %v582, %v575
        %v744 = vpack.c.bf16 %v583, %v576
        %v745 = vpack.c.bf16 %v584, %v577
        %v746 = vpack.c.bf16 %v585, %v578
        %v747 = vpack.c.bf16 %v586, %v579
        %v748 = vpack.c.bf16 %v587, %v580
        %v749 = vpack.c.bf16 %v588, %v581
        %v750 = vpack.c.bf16 %v596, %v589
        %v751 = vpack.c.bf16 %v597, %v590
        %v752 = vpack.c.bf16 %v598, %v591
        %v753 = vpack.c.bf16 %v599, %v592
        %v754 = vpack.c.bf16 %v600, %v593
        %v755 = vpack.c.bf16 %v601, %v594
        %v756 = vpack.c.bf16 %v602, %v595
        %v757 = vpack.c.bf16 %v610, %v603
        %v758 = vpack.c.bf16 %v611, %v604
        %v759 = vpack.c.bf16 %v612, %v605
        %v760 = vpack.c.bf16 %v613, %v606
        %v761 = vpack.c.bf16 %v614, %v607
        %v762 = vpack.c.bf16 %v615, %v608
        %v763 = vpack.c.bf16 %v616, %v609
        %v764 = vpack.c.bf16 %v624, %v617
        %v765 = vpack.c.bf16 %v625, %v618
        %v766 = vpack.c.bf16 %v626, %v619
        %v767 = vpack.c.bf16 %v627, %v620
        %v768 = vpack.c.bf16 %v628, %v621
        %v769 = vpack.c.bf16 %v629, %v622
        %v770 = vpack.c.bf16 %v630, %v623
        %v771 = vpack.c.bf16 %v638, %v631
        %v772 = vpack.c.bf16 %v639, %v632
        %v773 = vpack.c.bf16 %v640, %v633
        %v774 = vpack.c.bf16 %v641, %v634
        %v775 = vpack.c.bf16 %v642, %v635
        %v776 = vpack.c.bf16 %v643, %v636
        %v777 = vpack.c.bf16 %v644, %v637
        %v778 = vpack.c.bf16 %v652, %v645
        %v779 = vpack.c.bf16 %v653, %v646
        %v780 = vpack.c.bf16 %v654, %v647
        %v781 = vpack.c.bf16 %v655, %v648
        %v782 = vpack.c.bf16 %v656, %v649
        %v783 = vpack.c.bf16 %v657, %v650
        %v784 = vpack.c.bf16 %v658, %v651
        %v785 = vpack.c.bf16 %v666, %v659
        %v786 = vpack.c.bf16 %v667, %v660
        %v787 = vpack.c.bf16 %v668, %v661
        %v788 = vpack.c.bf16 %v669, %v662
        %v789 = vpack.c.bf16 %v670, %v663
        %v790 = vpack.c.bf16 %v671, %v664
        %v791 = vpack.c.bf16 %v672, %v665
        %v792 = vpack.c.bf16 %v680, %v673
        %v793 = vpack.c.bf16 %v681, %v674
        %v794 = vpack.c.bf16 %v682, %v675
        %v795 = vpack.c.bf16 %v683, %v676
        %v796 = vpack.c.bf16 %v684, %v677
        %v797 = vpack.c.bf16 %v685, %v678
        %v798 = vpack.c.bf16 %v686, %v679
        %v799 = vld [vmem:[#allocation5] sm:$0xff]
        %v800 = vld [vmem:[#allocation5 + $0x8] sm:$0xff]
        %v801 = vld [vmem:[#allocation5 + $0x10] sm:$0xff]
        %v802 = vld [vmem:[#allocation5 + $0x18] sm:$0xff]
        %v803 = vld [vmem:[#allocation5 + $0x20] sm:$0xff]
        %v804 = vld [vmem:[#allocation5 + $0x28] sm:$0xff]
        %v805 = vld [vmem:[#allocation5 + $0x30] sm:$0xff]
        %v806 = vld [vmem:[#allocation5 + $0x38] sm:$0xff]
        %v807 = vld [vmem:[#allocation5 + $0x40] sm:$0xff]
        %v808 = vld [vmem:[#allocation5 + $0x48] sm:$0xff]
        %v809 = vld [vmem:[#allocation5 + $0x50] sm:$0xff]
        %v810 = vld [vmem:[#allocation5 + $0x58] sm:$0xff]
        %v811 = vld [vmem:[#allocation5 + $0x60] sm:$0xff]
        %v812 = vld [vmem:[#allocation5 + $0x68] sm:$0xff]
        %v813 = vld [vmem:[#allocation5 + $0x70] sm:$0xff]
        %v814 = vld [vmem:[#allocation5 + $0x78] sm:$0xff]
        %v815 = vld [vmem:[#allocation5 + $0x80] sm:$0xff]
        %v816 = vld [vmem:[#allocation5 + $0x88] sm:$0xff]
        %v817 = vld [vmem:[#allocation5 + $0x90] sm:$0xff]
        %v818 = vld [vmem:[#allocation5 + $0x98] sm:$0xff]
        %v819 = vld [vmem:[#allocation5 + $0xa0] sm:$0xff]
        %v820 = vld [vmem:[#allocation5 + $0xa8] sm:$0xff]
        %v821 = vld [vmem:[#allocation5 + $0xb0] sm:$0xff]
        %v822 = vld [vmem:[#allocation5 + $0xb8] sm:$0xff]
        %v823 = vld [vmem:[#allocation5 + $0xc0] sm:$0xff]
        %v824 = vld [vmem:[#allocation5 + $0xc8] sm:$0xff]
        %v825 = vld [vmem:[#allocation5 + $0xd0] sm:$0xff]
        %v826 = vld [vmem:[#allocation5 + $0xd8] sm:$0xff]
        %v827 = vld [vmem:[#allocation5 + $0xe0] sm:$0xff]
        %v828 = vld [vmem:[#allocation5 + $0xe8] sm:$0xff]
        %v829 = vld [vmem:[#allocation5 + $0xf0] sm:$0xff]
        %v830 = vld [vmem:[#allocation5 + $0xf8] sm:$0xff]
        %v831 = vld [vmem:[#allocation5 + $0x100] sm:$0xff]
        %v832 = vld [vmem:[#allocation5 + $0x108] sm:$0xff]
        %v833 = vld [vmem:[#allocation5 + $0x110] sm:$0xff]
        %v834 = vld [vmem:[#allocation5 + $0x118] sm:$0xff]
        %v835 = vld [vmem:[#allocation5 + $0x120] sm:$0xff]
        %v836 = vld [vmem:[#allocation5 + $0x128] sm:$0xff]
        %v837 = vld [vmem:[#allocation5 + $0x130] sm:$0xff]
        %v838 = vld [vmem:[#allocation5 + $0x138] sm:$0xff]
        %v839 = vld [vmem:[#allocation5 + $0x140] sm:$0xff]
        %v840 = vld [vmem:[#allocation5 + $0x148] sm:$0xff]
        %v841 = vld [vmem:[#allocation5 + $0x150] sm:$0xff]
        %v842 = vld [vmem:[#allocation5 + $0x158] sm:$0xff]
        %v843 = vld [vmem:[#allocation5 + $0x160] sm:$0xff]
        %v844 = vld [vmem:[#allocation5 + $0x168] sm:$0xff]
        %v845 = vld [vmem:[#allocation5 + $0x170] sm:$0xff]
        %v846 = vld [vmem:[#allocation5 + $0x178] sm:$0xff]
        %v847 = vld [vmem:[#allocation5 + $0x180] sm:$0xff]
        %v848 = vld [vmem:[#allocation5 + $0x188] sm:$0xff]
        %v849 = vld [vmem:[#allocation5 + $0x190] sm:$0xff]
        %v850 = vld [vmem:[#allocation5 + $0x198] sm:$0xff]
        %v851 = vld [vmem:[#allocation5 + $0x1a0] sm:$0xff]
        %v852 = vld [vmem:[#allocation5 + $0x1a8] sm:$0xff]
        %v853 = vld [vmem:[#allocation5 + $0x1b0] sm:$0xff]
        %v854 = vld [vmem:[#allocation5 + $0x1b8] sm:$0xff]
        %v855 = vld [vmem:[#allocation5 + $0x1c0] sm:$0xff]
        %v856 = vld [vmem:[#allocation5 + $0x1c8] sm:$0xff]
        %v857 = vld [vmem:[#allocation5 + $0x1d0] sm:$0xff]
        %v858 = vld [vmem:[#allocation5 + $0x1d8] sm:$0xff]
        %v859 = vld [vmem:[#allocation5 + $0x1e0] sm:$0xff]
        %v860 = vld [vmem:[#allocation5 + $0x1e8] sm:$0xff]
        %v861 = vld [vmem:[#allocation5 + $0x1f0] sm:$0xff]
        %v862 = vld [vmem:[#allocation5 + $0x1f8] sm:$0xff]
        %v863 = vld [vmem:[#allocation5 + $0x200] sm:$0xff]
        %v864 = vld [vmem:[#allocation5 + $0x208] sm:$0xff]
        %v865 = vld [vmem:[#allocation5 + $0x210] sm:$0xff]
        %v866 = vld [vmem:[#allocation5 + $0x218] sm:$0xff]
        %v867 = vld [vmem:[#allocation5 + $0x220] sm:$0xff]
        %v868 = vld [vmem:[#allocation5 + $0x228] sm:$0xff]
        %v869 = vld [vmem:[#allocation5 + $0x230] sm:$0xff]
        %v870 = vld [vmem:[#allocation5 + $0x238] sm:$0xff]
        %v871 = vld [vmem:[#allocation5 + $0x240] sm:$0xff]
        %v872 = vld [vmem:[#allocation5 + $0x248] sm:$0xff]
        %v873 = vld [vmem:[#allocation5 + $0x250] sm:$0xff]
        %v874 = vld [vmem:[#allocation5 + $0x258] sm:$0xff]
        %v875 = vld [vmem:[#allocation5 + $0x260] sm:$0xff]
        %v876 = vld [vmem:[#allocation5 + $0x268] sm:$0xff]
        %v877 = vld [vmem:[#allocation5 + $0x270] sm:$0xff]
        %v878 = vld [vmem:[#allocation5 + $0x278] sm:$0xff]
        %v879 = vld [vmem:[#allocation5 + $0x280] sm:$0xff]
        %v880 = vld [vmem:[#allocation5 + $0x288] sm:$0xff]
        %v881 = vld [vmem:[#allocation5 + $0x290] sm:$0xff]
        %v882 = vld [vmem:[#allocation5 + $0x298] sm:$0xff]
        %v883 = vld [vmem:[#allocation5 + $0x2a0] sm:$0xff]
        %v884 = vld [vmem:[#allocation5 + $0x2a8] sm:$0xff]
        %v885 = vld [vmem:[#allocation5 + $0x2b0] sm:$0xff]
        %v886 = vld [vmem:[#allocation5 + $0x2b8] sm:$0xff]
        %v887 = vld [vmem:[#allocation5 + $0x2c0] sm:$0xff]
        %v888 = vld [vmem:[#allocation5 + $0x2c8] sm:$0xff]
        %v889 = vld [vmem:[#allocation5 + $0x2d0] sm:$0xff]
        %v890 = vld [vmem:[#allocation5 + $0x2d8] sm:$0xff]
        %v891 = vld [vmem:[#allocation5 + $0x2e0] sm:$0xff]
        %v892 = vld [vmem:[#allocation5 + $0x2e8] sm:$0xff]
        %v893 = vld [vmem:[#allocation5 + $0x2f0] sm:$0xff]
        %v894 = vld [vmem:[#allocation5 + $0x2f8] sm:$0xff]
        %v895 = vld [vmem:[#allocation5 + $0x300] sm:$0xff]
        %v896 = vld [vmem:[#allocation5 + $0x308] sm:$0xff]
        %v897 = vld [vmem:[#allocation7] sm:$0x3]
        %v899 = vperm.slane %v897, 0
        %v900 = vperm.slane %v897, 1
        %v1001 = vunpack.c.l.b16 %v799
        %v1002 = vunpack.c.h.b16 %v799
        %v1003 = vunpack.c.l.b16 %v800
        %v1004 = vunpack.c.h.b16 %v800
        %v1005 = vunpack.c.l.b16 %v801
        %v1006 = vunpack.c.h.b16 %v801
        %v1007 = vunpack.c.l.b16 %v802
        %v1008 = vunpack.c.h.b16 %v802
        %v1009 = vunpack.c.l.b16 %v803
        %v1010 = vunpack.c.h.b16 %v803
        %v1011 = vunpack.c.l.b16 %v804
        %v1012 = vunpack.c.h.b16 %v804
        %v1013 = vunpack.c.l.b16 %v805
        %v1014 = vunpack.c.h.b16 %v805
        %v1015 = vunpack.c.l.b16 %v806
        %v1016 = vunpack.c.h.b16 %v806
        %v1017 = vunpack.c.l.b16 %v807
        %v1018 = vunpack.c.h.b16 %v807
        %v1019 = vunpack.c.l.b16 %v808
        %v1020 = vunpack.c.h.b16 %v808
        %v1021 = vunpack.c.l.b16 %v809
        %v1022 = vunpack.c.h.b16 %v809
        %v1023 = vunpack.c.l.b16 %v810
        %v1024 = vunpack.c.h.b16 %v810
        %v1025 = vunpack.c.l.b16 %v811
        %v1026 = vunpack.c.h.b16 %v811
        %v1027 = vunpack.c.l.b16 %v812
        %v1028 = vunpack.c.h.b16 %v812
        %v1029 = vunpack.c.l.b16 %v813
        %v1030 = vunpack.c.h.b16 %v813
        %v1031 = vunpack.c.l.b16 %v814
        %v1032 = vunpack.c.h.b16 %v814
        %v1033 = vunpack.c.l.b16 %v815
        %v1034 = vunpack.c.h.b16 %v815
        %v1035 = vunpack.c.l.b16 %v816
        %v1036 = vunpack.c.h.b16 %v816
        %v1037 = vunpack.c.l.b16 %v817
        %v1038 = vunpack.c.h.b16 %v817
        %v1039 = vunpack.c.l.b16 %v818
        %v1040 = vunpack.c.h.b16 %v818
        %v1041 = vunpack.c.l.b16 %v819
        %v1042 = vunpack.c.h.b16 %v819
        %v1043 = vunpack.c.l.b16 %v820
        %v1044 = vunpack.c.h.b16 %v820
        %v1045 = vunpack.c.l.b16 %v821
        %v1046 = vunpack.c.h.b16 %v821
        %v1047 = vunpack.c.l.b16 %v822
        %v1048 = vunpack.c.h.b16 %v822
        %v1049 = vunpack.c.l.b16 %v823
        %v1050 = vunpack.c.h.b16 %v823
        %v1051 = vunpack.c.l.b16 %v824
        %v1052 = vunpack.c.h.b16 %v824
        %v1053 = vunpack.c.l.b16 %v825
        %v1054 = vunpack.c.h.b16 %v825
        %v1055 = vunpack.c.l.b16 %v826
        %v1056 = vunpack.c.h.b16 %v826
        %v1057 = vunpack.c.l.b16 %v827
        %v1058 = vunpack.c.h.b16 %v827
        %v1059 = vunpack.c.l.b16 %v828
        %v1060 = vunpack.c.h.b16 %v828
        %v1061 = vunpack.c.l.b16 %v829
        %v1062 = vunpack.c.h.b16 %v829
        %v1063 = vunpack.c.l.b16 %v830
        %v1064 = vunpack.c.h.b16 %v830
        %v1065 = vunpack.c.l.b16 %v831
        %v1066 = vunpack.c.h.b16 %v831
        %v1067 = vunpack.c.l.b16 %v832
        %v1068 = vunpack.c.h.b16 %v832
        %v1069 = vunpack.c.l.b16 %v833
        %v1070 = vunpack.c.h.b16 %v833
        %v1071 = vunpack.c.l.b16 %v834
        %v1072 = vunpack.c.h.b16 %v834
        %v1073 = vunpack.c.l.b16 %v835
        %v1074 = vunpack.c.h.b16 %v835
        %v1075 = vunpack.c.l.b16 %v836
        %v1076 = vunpack.c.h.b16 %v836
        %v1077 = vunpack.c.l.b16 %v837
        %v1078 = vunpack.c.h.b16 %v837
        %v1079 = vunpack.c.l.b16 %v838
        %v1080 = vunpack.c.h.b16 %v838
        %v1081 = vunpack.c.l.b16 %v839
        %v1082 = vunpack.c.h.b16 %v839
        %v1083 = vunpack.c.l.b16 %v840
        %v1084 = vunpack.c.h.b16 %v840
        %v1085 = vunpack.c.l.b16 %v841
        %v1086 = vunpack.c.h.b16 %v841
        %v1087 = vunpack.c.l.b16 %v842
        %v1088 = vunpack.c.h.b16 %v842
        %v1089 = vunpack.c.l.b16 %v843
        %v1090 = vunpack.c.h.b16 %v843
        %v1091 = vunpack.c.l.b16 %v844
        %v1092 = vunpack.c.h.b16 %v844
        %v1093 = vunpack.c.l.b16 %v845
        %v1094 = vunpack.c.h.b16 %v845
        %v1095 = vunpack.c.l.b16 %v846
        %v1096 = vunpack.c.h.b16 %v846
        %v1097 = vunpack.c.l.b16 %v847
        %v1098 = vunpack.c.h.b16 %v847
        %v1099 = vunpack.c.l.b16 %v848
        %v1100 = vunpack.c.h.b16 %v848
        %v1101 = vunpack.c.l.b16 %v849
        %v1102 = vunpack.c.h.b16 %v849
        %v1103 = vunpack.c.l.b16 %v850
        %v1104 = vunpack.c.h.b16 %v850
        %v1105 = vunpack.c.l.b16 %v851
        %v1106 = vunpack.c.h.b16 %v851
        %v1107 = vunpack.c.l.b16 %v852
        %v1108 = vunpack.c.h.b16 %v852
        %v1109 = vunpack.c.l.b16 %v853
        %v1110 = vunpack.c.h.b16 %v853
        %v1111 = vunpack.c.l.b16 %v854
        %v1112 = vunpack.c.h.b16 %v854
        %v1113 = vunpack.c.l.b16 %v855
        %v1114 = vunpack.c.h.b16 %v855
        %v1115 = vunpack.c.l.b16 %v856
        %v1116 = vunpack.c.h.b16 %v856
        %v1117 = vunpack.c.l.b16 %v857
        %v1118 = vunpack.c.h.b16 %v857
        %v1119 = vunpack.c.l.b16 %v858
        %v1120 = vunpack.c.h.b16 %v858
        %v1121 = vunpack.c.l.b16 %v859
        %v1122 = vunpack.c.h.b16 %v859
        %v1123 = vunpack.c.l.b16 %v860
        %v1124 = vunpack.c.h.b16 %v860
        %v1125 = vunpack.c.l.b16 %v861
        %v1126 = vunpack.c.h.b16 %v861
        %v1127 = vunpack.c.l.b16 %v862
        %v1128 = vunpack.c.h.b16 %v862
        %v1129 = vunpack.c.l.b16 %v863
        %v1130 = vunpack.c.h.b16 %v863
        %v1131 = vunpack.c.l.b16 %v864
        %v1132 = vunpack.c.h.b16 %v864
        %v1133 = vunpack.c.l.b16 %v865
        %v1134 = vunpack.c.h.b16 %v865
        %v1135 = vunpack.c.l.b16 %v866
        %v1136 = vunpack.c.h.b16 %v866
        %v1137 = vunpack.c.l.b16 %v867
        %v1138 = vunpack.c.h.b16 %v867
        %v1139 = vunpack.c.l.b16 %v868
        %v1140 = vunpack.c.h.b16 %v868
        %v1141 = vunpack.c.l.b16 %v869
        %v1142 = vunpack.c.h.b16 %v869
        %v1143 = vunpack.c.l.b16 %v870
        %v1144 = vunpack.c.h.b16 %v870
        %v1145 = vunpack.c.l.b16 %v871
        %v1146 = vunpack.c.h.b16 %v871
        %v1147 = vunpack.c.l.b16 %v872
        %v1148 = vunpack.c.h.b16 %v872
        %v1149 = vunpack.c.l.b16 %v873
        %v1150 = vunpack.c.h.b16 %v873
        %v1151 = vunpack.c.l.b16 %v874
        %v1152 = vunpack.c.h.b16 %v874
        %v1153 = vunpack.c.l.b16 %v875
        %v1154 = vunpack.c.h.b16 %v875
        %v1155 = vunpack.c.l.b16 %v876
        %v1156 = vunpack.c.h.b16 %v876
        %v1157 = vunpack.c.l.b16 %v877
        %v1158 = vunpack.c.h.b16 %v877
        %v1159 = vunpack.c.l.b16 %v878
        %v1160 = vunpack.c.h.b16 %v878
        %v1161 = vunpack.c.l.b16 %v879
        %v1162 = vunpack.c.h.b16 %v879
        %v1163 = vunpack.c.l.b16 %v880
        %v1164 = vunpack.c.h.b16 %v880
        %v1165 = vunpack.c.l.b16 %v881
        %v1166 = vunpack.c.h.b16 %v881
        %v1167 = vunpack.c.l.b16 %v882
        %v1168 = vunpack.c.h.b16 %v882
        %v1169 = vunpack.c.l.b16 %v883
        %v1170 = vunpack.c.h.b16 %v883
        %v1171 = vunpack.c.l.b16 %v884
        %v1172 = vunpack.c.h.b16 %v884
        %v1173 = vunpack.c.l.b16 %v885
        %v1174 = vunpack.c.h.b16 %v885
        %v1175 = vunpack.c.l.b16 %v886
        %v1176 = vunpack.c.h.b16 %v886
        %v1177 = vunpack.c.l.b16 %v887
        %v1178 = vunpack.c.h.b16 %v887
        %v1179 = vunpack.c.l.b16 %v888
        %v1180 = vunpack.c.h.b16 %v888
        %v1181 = vunpack.c.l.b16 %v889
        %v1182 = vunpack.c.h.b16 %v889
        %v1183 = vunpack.c.l.b16 %v890
        %v1184 = vunpack.c.h.b16 %v890
        %v1185 = vunpack.c.l.b16 %v891
        %v1186 = vunpack.c.h.b16 %v891
        %v1187 = vunpack.c.l.b16 %v892
        %v1188 = vunpack.c.h.b16 %v892
        %v1189 = vunpack.c.l.b16 %v893
        %v1190 = vunpack.c.h.b16 %v893
        %v1191 = vunpack.c.l.b16 %v894
        %v1192 = vunpack.c.h.b16 %v894
        %v1193 = vunpack.c.l.b16 %v895
        %v1194 = vunpack.c.h.b16 %v895
        %v1195 = vunpack.c.l.b16 %v896
        %v1196 = vunpack.c.h.b16 %v896
        %v1197 = vpack.c.b16 %v1003, %v1001
        %v1198 = vpack.c.b16 %v1004, %v1002
        %v1199 = vpack.c.b16 %v1007, %v1005
        %v1200 = vpack.c.b16 %v1008, %v1006
        %v1201 = vpack.c.b16 %v1011, %v1009
        %v1202 = vpack.c.b16 %v1012, %v1010
        %v1203 = vpack.c.b16 %v1015, %v1013
        %v1204 = vpack.c.b16 %v1016, %v1014
        %v1205 = vpack.c.b16 %v1019, %v1017
        %v1206 = vpack.c.b16 %v1020, %v1018
        %v1207 = vpack.c.b16 %v1023, %v1021
        %v1208 = vpack.c.b16 %v1024, %v1022
        %v1209 = vpack.c.b16 %v1027, %v1025
        %v1210 = vpack.c.b16 %v1028, %v1026
        %v1211 = vpack.c.b16 %v1031, %v1029
        %v1212 = vpack.c.b16 %v1032, %v1030
        %v1213 = vpack.c.b16 %v1035, %v1033
        %v1214 = vpack.c.b16 %v1036, %v1034
        %v1215 = vpack.c.b16 %v1039, %v1037
        %v1216 = vpack.c.b16 %v1040, %v1038
        %v1217 = vpack.c.b16 %v1043, %v1041
        %v1218 = vpack.c.b16 %v1044, %v1042
        %v1219 = vpack.c.b16 %v1047, %v1045
        %v1220 = vpack.c.b16 %v1048, %v1046
        %v1221 = vpack.c.b16 %v1051, %v1049
        %v1222 = vpack.c.b16 %v1052, %v1050
        %v1223 = vpack.c.b16 %v1055, %v1053
        %v1224 = vpack.c.b16 %v1056, %v1054
        %v1225 = vpack.c.b16 %v1059, %v1057
        %v1226 = vpack.c.b16 %v1060, %v1058
        %v1227 = vpack.c.b16 %v1063, %v1061
        %v1228 = vpack.c.b16 %v1064, %v1062
        %v1229 = vpack.c.b16 %v1067, %v1065
        %v1230 = vpack.c.b16 %v1068, %v1066
        %v1231 = vpack.c.b16 %v1071, %v1069
        %v1232 = vpack.c.b16 %v1072, %v1070
        %v1233 = vpack.c.b16 %v1075, %v1073
        %v1234 = vpack.c.b16 %v1076, %v1074
        %v1235 = vpack.c.b16 %v1079, %v1077
        %v1236 = vpack.c.b16 %v1080, %v1078
        %v1237 = vpack.c.b16 %v1083, %v1081
        %v1238 = vpack.c.b16 %v1084, %v1082
        %v1239 = vpack.c.b16 %v1087, %v1085
        %v1240 = vpack.c.b16 %v1088, %v1086
        %v1241 = vpack.c.b16 %v1091, %v1089
        %v1242 = vpack.c.b16 %v1092, %v1090
        %v1243 = vpack.c.b16 %v1095, %v1093
        %v1244 = vpack.c.b16 %v1096, %v1094
        %v1245 = vpack.c.b16 %v1099, %v1097
        %v1246 = vpack.c.b16 %v1100, %v1098
        %v1247 = vpack.c.b16 %v1103, %v1101
        %v1248 = vpack.c.b16 %v1104, %v1102
        %v1249 = vpack.c.b16 %v1107, %v1105
        %v1250 = vpack.c.b16 %v1108, %v1106
        %v1251 = vpack.c.b16 %v1111, %v1109
        %v1252 = vpack.c.b16 %v1112, %v1110
        %v1253 = vpack.c.b16 %v1115, %v1113
        %v1254 = vpack.c.b16 %v1116, %v1114
        %v1255 = vpack.c.b16 %v1119, %v1117
        %v1256 = vpack.c.b16 %v1120, %v1118
        %v1257 = vpack.c.b16 %v1123, %v1121
        %v1258 = vpack.c.b16 %v1124, %v1122
        %v1259 = vpack.c.b16 %v1127, %v1125
        %v1260 = vpack.c.b16 %v1128, %v1126
        %v1261 = vpack.c.b16 %v1131, %v1129
        %v1262 = vpack.c.b16 %v1132, %v1130
        %v1263 = vpack.c.b16 %v1135, %v1133
        %v1264 = vpack.c.b16 %v1136, %v1134
        %v1265 = vpack.c.b16 %v1139, %v1137
        %v1266 = vpack.c.b16 %v1140, %v1138
        %v1267 = vpack.c.b16 %v1143, %v1141
        %v1268 = vpack.c.b16 %v1144, %v1142
        %v1269 = vpack.c.b16 %v1147, %v1145
        %v1270 = vpack.c.b16 %v1148, %v1146
        %v1271 = vpack.c.b16 %v1151, %v1149
        %v1272 = vpack.c.b16 %v1152, %v1150
        %v1273 = vpack.c.b16 %v1155, %v1153
        %v1274 = vpack.c.b16 %v1156, %v1154
        %v1275 = vpack.c.b16 %v1159, %v1157
        %v1276 = vpack.c.b16 %v1160, %v1158
        %v1277 = vpack.c.b16 %v1163, %v1161
        %v1278 = vpack.c.b16 %v1164, %v1162
        %v1279 = vpack.c.b16 %v1167, %v1165
        %v1280 = vpack.c.b16 %v1168, %v1166
        %v1281 = vpack.c.b16 %v1171, %v1169
        %v1282 = vpack.c.b16 %v1172, %v1170
        %v1283 = vpack.c.b16 %v1175, %v1173
        %v1284 = vpack.c.b16 %v1176, %v1174
        %v1285 = vpack.c.b16 %v1179, %v1177
        %v1286 = vpack.c.b16 %v1180, %v1178
        %v1287 = vpack.c.b16 %v1183, %v1181
        %v1288 = vpack.c.b16 %v1184, %v1182
        %v1289 = vpack.c.b16 %v1187, %v1185
        %v1290 = vpack.c.b16 %v1188, %v1186
        %v1291 = vpack.c.b16 %v1191, %v1189
        %v1292 = vpack.c.b16 %v1192, %v1190
        %v1293 = vpack.c.b16 %v1195, %v1193
        %v1294 = vpack.c.b16 %v1196, %v1194
        %vm1393 = vcmask 130048
        %v1395 = vsel %vm1393, %v693, 0
        %v1398 = vsel %vm1393, %v700, 0
        %v1401 = vsel %vm1393, %v707, 0
        %v1404 = vsel %vm1393, %v714, 0
        %v1407 = vsel %vm1393, %v721, 0
        %v1410 = vsel %vm1393, %v728, 0
        %v1413 = vsel %vm1393, %v735, 0
        %v1416 = vsel %vm1393, %v742, 0
        %v1419 = vsel %vm1393, %v749, 0
        %v1422 = vsel %vm1393, %v756, 0
        %v1425 = vsel %vm1393, %v763, 0
        %v1428 = vsel %vm1393, %v770, 0
        %v1431 = vsel %vm1393, %v777, 0
        %v1434 = vsel %vm1393, %v784, 0
        %v1437 = vsel %vm1393, %v791, 0
        %v1440 = vsel %vm1393, %v798, 0
        %1442 = vmatpush.bf16.msra.mxu0 %v1211
        %1443 = vmatpush.bf16.msra.mxu0 %v1209
        %1444 = vmatpush.bf16.msra.mxu0 %v1207
        %1445 = vmatpush.bf16.msra.mxu0 %v1205
        %1446 = vmatpush.bf16.msra.mxu0 %v1203
        %1447 = vmatpush.bf16.msra.mxu0 %v1201
        %1448 = vmatpush.bf16.msra.mxu0 %v1199
        %1449 = vmatpush.bf16.msra.mxu0 %v1197
        %1450 = vmatmul.bf16.gmra.mxu0 %v687
        %v1451 = vpop.f32.mrf.mxu0
        %v1452 = vadd.f32 %v899, %v1451
        %v1453 = vpop.f32.mrf.mxu0
        %v1454 = vadd.f32 %v899, %v1453
        %1455 = vmatmul.bf16.gmra.mxu0 %v694
        %v1456 = vpop.f32.mrf.mxu0
        %v1457 = vadd.f32 %v899, %v1456
        %v1458 = vpop.f32.mrf.mxu0
        %v1459 = vadd.f32 %v899, %v1458
        %1460 = vmatmul.bf16.gmra.mxu0 %v701
        %v1461 = vpop.f32.mrf.mxu0
        %v1462 = vadd.f32 %v899, %v1461
        %v1463 = vpop.f32.mrf.mxu0
        %v1464 = vadd.f32 %v899, %v1463
        %1465 = vmatmul.bf16.gmra.mxu0 %v708
        %v1466 = vpop.f32.mrf.mxu0
        %v1467 = vadd.f32 %v899, %v1466
        %v1468 = vpop.f32.mrf.mxu0
        %v1469 = vadd.f32 %v899, %v1468
        %1470 = vmatmul.bf16.gmra.mxu0 %v715
        %v1471 = vpop.f32.mrf.mxu0
        %v1472 = vadd.f32 %v899, %v1471
        %v1473 = vpop.f32.mrf.mxu0
        %v1474 = vadd.f32 %v899, %v1473
        %1475 = vmatmul.bf16.gmra.mxu0 %v722
        %v1476 = vpop.f32.mrf.mxu0
        %v1477 = vadd.f32 %v899, %v1476
        %v1478 = vpop.f32.mrf.mxu0
        %v1479 = vadd.f32 %v899, %v1478
        %1480 = vmatmul.bf16.gmra.mxu0 %v729
        %v1481 = vpop.f32.mrf.mxu0
        %v1482 = vadd.f32 %v899, %v1481
        %v1483 = vpop.f32.mrf.mxu0
        %v1484 = vadd.f32 %v899, %v1483
        %1485 = vmatmul.bf16.gmra.mxu0 %v736
        %v1486 = vpop.f32.mrf.mxu0
        %v1487 = vadd.f32 %v899, %v1486
        %v1488 = vpop.f32.mrf.mxu0
        %v1489 = vadd.f32 %v899, %v1488
        %1490 = vmatmul.bf16.gmra.mxu0 %v743
        %v1491 = vpop.f32.mrf.mxu0
        %v1492 = vadd.f32 %v899, %v1491
        %v1493 = vpop.f32.mrf.mxu0
        %v1494 = vadd.f32 %v899, %v1493
        %1495 = vmatmul.bf16.gmra.mxu0 %v750
        %v1496 = vpop.f32.mrf.mxu0
        %v1497 = vadd.f32 %v899, %v1496
        %v1498 = vpop.f32.mrf.mxu0
        %v1499 = vadd.f32 %v899, %v1498
        %1500 = vmatmul.bf16.gmra.mxu0 %v757
        %v1501 = vpop.f32.mrf.mxu0
        %v1502 = vadd.f32 %v899, %v1501
        %v1503 = vpop.f32.mrf.mxu0
        %v1504 = vadd.f32 %v899, %v1503
        %1505 = vmatmul.bf16.gmra.mxu0 %v764
        %v1506 = vpop.f32.mrf.mxu0
        %v1507 = vadd.f32 %v899, %v1506
        %v1508 = vpop.f32.mrf.mxu0
        %v1509 = vadd.f32 %v899, %v1508
        %1510 = vmatmul.bf16.gmra.mxu0 %v771
        %v1511 = vpop.f32.mrf.mxu0
        %v1512 = vadd.f32 %v899, %v1511
        %v1513 = vpop.f32.mrf.mxu0
        %v1514 = vadd.f32 %v899, %v1513
        %1515 = vmatmul.bf16.gmra.mxu0 %v778
        %v1516 = vpop.f32.mrf.mxu0
        %v1517 = vadd.f32 %v899, %v1516
        %v1518 = vpop.f32.mrf.mxu0
        %v1519 = vadd.f32 %v899, %v1518
        %1520 = vmatmul.bf16.gmra.mxu0 %v785
        %v1521 = vpop.f32.mrf.mxu0
        %v1522 = vadd.f32 %v899, %v1521
        %v1523 = vpop.f32.mrf.mxu0
        %v1524 = vadd.f32 %v899, %v1523
        %1525 = vmatmul.bf16.gmra.mxu0 %v792
        %v1526 = vpop.f32.mrf.mxu0
        %v1527 = vadd.f32 %v899, %v1526
        %v1528 = vpop.f32.mrf.mxu0
        %v1529 = vadd.f32 %v899, %v1528
        %1530 = vdwg.mxu0
        %1531 = vmatpush.bf16.msra.mxu0 %v1227
        %1532 = vmatpush.bf16.msra.mxu0 %v1225
        %1533 = vmatpush.bf16.msra.mxu0 %v1223
        %1534 = vmatpush.bf16.msra.mxu0 %v1221
        %1535 = vmatpush.bf16.msra.mxu0 %v1219
        %1536 = vmatpush.bf16.msra.mxu0 %v1217
        %1537 = vmatpush.bf16.msra.mxu0 %v1215
        %1538 = vmatpush.bf16.msra.mxu0 %v1213
        %1539 = vmatmul.bf16.gmra.mxu0 %v688
        %v1540 = vpop.f32.mrf.mxu0
        %v1541 = vadd.f32 %v1452, %v1540
        %v1542 = vpop.f32.mrf.mxu0
        %v1543 = vadd.f32 %v1454, %v1542
        %1544 = vmatmul.bf16.gmra.mxu0 %v695
        %v1545 = vpop.f32.mrf.mxu0
        %v1546 = vadd.f32 %v1457, %v1545
        %v1547 = vpop.f32.mrf.mxu0
        %v1548 = vadd.f32 %v1459, %v1547
        %1549 = vmatmul.bf16.gmra.mxu0 %v702
        %v1550 = vpop.f32.mrf.mxu0
        %v1551 = vadd.f32 %v1462, %v1550
        %v1552 = vpop.f32.mrf.mxu0
        %v1553 = vadd.f32 %v1464, %v1552
        %1554 = vmatmul.bf16.gmra.mxu0 %v709
        %v1555 = vpop.f32.mrf.mxu0
        %v1556 = vadd.f32 %v1467, %v1555
        %v1557 = vpop.f32.mrf.mxu0
        %v1558 = vadd.f32 %v1469, %v1557
        %1559 = vmatmul.bf16.gmra.mxu0 %v716
        %v1560 = vpop.f32.mrf.mxu0
        %v1561 = vadd.f32 %v1472, %v1560
        %v1562 = vpop.f32.mrf.mxu0
        %v1563 = vadd.f32 %v1474, %v1562
        %1564 = vmatmul.bf16.gmra.mxu0 %v723
        %v1565 = vpop.f32.mrf.mxu0
        %v1566 = vadd.f32 %v1477, %v1565
        %v1567 = vpop.f32.mrf.mxu0
        %v1568 = vadd.f32 %v1479, %v1567
        %1569 = vmatmul.bf16.gmra.mxu0 %v730
        %v1570 = vpop.f32.mrf.mxu0
        %v1571 = vadd.f32 %v1482, %v1570
        %v1572 = vpop.f32.mrf.mxu0
        %v1573 = vadd.f32 %v1484, %v1572
        %1574 = vmatmul.bf16.gmra.mxu0 %v737
        %v1575 = vpop.f32.mrf.mxu0
        %v1576 = vadd.f32 %v1487, %v1575
        %v1577 = vpop.f32.mrf.mxu0
        %v1578 = vadd.f32 %v1489, %v1577
        %1579 = vmatmul.bf16.gmra.mxu0 %v744
        %v1580 = vpop.f32.mrf.mxu0
        %v1581 = vadd.f32 %v1492, %v1580
        %v1582 = vpop.f32.mrf.mxu0
        %v1583 = vadd.f32 %v1494, %v1582
        %1584 = vmatmul.bf16.gmra.mxu0 %v751
        %v1585 = vpop.f32.mrf.mxu0
        %v1586 = vadd.f32 %v1497, %v1585
        %v1587 = vpop.f32.mrf.mxu0
        %v1588 = vadd.f32 %v1499, %v1587
        %1589 = vmatmul.bf16.gmra.mxu0 %v758
        %v1590 = vpop.f32.mrf.mxu0
        %v1591 = vadd.f32 %v1502, %v1590
        %v1592 = vpop.f32.mrf.mxu0
        %v1593 = vadd.f32 %v1504, %v1592
        %1594 = vmatmul.bf16.gmra.mxu0 %v765
        %v1595 = vpop.f32.mrf.mxu0
        %v1596 = vadd.f32 %v1507, %v1595
        %v1597 = vpop.f32.mrf.mxu0
        %v1598 = vadd.f32 %v1509, %v1597
        %1599 = vmatmul.bf16.gmra.mxu0 %v772
        %v1600 = vpop.f32.mrf.mxu0
        %v1601 = vadd.f32 %v1512, %v1600
        %v1602 = vpop.f32.mrf.mxu0
        %v1603 = vadd.f32 %v1514, %v1602
        %1604 = vmatmul.bf16.gmra.mxu0 %v779
        %v1605 = vpop.f32.mrf.mxu0
        %v1606 = vadd.f32 %v1517, %v1605
        %v1607 = vpop.f32.mrf.mxu0
        %v1608 = vadd.f32 %v1519, %v1607
        %1609 = vmatmul.bf16.gmra.mxu0 %v786
        %v1610 = vpop.f32.mrf.mxu0
        %v1611 = vadd.f32 %v1522, %v1610
        %v1612 = vpop.f32.mrf.mxu0
        %v1613 = vadd.f32 %v1524, %v1612
        %1614 = vmatmul.bf16.gmra.mxu0 %v793
        %v1615 = vpop.f32.mrf.mxu0
        %v1616 = vadd.f32 %v1527, %v1615
        %v1617 = vpop.f32.mrf.mxu0
        %v1618 = vadd.f32 %v1529, %v1617
        %1619 = vdwg.mxu0
        %1620 = vmatpush.bf16.msra.mxu0 %v1243
        %1621 = vmatpush.bf16.msra.mxu0 %v1241
        %1622 = vmatpush.bf16.msra.mxu0 %v1239
        %1623 = vmatpush.bf16.msra.mxu0 %v1237
        %1624 = vmatpush.bf16.msra.mxu0 %v1235
        %1625 = vmatpush.bf16.msra.mxu0 %v1233
        %1626 = vmatpush.bf16.msra.mxu0 %v1231
        %1627 = vmatpush.bf16.msra.mxu0 %v1229
        %1628 = vmatmul.bf16.gmra.mxu0 %v689
        %v1629 = vpop.f32.mrf.mxu0
        %v1630 = vadd.f32 %v1541, %v1629
        %v1631 = vpop.f32.mrf.mxu0
        %v1632 = vadd.f32 %v1543, %v1631
        %1633 = vmatmul.bf16.gmra.mxu0 %v696
        %v1634 = vpop.f32.mrf.mxu0
        %v1635 = vadd.f32 %v1546, %v1634
        %v1636 = vpop.f32.mrf.mxu0
        %v1637 = vadd.f32 %v1548, %v1636
        %1638 = vmatmul.bf16.gmra.mxu0 %v703
        %v1639 = vpop.f32.mrf.mxu0
        %v1640 = vadd.f32 %v1551, %v1639
        %v1641 = vpop.f32.mrf.mxu0
        %v1642 = vadd.f32 %v1553, %v1641
        %1643 = vmatmul.bf16.gmra.mxu0 %v710
        %v1644 = vpop.f32.mrf.mxu0
        %v1645 = vadd.f32 %v1556, %v1644
        %v1646 = vpop.f32.mrf.mxu0
        %v1647 = vadd.f32 %v1558, %v1646
        %1648 = vmatmul.bf16.gmra.mxu0 %v717
        %v1649 = vpop.f32.mrf.mxu0
        %v1650 = vadd.f32 %v1561, %v1649
        %v1651 = vpop.f32.mrf.mxu0
        %v1652 = vadd.f32 %v1563, %v1651
        %1653 = vmatmul.bf16.gmra.mxu0 %v724
        %v1654 = vpop.f32.mrf.mxu0
        %v1655 = vadd.f32 %v1566, %v1654
        %v1656 = vpop.f32.mrf.mxu0
        %v1657 = vadd.f32 %v1568, %v1656
        %1658 = vmatmul.bf16.gmra.mxu0 %v731
        %v1659 = vpop.f32.mrf.mxu0
        %v1660 = vadd.f32 %v1571, %v1659
        %v1661 = vpop.f32.mrf.mxu0
        %v1662 = vadd.f32 %v1573, %v1661
        %1663 = vmatmul.bf16.gmra.mxu0 %v738
        %v1664 = vpop.f32.mrf.mxu0
        %v1665 = vadd.f32 %v1576, %v1664
        %v1666 = vpop.f32.mrf.mxu0
        %v1667 = vadd.f32 %v1578, %v1666
        %1668 = vmatmul.bf16.gmra.mxu0 %v745
        %v1669 = vpop.f32.mrf.mxu0
        %v1670 = vadd.f32 %v1581, %v1669
        %v1671 = vpop.f32.mrf.mxu0
        %v1672 = vadd.f32 %v1583, %v1671
        %1673 = vmatmul.bf16.gmra.mxu0 %v752
        %v1674 = vpop.f32.mrf.mxu0
        %v1675 = vadd.f32 %v1586, %v1674
        %v1676 = vpop.f32.mrf.mxu0
        %v1677 = vadd.f32 %v1588, %v1676
        %1678 = vmatmul.bf16.gmra.mxu0 %v759
        %v1679 = vpop.f32.mrf.mxu0
        %v1680 = vadd.f32 %v1591, %v1679
        %v1681 = vpop.f32.mrf.mxu0
        %v1682 = vadd.f32 %v1593, %v1681
        %1683 = vmatmul.bf16.gmra.mxu0 %v766
        %v1684 = vpop.f32.mrf.mxu0
        %v1685 = vadd.f32 %v1596, %v1684
        %v1686 = vpop.f32.mrf.mxu0
        %v1687 = vadd.f32 %v1598, %v1686
        %1688 = vmatmul.bf16.gmra.mxu0 %v773
        %v1689 = vpop.f32.mrf.mxu0
        %v1690 = vadd.f32 %v1601, %v1689
        %v1691 = vpop.f32.mrf.mxu0
        %v1692 = vadd.f32 %v1603, %v1691
        %1693 = vmatmul.bf16.gmra.mxu0 %v780
        %v1694 = vpop.f32.mrf.mxu0
        %v1695 = vadd.f32 %v1606, %v1694
        %v1696 = vpop.f32.mrf.mxu0
        %v1697 = vadd.f32 %v1608, %v1696
        %1698 = vmatmul.bf16.gmra.mxu0 %v787
        %v1699 = vpop.f32.mrf.mxu0
        %v1700 = vadd.f32 %v1611, %v1699
        %v1701 = vpop.f32.mrf.mxu0
        %v1702 = vadd.f32 %v1613, %v1701
        %1703 = vmatmul.bf16.gmra.mxu0 %v794
        %v1704 = vpop.f32.mrf.mxu0
        %v1705 = vadd.f32 %v1616, %v1704
        %v1706 = vpop.f32.mrf.mxu0
        %v1707 = vadd.f32 %v1618, %v1706
        %1708 = vdwg.mxu0
        %1709 = vmatpush.bf16.msra.mxu0 %v1259
        %1710 = vmatpush.bf16.msra.mxu0 %v1257
        %1711 = vmatpush.bf16.msra.mxu0 %v1255
        %1712 = vmatpush.bf16.msra.mxu0 %v1253
        %1713 = vmatpush.bf16.msra.mxu0 %v1251
        %1714 = vmatpush.bf16.msra.mxu0 %v1249
        %1715 = vmatpush.bf16.msra.mxu0 %v1247
        %1716 = vmatpush.bf16.msra.mxu0 %v1245
        %1717 = vmatmul.bf16.gmra.mxu0 %v690
        %v1718 = vpop.f32.mrf.mxu0
        %v1719 = vadd.f32 %v1630, %v1718
        %v1720 = vpop.f32.mrf.mxu0
        %v1721 = vadd.f32 %v1632, %v1720
        %1722 = vmatmul.bf16.gmra.mxu0 %v697
        %v1723 = vpop.f32.mrf.mxu0
        %v1724 = vadd.f32 %v1635, %v1723
        %v1725 = vpop.f32.mrf.mxu0
        %v1726 = vadd.f32 %v1637, %v1725
        %1727 = vmatmul.bf16.gmra.mxu0 %v704
        %v1728 = vpop.f32.mrf.mxu0
        %v1729 = vadd.f32 %v1640, %v1728
        %v1730 = vpop.f32.mrf.mxu0
        %v1731 = vadd.f32 %v1642, %v1730
        %1732 = vmatmul.bf16.gmra.mxu0 %v711
        %v1733 = vpop.f32.mrf.mxu0
        %v1734 = vadd.f32 %v1645, %v1733
        %v1735 = vpop.f32.mrf.mxu0
        %v1736 = vadd.f32 %v1647, %v1735
        %1737 = vmatmul.bf16.gmra.mxu0 %v718
        %v1738 = vpop.f32.mrf.mxu0
        %v1739 = vadd.f32 %v1650, %v1738
        %v1740 = vpop.f32.mrf.mxu0
        %v1741 = vadd.f32 %v1652, %v1740
        %1742 = vmatmul.bf16.gmra.mxu0 %v725
        %v1743 = vpop.f32.mrf.mxu0
        %v1744 = vadd.f32 %v1655, %v1743
        %v1745 = vpop.f32.mrf.mxu0
        %v1746 = vadd.f32 %v1657, %v1745
        %1747 = vmatmul.bf16.gmra.mxu0 %v732
        %v1748 = vpop.f32.mrf.mxu0
        %v1749 = vadd.f32 %v1660, %v1748
        %v1750 = vpop.f32.mrf.mxu0
        %v1751 = vadd.f32 %v1662, %v1750
        %1752 = vmatmul.bf16.gmra.mxu0 %v739
        %v1753 = vpop.f32.mrf.mxu0
        %v1754 = vadd.f32 %v1665, %v1753
        %v1755 = vpop.f32.mrf.mxu0
        %v1756 = vadd.f32 %v1667, %v1755
        %1757 = vmatmul.bf16.gmra.mxu0 %v746
        %v1758 = vpop.f32.mrf.mxu0
        %v1759 = vadd.f32 %v1670, %v1758
        %v1760 = vpop.f32.mrf.mxu0
        %v1761 = vadd.f32 %v1672, %v1760
        %1762 = vmatmul.bf16.gmra.mxu0 %v753
        %v1763 = vpop.f32.mrf.mxu0
        %v1764 = vadd.f32 %v1675, %v1763
        %v1765 = vpop.f32.mrf.mxu0
        %v1766 = vadd.f32 %v1677, %v1765
        %1767 = vmatmul.bf16.gmra.mxu0 %v760
        %v1768 = vpop.f32.mrf.mxu0
        %v1769 = vadd.f32 %v1680, %v1768
        %v1770 = vpop.f32.mrf.mxu0
        %v1771 = vadd.f32 %v1682, %v1770
        %1772 = vmatmul.bf16.gmra.mxu0 %v767
        %v1773 = vpop.f32.mrf.mxu0
        %v1774 = vadd.f32 %v1685, %v1773
        %v1775 = vpop.f32.mrf.mxu0
        %v1776 = vadd.f32 %v1687, %v1775
        %1777 = vmatmul.bf16.gmra.mxu0 %v774
        %v1778 = vpop.f32.mrf.mxu0
        %v1779 = vadd.f32 %v1690, %v1778
        %v1780 = vpop.f32.mrf.mxu0
        %v1781 = vadd.f32 %v1692, %v1780
        %1782 = vmatmul.bf16.gmra.mxu0 %v781
        %v1783 = vpop.f32.mrf.mxu0
        %v1784 = vadd.f32 %v1695, %v1783
        %v1785 = vpop.f32.mrf.mxu0
        %v1786 = vadd.f32 %v1697, %v1785
        %1787 = vmatmul.bf16.gmra.mxu0 %v788
        %v1788 = vpop.f32.mrf.mxu0
        %v1789 = vadd.f32 %v1700, %v1788
        %v1790 = vpop.f32.mrf.mxu0
        %v1791 = vadd.f32 %v1702, %v1790
        %1792 = vmatmul.bf16.gmra.mxu0 %v795
        %v1793 = vpop.f32.mrf.mxu0
        %v1794 = vadd.f32 %v1705, %v1793
        %v1795 = vpop.f32.mrf.mxu0
        %v1796 = vadd.f32 %v1707, %v1795
        %1797 = vdwg.mxu0
        %1798 = vmatpush.bf16.msra.mxu0 %v1275
        %1799 = vmatpush.bf16.msra.mxu0 %v1273
        %1800 = vmatpush.bf16.msra.mxu0 %v1271
        %1801 = vmatpush.bf16.msra.mxu0 %v1269
        %1802 = vmatpush.bf16.msra.mxu0 %v1267
        %1803 = vmatpush.bf16.msra.mxu0 %v1265
        %1804 = vmatpush.bf16.msra.mxu0 %v1263
        %1805 = vmatpush.bf16.msra.mxu0 %v1261
        %1806 = vmatmul.bf16.gmra.mxu0 %v691
        %v1807 = vpop.f32.mrf.mxu0
        %v1808 = vadd.f32 %v1719, %v1807
        %v1809 = vpop.f32.mrf.mxu0
        %v1810 = vadd.f32 %v1721, %v1809
        %1811 = vmatmul.bf16.gmra.mxu0 %v698
        %v1812 = vpop.f32.mrf.mxu0
        %v1813 = vadd.f32 %v1724, %v1812
        %v1814 = vpop.f32.mrf.mxu0
        %v1815 = vadd.f32 %v1726, %v1814
        %1816 = vmatmul.bf16.gmra.mxu0 %v705
        %v1817 = vpop.f32.mrf.mxu0
        %v1818 = vadd.f32 %v1729, %v1817
        %v1819 = vpop.f32.mrf.mxu0
        %v1820 = vadd.f32 %v1731, %v1819
        %1821 = vmatmul.bf16.gmra.mxu0 %v712
        %v1822 = vpop.f32.mrf.mxu0
        %v1823 = vadd.f32 %v1734, %v1822
        %v1824 = vpop.f32.mrf.mxu0
        %v1825 = vadd.f32 %v1736, %v1824
        %1826 = vmatmul.bf16.gmra.mxu0 %v719
        %v1827 = vpop.f32.mrf.mxu0
        %v1828 = vadd.f32 %v1739, %v1827
        %v1829 = vpop.f32.mrf.mxu0
        %v1830 = vadd.f32 %v1741, %v1829
        %1831 = vmatmul.bf16.gmra.mxu0 %v726
        %v1832 = vpop.f32.mrf.mxu0
        %v1833 = vadd.f32 %v1744, %v1832
        %v1834 = vpop.f32.mrf.mxu0
        %v1835 = vadd.f32 %v1746, %v1834
        %1836 = vmatmul.bf16.gmra.mxu0 %v733
        %v1837 = vpop.f32.mrf.mxu0
        %v1838 = vadd.f32 %v1749, %v1837
        %v1839 = vpop.f32.mrf.mxu0
        %v1840 = vadd.f32 %v1751, %v1839
        %1841 = vmatmul.bf16.gmra.mxu0 %v740
        %v1842 = vpop.f32.mrf.mxu0
        %v1843 = vadd.f32 %v1754, %v1842
        %v1844 = vpop.f32.mrf.mxu0
        %v1845 = vadd.f32 %v1756, %v1844
        %1846 = vmatmul.bf16.gmra.mxu0 %v747
        %v1847 = vpop.f32.mrf.mxu0
        %v1848 = vadd.f32 %v1759, %v1847
        %v1849 = vpop.f32.mrf.mxu0
        %v1850 = vadd.f32 %v1761, %v1849
        %1851 = vmatmul.bf16.gmra.mxu0 %v754
        %v1852 = vpop.f32.mrf.mxu0
        %v1853 = vadd.f32 %v1764, %v1852
        %v1854 = vpop.f32.mrf.mxu0
        %v1855 = vadd.f32 %v1766, %v1854
        %1856 = vmatmul.bf16.gmra.mxu0 %v761
        %v1857 = vpop.f32.mrf.mxu0
        %v1858 = vadd.f32 %v1769, %v1857
        %v1859 = vpop.f32.mrf.mxu0
        %v1860 = vadd.f32 %v1771, %v1859
        %1861 = vmatmul.bf16.gmra.mxu0 %v768
        %v1862 = vpop.f32.mrf.mxu0
        %v1863 = vadd.f32 %v1774, %v1862
        %v1864 = vpop.f32.mrf.mxu0
        %v1865 = vadd.f32 %v1776, %v1864
        %1866 = vmatmul.bf16.gmra.mxu0 %v775
        %v1867 = vpop.f32.mrf.mxu0
        %v1868 = vadd.f32 %v1779, %v1867
        %v1869 = vpop.f32.mrf.mxu0
        %v1870 = vadd.f32 %v1781, %v1869
        %1871 = vmatmul.bf16.gmra.mxu0 %v782
        %v1872 = vpop.f32.mrf.mxu0
        %v1873 = vadd.f32 %v1784, %v1872
        %v1874 = vpop.f32.mrf.mxu0
        %v1875 = vadd.f32 %v1786, %v1874
        %1876 = vmatmul.bf16.gmra.mxu0 %v789
        %v1877 = vpop.f32.mrf.mxu0
        %v1878 = vadd.f32 %v1789, %v1877
        %v1879 = vpop.f32.mrf.mxu0
        %v1880 = vadd.f32 %v1791, %v1879
        %1881 = vmatmul.bf16.gmra.mxu0 %v796
        %v1882 = vpop.f32.mrf.mxu0
        %v1883 = vadd.f32 %v1794, %v1882
        %v1884 = vpop.f32.mrf.mxu0
        %v1885 = vadd.f32 %v1796, %v1884
        %1886 = vdwg.mxu0
        %1887 = vmatpush.bf16.msra.mxu0 %v1291
        %1888 = vmatpush.bf16.msra.mxu0 %v1289
        %1889 = vmatpush.bf16.msra.mxu0 %v1287
        %1890 = vmatpush.bf16.msra.mxu0 %v1285
        %1891 = vmatpush.bf16.msra.mxu0 %v1283
        %1892 = vmatpush.bf16.msra.mxu0 %v1281
        %1893 = vmatpush.bf16.msra.mxu0 %v1279
        %1894 = vmatpush.bf16.msra.mxu0 %v1277
        %1895 = vmatmul.bf16.gmra.mxu0 %v692
        %v1896 = vpop.f32.mrf.mxu0
        %v1897 = vadd.f32 %v1808, %v1896
        %v1898 = vpop.f32.mrf.mxu0
        %v1899 = vadd.f32 %v1810, %v1898
        %1900 = vmatmul.bf16.gmra.mxu0 %v699
        %v1901 = vpop.f32.mrf.mxu0
        %v1902 = vadd.f32 %v1813, %v1901
        %v1903 = vpop.f32.mrf.mxu0
        %v1904 = vadd.f32 %v1815, %v1903
        %1905 = vmatmul.bf16.gmra.mxu0 %v706
        %v1906 = vpop.f32.mrf.mxu0
        %v1907 = vadd.f32 %v1818, %v1906
        %v1908 = vpop.f32.mrf.mxu0
        %v1909 = vadd.f32 %v1820, %v1908
        %1910 = vmatmul.bf16.gmra.mxu0 %v713
        %v1911 = vpop.f32.mrf.mxu0
        %v1912 = vadd.f32 %v1823, %v1911
        %v1913 = vpop.f32.mrf.mxu0
        %v1914 = vadd.f32 %v1825, %v1913
        %1915 = vmatmul.bf16.gmra.mxu0 %v720
        %v1916 = vpop.f32.mrf.mxu0
        %v1917 = vadd.f32 %v1828, %v1916
        %v1918 = vpop.f32.mrf.mxu0
        %v1919 = vadd.f32 %v1830, %v1918
        %1920 = vmatmul.bf16.gmra.mxu0 %v727
        %v1921 = vpop.f32.mrf.mxu0
        %v1922 = vadd.f32 %v1833, %v1921
        %v1923 = vpop.f32.mrf.mxu0
        %v1924 = vadd.f32 %v1835, %v1923
        %1925 = vmatmul.bf16.gmra.mxu0 %v734
        %v1926 = vpop.f32.mrf.mxu0
        %v1927 = vadd.f32 %v1838, %v1926
        %v1928 = vpop.f32.mrf.mxu0
        %v1929 = vadd.f32 %v1840, %v1928
        %1930 = vmatmul.bf16.gmra.mxu0 %v741
        %v1931 = vpop.f32.mrf.mxu0
        %v1932 = vadd.f32 %v1843, %v1931
        %v1933 = vpop.f32.mrf.mxu0
        %v1934 = vadd.f32 %v1845, %v1933
        %1935 = vmatmul.bf16.gmra.mxu0 %v748
        %v1936 = vpop.f32.mrf.mxu0
        %v1937 = vadd.f32 %v1848, %v1936
        %v1938 = vpop.f32.mrf.mxu0
        %v1939 = vadd.f32 %v1850, %v1938
        %1940 = vmatmul.bf16.gmra.mxu0 %v755
        %v1941 = vpop.f32.mrf.mxu0
        %v1942 = vadd.f32 %v1853, %v1941
        %v1943 = vpop.f32.mrf.mxu0
        %v1944 = vadd.f32 %v1855, %v1943
        %1945 = vmatmul.bf16.gmra.mxu0 %v762
        %v1946 = vpop.f32.mrf.mxu0
        %v1947 = vadd.f32 %v1858, %v1946
        %v1948 = vpop.f32.mrf.mxu0
        %v1949 = vadd.f32 %v1860, %v1948
        %1950 = vmatmul.bf16.gmra.mxu0 %v769
        %v1951 = vpop.f32.mrf.mxu0
        %v1952 = vadd.f32 %v1863, %v1951
        %v1953 = vpop.f32.mrf.mxu0
        %v1954 = vadd.f32 %v1865, %v1953
        %1955 = vmatmul.bf16.gmra.mxu0 %v776
        %v1956 = vpop.f32.mrf.mxu0
        %v1957 = vadd.f32 %v1868, %v1956
        %v1958 = vpop.f32.mrf.mxu0
        %v1959 = vadd.f32 %v1870, %v1958
        %1960 = vmatmul.bf16.gmra.mxu0 %v783
        %v1961 = vpop.f32.mrf.mxu0
        %v1962 = vadd.f32 %v1873, %v1961
        %v1963 = vpop.f32.mrf.mxu0
        %v1964 = vadd.f32 %v1875, %v1963
        %1965 = vmatmul.bf16.gmra.mxu0 %v790
        %v1966 = vpop.f32.mrf.mxu0
        %v1967 = vadd.f32 %v1878, %v1966
        %v1968 = vpop.f32.mrf.mxu0
        %v1969 = vadd.f32 %v1880, %v1968
        %1970 = vmatmul.bf16.gmra.mxu0 %v797
        %v1971 = vpop.f32.mrf.mxu0
        %v1972 = vadd.f32 %v1883, %v1971
        %v1973 = vpop.f32.mrf.mxu0
        %v1974 = vadd.f32 %v1885, %v1973
        %1975 = vdwg.mxu0
        %1976 = vmatpush.bf16.msra.mxu0 0
        %1977 = vmatpush.bf16.msra.mxu0 0
        %1978 = vmatpush.bf16.msra.mxu0 0
        %1979 = vmatpush.bf16.msra.mxu0 0
        %1980 = vmatpush.bf16.msra.mxu0 0
        %1981 = vmatpush.bf16.msra.mxu0 0
        %1982 = vmatpush.bf16.msra.mxu0 0
        %1983 = vmatpush.bf16.msra.mxu0 %v1293
        %1984 = vmatmul.bf16.gmra.mxu0 %v1395
        %v1985 = vpop.f32.mrf.mxu0
        %v1986 = vadd.f32 %v1897, %v1985
        %v1987 = vpop.f32.mrf.mxu0
        %v1988 = vadd.f32 %v1899, %v1987
        %1989 = vmatmul.bf16.gmra.mxu0 %v1398
        %v1990 = vpop.f32.mrf.mxu0
        %v1991 = vadd.f32 %v1902, %v1990
        %v1992 = vpop.f32.mrf.mxu0
        %v1993 = vadd.f32 %v1904, %v1992
        %1994 = vmatmul.bf16.gmra.mxu0 %v1401
        %v1995 = vpop.f32.mrf.mxu0
        %v1996 = vadd.f32 %v1907, %v1995
        %v1997 = vpop.f32.mrf.mxu0
        %v1998 = vadd.f32 %v1909, %v1997
        %1999 = vmatmul.bf16.gmra.mxu0 %v1404
        %v2000 = vpop.f32.mrf.mxu0
        %v2001 = vadd.f32 %v1912, %v2000
        %v2002 = vpop.f32.mrf.mxu0
        %v2003 = vadd.f32 %v1914, %v2002
        %2004 = vmatmul.bf16.gmra.mxu0 %v1407
        %v2005 = vpop.f32.mrf.mxu0
        %v2006 = vadd.f32 %v1917, %v2005
        %v2007 = vpop.f32.mrf.mxu0
        %v2008 = vadd.f32 %v1919, %v2007
        %2009 = vmatmul.bf16.gmra.mxu0 %v1410
        %v2010 = vpop.f32.mrf.mxu0
        %v2011 = vadd.f32 %v1922, %v2010
        %v2012 = vpop.f32.mrf.mxu0
        %v2013 = vadd.f32 %v1924, %v2012
        %2014 = vmatmul.bf16.gmra.mxu0 %v1413
        %v2015 = vpop.f32.mrf.mxu0
        %v2016 = vadd.f32 %v1927, %v2015
        %v2017 = vpop.f32.mrf.mxu0
        %v2018 = vadd.f32 %v1929, %v2017
        %2019 = vmatmul.bf16.gmra.mxu0 %v1416
        %v2020 = vpop.f32.mrf.mxu0
        %v2021 = vadd.f32 %v1932, %v2020
        %v2022 = vpop.f32.mrf.mxu0
        %v2023 = vadd.f32 %v1934, %v2022
        %2024 = vmatmul.bf16.gmra.mxu0 %v1419
        %v2025 = vpop.f32.mrf.mxu0
        %v2026 = vadd.f32 %v1937, %v2025
        %v2027 = vpop.f32.mrf.mxu0
        %v2028 = vadd.f32 %v1939, %v2027
        %2029 = vmatmul.bf16.gmra.mxu0 %v1422
        %v2030 = vpop.f32.mrf.mxu0
        %v2031 = vadd.f32 %v1942, %v2030
        %v2032 = vpop.f32.mrf.mxu0
        %v2033 = vadd.f32 %v1944, %v2032
        %2034 = vmatmul.bf16.gmra.mxu0 %v1425
        %v2035 = vpop.f32.mrf.mxu0
        %v2036 = vadd.f32 %v1947, %v2035
        %v2037 = vpop.f32.mrf.mxu0
        %v2038 = vadd.f32 %v1949, %v2037
        %2039 = vmatmul.bf16.gmra.mxu0 %v1428
        %v2040 = vpop.f32.mrf.mxu0
        %v2041 = vadd.f32 %v1952, %v2040
        %v2042 = vpop.f32.mrf.mxu0
        %v2043 = vadd.f32 %v1954, %v2042
        %2044 = vmatmul.bf16.gmra.mxu0 %v1431
        %v2045 = vpop.f32.mrf.mxu0
        %v2046 = vadd.f32 %v1957, %v2045
        %v2047 = vpop.f32.mrf.mxu0
        %v2048 = vadd.f32 %v1959, %v2047
        %2049 = vmatmul.bf16.gmra.mxu0 %v1434
        %v2050 = vpop.f32.mrf.mxu0
        %v2051 = vadd.f32 %v1962, %v2050
        %v2052 = vpop.f32.mrf.mxu0
        %v2053 = vadd.f32 %v1964, %v2052
        %2054 = vmatmul.bf16.gmra.mxu0 %v1437
        %v2055 = vpop.f32.mrf.mxu0
        %v2056 = vadd.f32 %v1967, %v2055
        %v2057 = vpop.f32.mrf.mxu0
        %v2058 = vadd.f32 %v1969, %v2057
        %2059 = vmatmul.bf16.gmra.mxu0 %v1440
        %v2060 = vpop.f32.mrf.mxu0
        %v2061 = vadd.f32 %v1972, %v2060
        %v2062 = vpop.f32.mrf.mxu0
        %v2063 = vadd.f32 %v1974, %v2062
        %2064 = vdwg.mxu0
        %2065 = vmatpush.bf16.msra.mxu0 %v1212
        %2066 = vmatpush.bf16.msra.mxu0 %v1210
        %2067 = vmatpush.bf16.msra.mxu0 %v1208
        %2068 = vmatpush.bf16.msra.mxu0 %v1206
        %2069 = vmatpush.bf16.msra.mxu0 %v1204
        %2070 = vmatpush.bf16.msra.mxu0 %v1202
        %2071 = vmatpush.bf16.msra.mxu0 %v1200
        %2072 = vmatpush.bf16.msra.mxu0 %v1198
        %2073 = vmatmul.bf16.gmra.mxu0 %v687
        %v2074 = vpop.f32.mrf.mxu0
        %v2075 = vadd.f32 %v900, %v2074
        %v2076 = vpop.f32.mrf.mxu0
        %v2077 = vadd.f32 %v900, %v2076
        %2078 = vmatmul.bf16.gmra.mxu0 %v694
        %v2079 = vpop.f32.mrf.mxu0
        %v2080 = vadd.f32 %v900, %v2079
        %v2081 = vpop.f32.mrf.mxu0
        %v2082 = vadd.f32 %v900, %v2081
        %2083 = vmatmul.bf16.gmra.mxu0 %v701
        %v2084 = vpop.f32.mrf.mxu0
        %v2085 = vadd.f32 %v900, %v2084
        %v2086 = vpop.f32.mrf.mxu0
        %v2087 = vadd.f32 %v900, %v2086
        %2088 = vmatmul.bf16.gmra.mxu0 %v708
        %v2089 = vpop.f32.mrf.mxu0
        %v2090 = vadd.f32 %v900, %v2089
        %v2091 = vpop.f32.mrf.mxu0
        %v2092 = vadd.f32 %v900, %v2091
        %2093 = vmatmul.bf16.gmra.mxu0 %v715
        %v2094 = vpop.f32.mrf.mxu0
        %v2095 = vadd.f32 %v900, %v2094
        %v2096 = vpop.f32.mrf.mxu0
        %v2097 = vadd.f32 %v900, %v2096
        %2098 = vmatmul.bf16.gmra.mxu0 %v722
        %v2099 = vpop.f32.mrf.mxu0
        %v2100 = vadd.f32 %v900, %v2099
        %v2101 = vpop.f32.mrf.mxu0
        %v2102 = vadd.f32 %v900, %v2101
        %2103 = vmatmul.bf16.gmra.mxu0 %v729
        %v2104 = vpop.f32.mrf.mxu0
        %v2105 = vadd.f32 %v900, %v2104
        %v2106 = vpop.f32.mrf.mxu0
        %v2107 = vadd.f32 %v900, %v2106
        %2108 = vmatmul.bf16.gmra.mxu0 %v736
        %v2109 = vpop.f32.mrf.mxu0
        %v2110 = vadd.f32 %v900, %v2109
        %v2111 = vpop.f32.mrf.mxu0
        %v2112 = vadd.f32 %v900, %v2111
        %2113 = vmatmul.bf16.gmra.mxu0 %v743
        %v2114 = vpop.f32.mrf.mxu0
        %v2115 = vadd.f32 %v900, %v2114
        %v2116 = vpop.f32.mrf.mxu0
        %v2117 = vadd.f32 %v900, %v2116
        %2118 = vmatmul.bf16.gmra.mxu0 %v750
        %v2119 = vpop.f32.mrf.mxu0
        %v2120 = vadd.f32 %v900, %v2119
        %v2121 = vpop.f32.mrf.mxu0
        %v2122 = vadd.f32 %v900, %v2121
        %2123 = vmatmul.bf16.gmra.mxu0 %v757
        %v2124 = vpop.f32.mrf.mxu0
        %v2125 = vadd.f32 %v900, %v2124
        %v2126 = vpop.f32.mrf.mxu0
        %v2127 = vadd.f32 %v900, %v2126
        %2128 = vmatmul.bf16.gmra.mxu0 %v764
        %v2129 = vpop.f32.mrf.mxu0
        %v2130 = vadd.f32 %v900, %v2129
        %v2131 = vpop.f32.mrf.mxu0
        %v2132 = vadd.f32 %v900, %v2131
        %2133 = vmatmul.bf16.gmra.mxu0 %v771
        %v2134 = vpop.f32.mrf.mxu0
        %v2135 = vadd.f32 %v900, %v2134
        %v2136 = vpop.f32.mrf.mxu0
        %v2137 = vadd.f32 %v900, %v2136
        %2138 = vmatmul.bf16.gmra.mxu0 %v778
        %v2139 = vpop.f32.mrf.mxu0
        %v2140 = vadd.f32 %v900, %v2139
        %v2141 = vpop.f32.mrf.mxu0
        %v2142 = vadd.f32 %v900, %v2141
        %2143 = vmatmul.bf16.gmra.mxu0 %v785
        %v2144 = vpop.f32.mrf.mxu0
        %v2145 = vadd.f32 %v900, %v2144
        %v2146 = vpop.f32.mrf.mxu0
        %v2147 = vadd.f32 %v900, %v2146
        %2148 = vmatmul.bf16.gmra.mxu0 %v792
        %v2149 = vpop.f32.mrf.mxu0
        %v2150 = vadd.f32 %v900, %v2149
        %v2151 = vpop.f32.mrf.mxu0
        %v2152 = vadd.f32 %v900, %v2151
        %2153 = vdwg.mxu0
        %2154 = vmatpush.bf16.msra.mxu0 %v1228
        %2155 = vmatpush.bf16.msra.mxu0 %v1226
        %2156 = vmatpush.bf16.msra.mxu0 %v1224
        %2157 = vmatpush.bf16.msra.mxu0 %v1222
        %2158 = vmatpush.bf16.msra.mxu0 %v1220
        %2159 = vmatpush.bf16.msra.mxu0 %v1218
        %2160 = vmatpush.bf16.msra.mxu0 %v1216
        %2161 = vmatpush.bf16.msra.mxu0 %v1214
        %2162 = vmatmul.bf16.gmra.mxu0 %v688
        %v2163 = vpop.f32.mrf.mxu0
        %v2164 = vadd.f32 %v2075, %v2163
        %v2165 = vpop.f32.mrf.mxu0
        %v2166 = vadd.f32 %v2077, %v2165
        %2167 = vmatmul.bf16.gmra.mxu0 %v695
        %v2168 = vpop.f32.mrf.mxu0
        %v2169 = vadd.f32 %v2080, %v2168
        %v2170 = vpop.f32.mrf.mxu0
        %v2171 = vadd.f32 %v2082, %v2170
        %2172 = vmatmul.bf16.gmra.mxu0 %v702
        %v2173 = vpop.f32.mrf.mxu0
        %v2174 = vadd.f32 %v2085, %v2173
        %v2175 = vpop.f32.mrf.mxu0
        %v2176 = vadd.f32 %v2087, %v2175
        %2177 = vmatmul.bf16.gmra.mxu0 %v709
        %v2178 = vpop.f32.mrf.mxu0
        %v2179 = vadd.f32 %v2090, %v2178
        %v2180 = vpop.f32.mrf.mxu0
        %v2181 = vadd.f32 %v2092, %v2180
        %2182 = vmatmul.bf16.gmra.mxu0 %v716
        %v2183 = vpop.f32.mrf.mxu0
        %v2184 = vadd.f32 %v2095, %v2183
        %v2185 = vpop.f32.mrf.mxu0
        %v2186 = vadd.f32 %v2097, %v2185
        %2187 = vmatmul.bf16.gmra.mxu0 %v723
        %v2188 = vpop.f32.mrf.mxu0
        %v2189 = vadd.f32 %v2100, %v2188
        %v2190 = vpop.f32.mrf.mxu0
        %v2191 = vadd.f32 %v2102, %v2190
        %2192 = vmatmul.bf16.gmra.mxu0 %v730
        %v2193 = vpop.f32.mrf.mxu0
        %v2194 = vadd.f32 %v2105, %v2193
        %v2195 = vpop.f32.mrf.mxu0
        %v2196 = vadd.f32 %v2107, %v2195
        %2197 = vmatmul.bf16.gmra.mxu0 %v737
        %v2198 = vpop.f32.mrf.mxu0
        %v2199 = vadd.f32 %v2110, %v2198
        %v2200 = vpop.f32.mrf.mxu0
        %v2201 = vadd.f32 %v2112, %v2200
        %2202 = vmatmul.bf16.gmra.mxu0 %v744
        %v2203 = vpop.f32.mrf.mxu0
        %v2204 = vadd.f32 %v2115, %v2203
        %v2205 = vpop.f32.mrf.mxu0
        %v2206 = vadd.f32 %v2117, %v2205
        %2207 = vmatmul.bf16.gmra.mxu0 %v751
        %v2208 = vpop.f32.mrf.mxu0
        %v2209 = vadd.f32 %v2120, %v2208
        %v2210 = vpop.f32.mrf.mxu0
        %v2211 = vadd.f32 %v2122, %v2210
        %2212 = vmatmul.bf16.gmra.mxu0 %v758
        %v2213 = vpop.f32.mrf.mxu0
        %v2214 = vadd.f32 %v2125, %v2213
        %v2215 = vpop.f32.mrf.mxu0
        %v2216 = vadd.f32 %v2127, %v2215
        %2217 = vmatmul.bf16.gmra.mxu0 %v765
        %v2218 = vpop.f32.mrf.mxu0
        %v2219 = vadd.f32 %v2130, %v2218
        %v2220 = vpop.f32.mrf.mxu0
        %v2221 = vadd.f32 %v2132, %v2220
        %2222 = vmatmul.bf16.gmra.mxu0 %v772
        %v2223 = vpop.f32.mrf.mxu0
        %v2224 = vadd.f32 %v2135, %v2223
        %v2225 = vpop.f32.mrf.mxu0
        %v2226 = vadd.f32 %v2137, %v2225
        %2227 = vmatmul.bf16.gmra.mxu0 %v779
        %v2228 = vpop.f32.mrf.mxu0
        %v2229 = vadd.f32 %v2140, %v2228
        %v2230 = vpop.f32.mrf.mxu0
        %v2231 = vadd.f32 %v2142, %v2230
        %2232 = vmatmul.bf16.gmra.mxu0 %v786
        %v2233 = vpop.f32.mrf.mxu0
        %v2234 = vadd.f32 %v2145, %v2233
        %v2235 = vpop.f32.mrf.mxu0
        %v2236 = vadd.f32 %v2147, %v2235
        %2237 = vmatmul.bf16.gmra.mxu0 %v793
        %v2238 = vpop.f32.mrf.mxu0
        %v2239 = vadd.f32 %v2150, %v2238
        %v2240 = vpop.f32.mrf.mxu0
        %v2241 = vadd.f32 %v2152, %v2240
        %2242 = vdwg.mxu0
        %2243 = vmatpush.bf16.msra.mxu0 %v1244
        %2244 = vmatpush.bf16.msra.mxu0 %v1242
        %2245 = vmatpush.bf16.msra.mxu0 %v1240
        %2246 = vmatpush.bf16.msra.mxu0 %v1238
        %2247 = vmatpush.bf16.msra.mxu0 %v1236
        %2248 = vmatpush.bf16.msra.mxu0 %v1234
        %2249 = vmatpush.bf16.msra.mxu0 %v1232
        %2250 = vmatpush.bf16.msra.mxu0 %v1230
        %2251 = vmatmul.bf16.gmra.mxu0 %v689
        %v2252 = vpop.f32.mrf.mxu0
        %v2253 = vadd.f32 %v2164, %v2252
        %v2254 = vpop.f32.mrf.mxu0
        %v2255 = vadd.f32 %v2166, %v2254
        %2256 = vmatmul.bf16.gmra.mxu0 %v696
        %v2257 = vpop.f32.mrf.mxu0
        %v2258 = vadd.f32 %v2169, %v2257
        %v2259 = vpop.f32.mrf.mxu0
        %v2260 = vadd.f32 %v2171, %v2259
        %2261 = vmatmul.bf16.gmra.mxu0 %v703
        %v2262 = vpop.f32.mrf.mxu0
        %v2263 = vadd.f32 %v2174, %v2262
        %v2264 = vpop.f32.mrf.mxu0
        %v2265 = vadd.f32 %v2176, %v2264
        %2266 = vmatmul.bf16.gmra.mxu0 %v710
        %v2267 = vpop.f32.mrf.mxu0
        %v2268 = vadd.f32 %v2179, %v2267
        %v2269 = vpop.f32.mrf.mxu0
        %v2270 = vadd.f32 %v2181, %v2269
        %2271 = vmatmul.bf16.gmra.mxu0 %v717
        %v2272 = vpop.f32.mrf.mxu0
        %v2273 = vadd.f32 %v2184, %v2272
        %v2274 = vpop.f32.mrf.mxu0
        %v2275 = vadd.f32 %v2186, %v2274
        %2276 = vmatmul.bf16.gmra.mxu0 %v724
        %v2277 = vpop.f32.mrf.mxu0
        %v2278 = vadd.f32 %v2189, %v2277
        %v2279 = vpop.f32.mrf.mxu0
        %v2280 = vadd.f32 %v2191, %v2279
        %2281 = vmatmul.bf16.gmra.mxu0 %v731
        %v2282 = vpop.f32.mrf.mxu0
        %v2283 = vadd.f32 %v2194, %v2282
        %v2284 = vpop.f32.mrf.mxu0
        %v2285 = vadd.f32 %v2196, %v2284
        %2286 = vmatmul.bf16.gmra.mxu0 %v738
        %v2287 = vpop.f32.mrf.mxu0
        %v2288 = vadd.f32 %v2199, %v2287
        %v2289 = vpop.f32.mrf.mxu0
        %v2290 = vadd.f32 %v2201, %v2289
        %2291 = vmatmul.bf16.gmra.mxu0 %v745
        %v2292 = vpop.f32.mrf.mxu0
        %v2293 = vadd.f32 %v2204, %v2292
        %v2294 = vpop.f32.mrf.mxu0
        %v2295 = vadd.f32 %v2206, %v2294
        %2296 = vmatmul.bf16.gmra.mxu0 %v752
        %v2297 = vpop.f32.mrf.mxu0
        %v2298 = vadd.f32 %v2209, %v2297
        %v2299 = vpop.f32.mrf.mxu0
        %v2300 = vadd.f32 %v2211, %v2299
        %2301 = vmatmul.bf16.gmra.mxu0 %v759
        %v2302 = vpop.f32.mrf.mxu0
        %v2303 = vadd.f32 %v2214, %v2302
        %v2304 = vpop.f32.mrf.mxu0
        %v2305 = vadd.f32 %v2216, %v2304
        %2306 = vmatmul.bf16.gmra.mxu0 %v766
        %v2307 = vpop.f32.mrf.mxu0
        %v2308 = vadd.f32 %v2219, %v2307
        %v2309 = vpop.f32.mrf.mxu0
        %v2310 = vadd.f32 %v2221, %v2309
        %2311 = vmatmul.bf16.gmra.mxu0 %v773
        %v2312 = vpop.f32.mrf.mxu0
        %v2313 = vadd.f32 %v2224, %v2312
        %v2314 = vpop.f32.mrf.mxu0
        %v2315 = vadd.f32 %v2226, %v2314
        %2316 = vmatmul.bf16.gmra.mxu0 %v780
        %v2317 = vpop.f32.mrf.mxu0
        %v2318 = vadd.f32 %v2229, %v2317
        %v2319 = vpop.f32.mrf.mxu0
        %v2320 = vadd.f32 %v2231, %v2319
        %2321 = vmatmul.bf16.gmra.mxu0 %v787
        %v2322 = vpop.f32.mrf.mxu0
        %v2323 = vadd.f32 %v2234, %v2322
        %v2324 = vpop.f32.mrf.mxu0
        %v2325 = vadd.f32 %v2236, %v2324
        %2326 = vmatmul.bf16.gmra.mxu0 %v794
        %v2327 = vpop.f32.mrf.mxu0
        %v2328 = vadd.f32 %v2239, %v2327
        %v2329 = vpop.f32.mrf.mxu0
        %v2330 = vadd.f32 %v2241, %v2329
        %2331 = vdwg.mxu0
        %2332 = vmatpush.bf16.msra.mxu0 %v1260
        %2333 = vmatpush.bf16.msra.mxu0 %v1258
        %2334 = vmatpush.bf16.msra.mxu0 %v1256
        %2335 = vmatpush.bf16.msra.mxu0 %v1254
        %2336 = vmatpush.bf16.msra.mxu0 %v1252
        %2337 = vmatpush.bf16.msra.mxu0 %v1250
        %2338 = vmatpush.bf16.msra.mxu0 %v1248
        %2339 = vmatpush.bf16.msra.mxu0 %v1246
        %2340 = vmatmul.bf16.gmra.mxu0 %v690
        %v2341 = vpop.f32.mrf.mxu0
        %v2342 = vadd.f32 %v2253, %v2341
        %v2343 = vpop.f32.mrf.mxu0
        %v2344 = vadd.f32 %v2255, %v2343
        %2345 = vmatmul.bf16.gmra.mxu0 %v697
        %v2346 = vpop.f32.mrf.mxu0
        %v2347 = vadd.f32 %v2258, %v2346
        %v2348 = vpop.f32.mrf.mxu0
        %v2349 = vadd.f32 %v2260, %v2348
        %2350 = vmatmul.bf16.gmra.mxu0 %v704
        %v2351 = vpop.f32.mrf.mxu0
        %v2352 = vadd.f32 %v2263, %v2351
        %v2353 = vpop.f32.mrf.mxu0
        %v2354 = vadd.f32 %v2265, %v2353
        %2355 = vmatmul.bf16.gmra.mxu0 %v711
        %v2356 = vpop.f32.mrf.mxu0
        %v2357 = vadd.f32 %v2268, %v2356
        %v2358 = vpop.f32.mrf.mxu0
        %v2359 = vadd.f32 %v2270, %v2358
        %2360 = vmatmul.bf16.gmra.mxu0 %v718
        %v2361 = vpop.f32.mrf.mxu0
        %v2362 = vadd.f32 %v2273, %v2361
        %v2363 = vpop.f32.mrf.mxu0
        %v2364 = vadd.f32 %v2275, %v2363
        %2365 = vmatmul.bf16.gmra.mxu0 %v725
        %v2366 = vpop.f32.mrf.mxu0
        %v2367 = vadd.f32 %v2278, %v2366
        %v2368 = vpop.f32.mrf.mxu0
        %v2369 = vadd.f32 %v2280, %v2368
        %2370 = vmatmul.bf16.gmra.mxu0 %v732
        %v2371 = vpop.f32.mrf.mxu0
        %v2372 = vadd.f32 %v2283, %v2371
        %v2373 = vpop.f32.mrf.mxu0
        %v2374 = vadd.f32 %v2285, %v2373
        %2375 = vmatmul.bf16.gmra.mxu0 %v739
        %v2376 = vpop.f32.mrf.mxu0
        %v2377 = vadd.f32 %v2288, %v2376
        %v2378 = vpop.f32.mrf.mxu0
        %v2379 = vadd.f32 %v2290, %v2378
        %2380 = vmatmul.bf16.gmra.mxu0 %v746
        %v2381 = vpop.f32.mrf.mxu0
        %v2382 = vadd.f32 %v2293, %v2381
        %v2383 = vpop.f32.mrf.mxu0
        %v2384 = vadd.f32 %v2295, %v2383
        %2385 = vmatmul.bf16.gmra.mxu0 %v753
        %v2386 = vpop.f32.mrf.mxu0
        %v2387 = vadd.f32 %v2298, %v2386
        %v2388 = vpop.f32.mrf.mxu0
        %v2389 = vadd.f32 %v2300, %v2388
        %2390 = vmatmul.bf16.gmra.mxu0 %v760
        %v2391 = vpop.f32.mrf.mxu0
        %v2392 = vadd.f32 %v2303, %v2391
        %v2393 = vpop.f32.mrf.mxu0
        %v2394 = vadd.f32 %v2305, %v2393
        %2395 = vmatmul.bf16.gmra.mxu0 %v767
        %v2396 = vpop.f32.mrf.mxu0
        %v2397 = vadd.f32 %v2308, %v2396
        %v2398 = vpop.f32.mrf.mxu0
        %v2399 = vadd.f32 %v2310, %v2398
        %2400 = vmatmul.bf16.gmra.mxu0 %v774
        %v2401 = vpop.f32.mrf.mxu0
        %v2402 = vadd.f32 %v2313, %v2401
        %v2403 = vpop.f32.mrf.mxu0
        %v2404 = vadd.f32 %v2315, %v2403
        %2405 = vmatmul.bf16.gmra.mxu0 %v781
        %v2406 = vpop.f32.mrf.mxu0
        %v2407 = vadd.f32 %v2318, %v2406
        %v2408 = vpop.f32.mrf.mxu0
        %v2409 = vadd.f32 %v2320, %v2408
        %2410 = vmatmul.bf16.gmra.mxu0 %v788
        %v2411 = vpop.f32.mrf.mxu0
        %v2412 = vadd.f32 %v2323, %v2411
        %v2413 = vpop.f32.mrf.mxu0
        %v2414 = vadd.f32 %v2325, %v2413
        %2415 = vmatmul.bf16.gmra.mxu0 %v795
        %v2416 = vpop.f32.mrf.mxu0
        %v2417 = vadd.f32 %v2328, %v2416
        %v2418 = vpop.f32.mrf.mxu0
        %v2419 = vadd.f32 %v2330, %v2418
        %2420 = vdwg.mxu0
        %2421 = vmatpush.bf16.msra.mxu0 %v1276
        %2422 = vmatpush.bf16.msra.mxu0 %v1274
        %2423 = vmatpush.bf16.msra.mxu0 %v1272
        %2424 = vmatpush.bf16.msra.mxu0 %v1270
        %2425 = vmatpush.bf16.msra.mxu0 %v1268
        %2426 = vmatpush.bf16.msra.mxu0 %v1266
        %2427 = vmatpush.bf16.msra.mxu0 %v1264
        %2428 = vmatpush.bf16.msra.mxu0 %v1262
        %2429 = vmatmul.bf16.gmra.mxu0 %v691
        %v2430 = vpop.f32.mrf.mxu0
        %v2431 = vadd.f32 %v2342, %v2430
        %v2432 = vpop.f32.mrf.mxu0
        %v2433 = vadd.f32 %v2344, %v2432
        %2434 = vmatmul.bf16.gmra.mxu0 %v698
        %v2435 = vpop.f32.mrf.mxu0
        %v2436 = vadd.f32 %v2347, %v2435
        %v2437 = vpop.f32.mrf.mxu0
        %v2438 = vadd.f32 %v2349, %v2437
        %2439 = vmatmul.bf16.gmra.mxu0 %v705
        %v2440 = vpop.f32.mrf.mxu0
        %v2441 = vadd.f32 %v2352, %v2440
        %v2442 = vpop.f32.mrf.mxu0
        %v2443 = vadd.f32 %v2354, %v2442
        %2444 = vmatmul.bf16.gmra.mxu0 %v712
        %v2445 = vpop.f32.mrf.mxu0
        %v2446 = vadd.f32 %v2357, %v2445
        %v2447 = vpop.f32.mrf.mxu0
        %v2448 = vadd.f32 %v2359, %v2447
        %2449 = vmatmul.bf16.gmra.mxu0 %v719
        %v2450 = vpop.f32.mrf.mxu0
        %v2451 = vadd.f32 %v2362, %v2450
        %v2452 = vpop.f32.mrf.mxu0
        %v2453 = vadd.f32 %v2364, %v2452
        %2454 = vmatmul.bf16.gmra.mxu0 %v726
        %v2455 = vpop.f32.mrf.mxu0
        %v2456 = vadd.f32 %v2367, %v2455
        %v2457 = vpop.f32.mrf.mxu0
        %v2458 = vadd.f32 %v2369, %v2457
        %2459 = vmatmul.bf16.gmra.mxu0 %v733
        %v2460 = vpop.f32.mrf.mxu0
        %v2461 = vadd.f32 %v2372, %v2460
        %v2462 = vpop.f32.mrf.mxu0
        %v2463 = vadd.f32 %v2374, %v2462
        %2464 = vmatmul.bf16.gmra.mxu0 %v740
        %v2465 = vpop.f32.mrf.mxu0
        %v2466 = vadd.f32 %v2377, %v2465
        %v2467 = vpop.f32.mrf.mxu0
        %v2468 = vadd.f32 %v2379, %v2467
        %2469 = vmatmul.bf16.gmra.mxu0 %v747
        %v2470 = vpop.f32.mrf.mxu0
        %v2471 = vadd.f32 %v2382, %v2470
        %v2472 = vpop.f32.mrf.mxu0
        %v2473 = vadd.f32 %v2384, %v2472
        %2474 = vmatmul.bf16.gmra.mxu0 %v754
        %v2475 = vpop.f32.mrf.mxu0
        %v2476 = vadd.f32 %v2387, %v2475
        %v2477 = vpop.f32.mrf.mxu0
        %v2478 = vadd.f32 %v2389, %v2477
        %2479 = vmatmul.bf16.gmra.mxu0 %v761
        %v2480 = vpop.f32.mrf.mxu0
        %v2481 = vadd.f32 %v2392, %v2480
        %v2482 = vpop.f32.mrf.mxu0
        %v2483 = vadd.f32 %v2394, %v2482
        %2484 = vmatmul.bf16.gmra.mxu0 %v768
        %v2485 = vpop.f32.mrf.mxu0
        %v2486 = vadd.f32 %v2397, %v2485
        %v2487 = vpop.f32.mrf.mxu0
        %v2488 = vadd.f32 %v2399, %v2487
        %2489 = vmatmul.bf16.gmra.mxu0 %v775
        %v2490 = vpop.f32.mrf.mxu0
        %v2491 = vadd.f32 %v2402, %v2490
        %v2492 = vpop.f32.mrf.mxu0
        %v2493 = vadd.f32 %v2404, %v2492
        %2494 = vmatmul.bf16.gmra.mxu0 %v782
        %v2495 = vpop.f32.mrf.mxu0
        %v2496 = vadd.f32 %v2407, %v2495
        %v2497 = vpop.f32.mrf.mxu0
        %v2498 = vadd.f32 %v2409, %v2497
        %2499 = vmatmul.bf16.gmra.mxu0 %v789
        %v2500 = vpop.f32.mrf.mxu0
        %v2501 = vadd.f32 %v2412, %v2500
        %v2502 = vpop.f32.mrf.mxu0
        %v2503 = vadd.f32 %v2414, %v2502
        %2504 = vmatmul.bf16.gmra.mxu0 %v796
        %v2505 = vpop.f32.mrf.mxu0
        %v2506 = vadd.f32 %v2417, %v2505
        %v2507 = vpop.f32.mrf.mxu0
        %v2508 = vadd.f32 %v2419, %v2507
        %2509 = vdwg.mxu0
        %2510 = vmatpush.bf16.msra.mxu0 %v1292
        %2511 = vmatpush.bf16.msra.mxu0 %v1290
        %2512 = vmatpush.bf16.msra.mxu0 %v1288
        %2513 = vmatpush.bf16.msra.mxu0 %v1286
        %2514 = vmatpush.bf16.msra.mxu0 %v1284
        %2515 = vmatpush.bf16.msra.mxu0 %v1282
        %2516 = vmatpush.bf16.msra.mxu0 %v1280
        %2517 = vmatpush.bf16.msra.mxu0 %v1278
        %2518 = vmatmul.bf16.gmra.mxu0 %v692
        %v2519 = vpop.f32.mrf.mxu0
        %v2520 = vadd.f32 %v2431, %v2519
        %v2521 = vpop.f32.mrf.mxu0
        %v2522 = vadd.f32 %v2433, %v2521
        %2523 = vmatmul.bf16.gmra.mxu0 %v699
        %v2524 = vpop.f32.mrf.mxu0
        %v2525 = vadd.f32 %v2436, %v2524
        %v2526 = vpop.f32.mrf.mxu0
        %v2527 = vadd.f32 %v2438, %v2526
        %2528 = vmatmul.bf16.gmra.mxu0 %v706
        %v2529 = vpop.f32.mrf.mxu0
        %v2530 = vadd.f32 %v2441, %v2529
        %v2531 = vpop.f32.mrf.mxu0
        %v2532 = vadd.f32 %v2443, %v2531
        %2533 = vmatmul.bf16.gmra.mxu0 %v713
        %v2534 = vpop.f32.mrf.mxu0
        %v2535 = vadd.f32 %v2446, %v2534
        %v2536 = vpop.f32.mrf.mxu0
        %v2537 = vadd.f32 %v2448, %v2536
        %2538 = vmatmul.bf16.gmra.mxu0 %v720
        %v2539 = vpop.f32.mrf.mxu0
        %v2540 = vadd.f32 %v2451, %v2539
        %v2541 = vpop.f32.mrf.mxu0
        %v2542 = vadd.f32 %v2453, %v2541
        %2543 = vmatmul.bf16.gmra.mxu0 %v727
        %v2544 = vpop.f32.mrf.mxu0
        %v2545 = vadd.f32 %v2456, %v2544
        %v2546 = vpop.f32.mrf.mxu0
        %v2547 = vadd.f32 %v2458, %v2546
        %2548 = vmatmul.bf16.gmra.mxu0 %v734
        %v2549 = vpop.f32.mrf.mxu0
        %v2550 = vadd.f32 %v2461, %v2549
        %v2551 = vpop.f32.mrf.mxu0
        %v2552 = vadd.f32 %v2463, %v2551
        %2553 = vmatmul.bf16.gmra.mxu0 %v741
        %v2554 = vpop.f32.mrf.mxu0
        %v2555 = vadd.f32 %v2466, %v2554
        %v2556 = vpop.f32.mrf.mxu0
        %v2557 = vadd.f32 %v2468, %v2556
        %2558 = vmatmul.bf16.gmra.mxu0 %v748
        %v2559 = vpop.f32.mrf.mxu0
        %v2560 = vadd.f32 %v2471, %v2559
        %v2561 = vpop.f32.mrf.mxu0
        %v2562 = vadd.f32 %v2473, %v2561
        %2563 = vmatmul.bf16.gmra.mxu0 %v755
        %v2564 = vpop.f32.mrf.mxu0
        %v2565 = vadd.f32 %v2476, %v2564
        %v2566 = vpop.f32.mrf.mxu0
        %v2567 = vadd.f32 %v2478, %v2566
        %2568 = vmatmul.bf16.gmra.mxu0 %v762
        %v2569 = vpop.f32.mrf.mxu0
        %v2570 = vadd.f32 %v2481, %v2569
        %v2571 = vpop.f32.mrf.mxu0
        %v2572 = vadd.f32 %v2483, %v2571
        %2573 = vmatmul.bf16.gmra.mxu0 %v769
        %v2574 = vpop.f32.mrf.mxu0
        %v2575 = vadd.f32 %v2486, %v2574
        %v2576 = vpop.f32.mrf.mxu0
        %v2577 = vadd.f32 %v2488, %v2576
        %2578 = vmatmul.bf16.gmra.mxu0 %v776
        %v2579 = vpop.f32.mrf.mxu0
        %v2580 = vadd.f32 %v2491, %v2579
        %v2581 = vpop.f32.mrf.mxu0
        %v2582 = vadd.f32 %v2493, %v2581
        %2583 = vmatmul.bf16.gmra.mxu0 %v783
        %v2584 = vpop.f32.mrf.mxu0
        %v2585 = vadd.f32 %v2496, %v2584
        %v2586 = vpop.f32.mrf.mxu0
        %v2587 = vadd.f32 %v2498, %v2586
        %2588 = vmatmul.bf16.gmra.mxu0 %v790
        %v2589 = vpop.f32.mrf.mxu0
        %v2590 = vadd.f32 %v2501, %v2589
        %v2591 = vpop.f32.mrf.mxu0
        %v2592 = vadd.f32 %v2503, %v2591
        %2593 = vmatmul.bf16.gmra.mxu0 %v797
        %v2594 = vpop.f32.mrf.mxu0
        %v2595 = vadd.f32 %v2506, %v2594
        %v2596 = vpop.f32.mrf.mxu0
        %v2597 = vadd.f32 %v2508, %v2596
        %2598 = vdwg.mxu0
        %2599 = vmatpush.bf16.msra.mxu0 0
        %2600 = vmatpush.bf16.msra.mxu0 0
        %2601 = vmatpush.bf16.msra.mxu0 0
        %2602 = vmatpush.bf16.msra.mxu0 0
        %2603 = vmatpush.bf16.msra.mxu0 0
        %2604 = vmatpush.bf16.msra.mxu0 0
        %2605 = vmatpush.bf16.msra.mxu0 0
        %2606 = vmatpush.bf16.msra.mxu0 %v1294
        %2607 = vmatmul.bf16.gmra.mxu0 %v1395
        %v2608 = vpop.f32.mrf.mxu0
        %v2609 = vadd.f32 %v2520, %v2608
        %v2610 = vpop.f32.mrf.mxu0
        %v2611 = vadd.f32 %v2522, %v2610
        %2612 = vmatmul.bf16.gmra.mxu0 %v1398
        %v2613 = vpop.f32.mrf.mxu0
        %v2614 = vadd.f32 %v2525, %v2613
        %v2615 = vpop.f32.mrf.mxu0
        %v2616 = vadd.f32 %v2527, %v2615
        %2617 = vmatmul.bf16.gmra.mxu0 %v1401
        %v2618 = vpop.f32.mrf.mxu0
        %v2619 = vadd.f32 %v2530, %v2618
        %v2620 = vpop.f32.mrf.mxu0
        %v2621 = vadd.f32 %v2532, %v2620
        %2622 = vmatmul.bf16.gmra.mxu0 %v1404
        %v2623 = vpop.f32.mrf.mxu0
        %v2624 = vadd.f32 %v2535, %v2623
        %v2625 = vpop.f32.mrf.mxu0
        %v2626 = vadd.f32 %v2537, %v2625
        %2627 = vmatmul.bf16.gmra.mxu0 %v1407
        %v2628 = vpop.f32.mrf.mxu0
        %v2629 = vadd.f32 %v2540, %v2628
        %v2630 = vpop.f32.mrf.mxu0
        %v2631 = vadd.f32 %v2542, %v2630
        %2632 = vmatmul.bf16.gmra.mxu0 %v1410
        %v2633 = vpop.f32.mrf.mxu0
        %v2634 = vadd.f32 %v2545, %v2633
        %v2635 = vpop.f32.mrf.mxu0
        %v2636 = vadd.f32 %v2547, %v2635
        %2637 = vmatmul.bf16.gmra.mxu0 %v1413
        %v2638 = vpop.f32.mrf.mxu0
        %v2639 = vadd.f32 %v2550, %v2638
        %v2640 = vpop.f32.mrf.mxu0
        %v2641 = vadd.f32 %v2552, %v2640
        %2642 = vmatmul.bf16.gmra.mxu0 %v1416
        %v2643 = vpop.f32.mrf.mxu0
        %v2644 = vadd.f32 %v2555, %v2643
        %v2645 = vpop.f32.mrf.mxu0
        %v2646 = vadd.f32 %v2557, %v2645
        %2647 = vmatmul.bf16.gmra.mxu0 %v1419
        %v2648 = vpop.f32.mrf.mxu0
        %v2649 = vadd.f32 %v2560, %v2648
        %v2650 = vpop.f32.mrf.mxu0
        %v2651 = vadd.f32 %v2562, %v2650
        %2652 = vmatmul.bf16.gmra.mxu0 %v1422
        %v2653 = vpop.f32.mrf.mxu0
        %v2654 = vadd.f32 %v2565, %v2653
        %v2655 = vpop.f32.mrf.mxu0
        %v2656 = vadd.f32 %v2567, %v2655
        %2657 = vmatmul.bf16.gmra.mxu0 %v1425
        %v2658 = vpop.f32.mrf.mxu0
        %v2659 = vadd.f32 %v2570, %v2658
        %v2660 = vpop.f32.mrf.mxu0
        %v2661 = vadd.f32 %v2572, %v2660
        %2662 = vmatmul.bf16.gmra.mxu0 %v1428
        %v2663 = vpop.f32.mrf.mxu0
        %v2664 = vadd.f32 %v2575, %v2663
        %v2665 = vpop.f32.mrf.mxu0
        %v2666 = vadd.f32 %v2577, %v2665
        %2667 = vmatmul.bf16.gmra.mxu0 %v1431
        %v2668 = vpop.f32.mrf.mxu0
        %v2669 = vadd.f32 %v2580, %v2668
        %v2670 = vpop.f32.mrf.mxu0
        %v2671 = vadd.f32 %v2582, %v2670
        %2672 = vmatmul.bf16.gmra.mxu0 %v1434
        %v2673 = vpop.f32.mrf.mxu0
        %v2674 = vadd.f32 %v2585, %v2673
        %v2675 = vpop.f32.mrf.mxu0
        %v2676 = vadd.f32 %v2587, %v2675
        %2677 = vmatmul.bf16.gmra.mxu0 %v1437
        %v2678 = vpop.f32.mrf.mxu0
        %v2679 = vadd.f32 %v2590, %v2678
        %v2680 = vpop.f32.mrf.mxu0
        %v2681 = vadd.f32 %v2592, %v2680
        %2682 = vmatmul.bf16.gmra.mxu0 %v1440
        %v2683 = vpop.f32.mrf.mxu0
        %v2684 = vadd.f32 %v2595, %v2683
        %v2685 = vpop.f32.mrf.mxu0
        %v2686 = vadd.f32 %v2597, %v2685
        %2687 = vdwg.mxu0
        %vm2688 = vcmp.gt.f32.partialorder %v1986, 0.0
        %vm2689 = vcmp.gt.f32.partialorder %v2609, 0.0
        %vm2690 = vcmp.gt.f32.partialorder %v1988, 0.0
        %vm2691 = vcmp.gt.f32.partialorder %v2611, 0.0
        %vm2692 = vcmp.gt.f32.partialorder %v1991, 0.0
        %vm2693 = vcmp.gt.f32.partialorder %v2614, 0.0
        %vm2694 = vcmp.gt.f32.partialorder %v1993, 0.0
        %vm2695 = vcmp.gt.f32.partialorder %v2616, 0.0
        %vm2696 = vcmp.gt.f32.partialorder %v1996, 0.0
        %vm2697 = vcmp.gt.f32.partialorder %v2619, 0.0
        %vm2698 = vcmp.gt.f32.partialorder %v1998, 0.0
        %vm2699 = vcmp.gt.f32.partialorder %v2621, 0.0
        %vm2700 = vcmp.gt.f32.partialorder %v2001, 0.0
        %vm2701 = vcmp.gt.f32.partialorder %v2624, 0.0
        %vm2702 = vcmp.gt.f32.partialorder %v2003, 0.0
        %vm2703 = vcmp.gt.f32.partialorder %v2626, 0.0
        %vm2704 = vcmp.gt.f32.partialorder %v2006, 0.0
        %vm2705 = vcmp.gt.f32.partialorder %v2629, 0.0
        %vm2706 = vcmp.gt.f32.partialorder %v2008, 0.0
        %vm2707 = vcmp.gt.f32.partialorder %v2631, 0.0
        %vm2708 = vcmp.gt.f32.partialorder %v2011, 0.0
        %vm2709 = vcmp.gt.f32.partialorder %v2634, 0.0
        %vm2710 = vcmp.gt.f32.partialorder %v2013, 0.0
        %vm2711 = vcmp.gt.f32.partialorder %v2636, 0.0
        %vm2712 = vcmp.gt.f32.partialorder %v2016, 0.0
        %vm2713 = vcmp.gt.f32.partialorder %v2639, 0.0
        %vm2714 = vcmp.gt.f32.partialorder %v2018, 0.0
        %vm2715 = vcmp.gt.f32.partialorder %v2641, 0.0
        %vm2716 = vcmp.gt.f32.partialorder %v2021, 0.0
        %vm2717 = vcmp.gt.f32.partialorder %v2644, 0.0
        %vm2718 = vcmp.gt.f32.partialorder %v2023, 0.0
        %vm2719 = vcmp.gt.f32.partialorder %v2646, 0.0
        %vm2720 = vcmp.gt.f32.partialorder %v2026, 0.0
        %vm2721 = vcmp.gt.f32.partialorder %v2649, 0.0
        %vm2722 = vcmp.gt.f32.partialorder %v2028, 0.0
        %vm2723 = vcmp.gt.f32.partialorder %v2651, 0.0
        %vm2724 = vcmp.gt.f32.partialorder %v2031, 0.0
        %vm2725 = vcmp.gt.f32.partialorder %v2654, 0.0
        %vm2726 = vcmp.gt.f32.partialorder %v2033, 0.0
        %vm2727 = vcmp.gt.f32.partialorder %v2656, 0.0
        %vm2728 = vcmp.gt.f32.partialorder %v2036, 0.0
        %vm2729 = vcmp.gt.f32.partialorder %v2659, 0.0
        %vm2730 = vcmp.gt.f32.partialorder %v2038, 0.0
        %vm2731 = vcmp.gt.f32.partialorder %v2661, 0.0
        %vm2732 = vcmp.gt.f32.partialorder %v2041, 0.0
        %vm2733 = vcmp.gt.f32.partialorder %v2664, 0.0
        %vm2734 = vcmp.gt.f32.partialorder %v2043, 0.0
        %vm2735 = vcmp.gt.f32.partialorder %v2666, 0.0
        %vm2736 = vcmp.gt.f32.partialorder %v2046, 0.0
        %vm2737 = vcmp.gt.f32.partialorder %v2669, 0.0
        %vm2738 = vcmp.gt.f32.partialorder %v2048, 0.0
        %vm2739 = vcmp.gt.f32.partialorder %v2671, 0.0
        %vm2740 = vcmp.gt.f32.partialorder %v2051, 0.0
        %vm2741 = vcmp.gt.f32.partialorder %v2674, 0.0
        %vm2742 = vcmp.gt.f32.partialorder %v2053, 0.0
        %vm2743 = vcmp.gt.f32.partialorder %v2676, 0.0
        %vm2744 = vcmp.gt.f32.partialorder %v2056, 0.0
        %vm2745 = vcmp.gt.f32.partialorder %v2679, 0.0
        %vm2746 = vcmp.gt.f32.partialorder %v2058, 0.0
        %vm2747 = vcmp.gt.f32.partialorder %v2681, 0.0
        %vm2748 = vcmp.gt.f32.partialorder %v2061, 0.0
        %vm2749 = vcmp.gt.f32.partialorder %v2684, 0.0
        %vm2750 = vcmp.gt.f32.partialorder %v2063, 0.0
        %vm2751 = vcmp.gt.f32.partialorder %v2686, 0.0
        %v2752 = vmul.f32 %v1986, 0.2
        %v2753 = vmul.f32 %v2609, 0.2
        %v2754 = vmul.f32 %v1988, 0.2
        %v2755 = vmul.f32 %v2611, 0.2
        %v2756 = vmul.f32 %v1991, 0.2
        %v2757 = vmul.f32 %v2614, 0.2
        %v2758 = vmul.f32 %v1993, 0.2
        %v2759 = vmul.f32 %v2616, 0.2
        %v2760 = vmul.f32 %v1996, 0.2
        %v2761 = vmul.f32 %v2619, 0.2
        %v2762 = vmul.f32 %v1998, 0.2
        %v2763 = vmul.f32 %v2621, 0.2
        %v2764 = vmul.f32 %v2001, 0.2
        %v2765 = vmul.f32 %v2624, 0.2
        %v2766 = vmul.f32 %v2003, 0.2
        %v2767 = vmul.f32 %v2626, 0.2
        %v2768 = vmul.f32 %v2006, 0.2
        %v2769 = vmul.f32 %v2629, 0.2
        %v2770 = vmul.f32 %v2008, 0.2
        %v2771 = vmul.f32 %v2631, 0.2
        %v2772 = vmul.f32 %v2011, 0.2
        %v2773 = vmul.f32 %v2634, 0.2
        %v2774 = vmul.f32 %v2013, 0.2
        %v2775 = vmul.f32 %v2636, 0.2
        %v2776 = vmul.f32 %v2016, 0.2
        %v2777 = vmul.f32 %v2639, 0.2
        %v2778 = vmul.f32 %v2018, 0.2
        %v2779 = vmul.f32 %v2641, 0.2
        %v2780 = vmul.f32 %v2021, 0.2
        %v2781 = vmul.f32 %v2644, 0.2
        %v2782 = vmul.f32 %v2023, 0.2
        %v2783 = vmul.f32 %v2646, 0.2
        %v2784 = vmul.f32 %v2026, 0.2
        %v2785 = vmul.f32 %v2649, 0.2
        %v2786 = vmul.f32 %v2028, 0.2
        %v2787 = vmul.f32 %v2651, 0.2
        %v2788 = vmul.f32 %v2031, 0.2
        %v2789 = vmul.f32 %v2654, 0.2
        %v2790 = vmul.f32 %v2033, 0.2
        %v2791 = vmul.f32 %v2656, 0.2
        %v2792 = vmul.f32 %v2036, 0.2
        %v2793 = vmul.f32 %v2659, 0.2
        %v2794 = vmul.f32 %v2038, 0.2
        %v2795 = vmul.f32 %v2661, 0.2
        %v2796 = vmul.f32 %v2041, 0.2
        %v2797 = vmul.f32 %v2664, 0.2
        %v2798 = vmul.f32 %v2043, 0.2
        %v2799 = vmul.f32 %v2666, 0.2
        %v2800 = vmul.f32 %v2046, 0.2
        %v2801 = vmul.f32 %v2669, 0.2
        %v2802 = vmul.f32 %v2048, 0.2
        %v2803 = vmul.f32 %v2671, 0.2
        %v2804 = vmul.f32 %v2051, 0.2
        %v2805 = vmul.f32 %v2674, 0.2
        %v2806 = vmul.f32 %v2053, 0.2
        %v2807 = vmul.f32 %v2676, 0.2
        %v2808 = vmul.f32 %v2056, 0.2
        %v2809 = vmul.f32 %v2679, 0.2
        %v2810 = vmul.f32 %v2058, 0.2
        %v2811 = vmul.f32 %v2681, 0.2
        %v2812 = vmul.f32 %v2061, 0.2
        %v2813 = vmul.f32 %v2684, 0.2
        %v2814 = vmul.f32 %v2063, 0.2
        %v2815 = vmul.f32 %v2686, 0.2
        %v2816 = vsel %vm2688, %v1986, %v2752
        %v2817 = vsel %vm2689, %v2609, %v2753
        %v2818 = vsel %vm2690, %v1988, %v2754
        %v2819 = vsel %vm2691, %v2611, %v2755
        %v2820 = vsel %vm2692, %v1991, %v2756
        %v2821 = vsel %vm2693, %v2614, %v2757
        %v2822 = vsel %vm2694, %v1993, %v2758
        %v2823 = vsel %vm2695, %v2616, %v2759
        %v2824 = vsel %vm2696, %v1996, %v2760
        %v2825 = vsel %vm2697, %v2619, %v2761
        %v2826 = vsel %vm2698, %v1998, %v2762
        %v2827 = vsel %vm2699, %v2621, %v2763
        %v2828 = vsel %vm2700, %v2001, %v2764
        %v2829 = vsel %vm2701, %v2624, %v2765
        %v2830 = vsel %vm2702, %v2003, %v2766
        %v2831 = vsel %vm2703, %v2626, %v2767
        %v2832 = vsel %vm2704, %v2006, %v2768
        %v2833 = vsel %vm2705, %v2629, %v2769
        %v2834 = vsel %vm2706, %v2008, %v2770
        %v2835 = vsel %vm2707, %v2631, %v2771
        %v2836 = vsel %vm2708, %v2011, %v2772
        %v2837 = vsel %vm2709, %v2634, %v2773
        %v2838 = vsel %vm2710, %v2013, %v2774
        %v2839 = vsel %vm2711, %v2636, %v2775
        %v2840 = vsel %vm2712, %v2016, %v2776
        %v2841 = vsel %vm2713, %v2639, %v2777
        %v2842 = vsel %vm2714, %v2018, %v2778
        %v2843 = vsel %vm2715, %v2641, %v2779
        %v2844 = vsel %vm2716, %v2021, %v2780
        %v2845 = vsel %vm2717, %v2644, %v2781
        %v2846 = vsel %vm2718, %v2023, %v2782
        %v2847 = vsel %vm2719, %v2646, %v2783
        %v2848 = vsel %vm2720, %v2026, %v2784
        %v2849 = vsel %vm2721, %v2649, %v2785
        %v2850 = vsel %vm2722, %v2028, %v2786
        %v2851 = vsel %vm2723, %v2651, %v2787
        %v2852 = vsel %vm2724, %v2031, %v2788
        %v2853 = vsel %vm2725, %v2654, %v2789
        %v2854 = vsel %vm2726, %v2033, %v2790
        %v2855 = vsel %vm2727, %v2656, %v2791
        %v2856 = vsel %vm2728, %v2036, %v2792
        %v2857 = vsel %vm2729, %v2659, %v2793
        %v2858 = vsel %vm2730, %v2038, %v2794
        %v2859 = vsel %vm2731, %v2661, %v2795
        %v2860 = vsel %vm2732, %v2041, %v2796
        %v2861 = vsel %vm2733, %v2664, %v2797
        %v2862 = vsel %vm2734, %v2043, %v2798
        %v2863 = vsel %vm2735, %v2666, %v2799
        %v2864 = vsel %vm2736, %v2046, %v2800
        %v2865 = vsel %vm2737, %v2669, %v2801
        %v2866 = vsel %vm2738, %v2048, %v2802
        %v2867 = vsel %vm2739, %v2671, %v2803
        %v2868 = vsel %vm2740, %v2051, %v2804
        %v2869 = vsel %vm2741, %v2674, %v2805
        %v2870 = vsel %vm2742, %v2053, %v2806
        %v2871 = vsel %vm2743, %v2676, %v2807
        %v2872 = vsel %vm2744, %v2056, %v2808
        %v2873 = vsel %vm2745, %v2679, %v2809
        %v2874 = vsel %vm2746, %v2058, %v2810
        %v2875 = vsel %vm2747, %v2681, %v2811
        %v2876 = vsel %vm2748, %v2061, %v2812
        %v2877 = vsel %vm2749, %v2684, %v2813
        %v2878 = vsel %vm2750, %v2063, %v2814
        %v2879 = vsel %vm2751, %v2686, %v2815
        %v2880 = vpack.c.bf16 %v2818, %v2816
        %v2881 = vpack.c.bf16 %v2819, %v2817
        %v2882 = vpack.c.bf16 %v2822, %v2820
        %v2883 = vpack.c.bf16 %v2823, %v2821
        %v2884 = vpack.c.bf16 %v2826, %v2824
        %v2885 = vpack.c.bf16 %v2827, %v2825
        %v2886 = vpack.c.bf16 %v2830, %v2828
        %v2887 = vpack.c.bf16 %v2831, %v2829
        %v2888 = vpack.c.bf16 %v2834, %v2832
        %v2889 = vpack.c.bf16 %v2835, %v2833
        %v2890 = vpack.c.bf16 %v2838, %v2836
        %v2891 = vpack.c.bf16 %v2839, %v2837
        %v2892 = vpack.c.bf16 %v2842, %v2840
        %v2893 = vpack.c.bf16 %v2843, %v2841
        %v2894 = vpack.c.bf16 %v2846, %v2844
        %v2895 = vpack.c.bf16 %v2847, %v2845
        %v2896 = vpack.c.bf16 %v2850, %v2848
        %v2897 = vpack.c.bf16 %v2851, %v2849
        %v2898 = vpack.c.bf16 %v2854, %v2852
        %v2899 = vpack.c.bf16 %v2855, %v2853
        %v2900 = vpack.c.bf16 %v2858, %v2856
        %v2901 = vpack.c.bf16 %v2859, %v2857
        %v2902 = vpack.c.bf16 %v2862, %v2860
        %v2903 = vpack.c.bf16 %v2863, %v2861
        %v2904 = vpack.c.bf16 %v2866, %v2864
        %v2905 = vpack.c.bf16 %v2867, %v2865
        %v2906 = vpack.c.bf16 %v2870, %v2868
        %v2907 = vpack.c.bf16 %v2871, %v2869
        %v2908 = vpack.c.bf16 %v2874, %v2872
        %v2909 = vpack.c.bf16 %v2875, %v2873
        %v2910 = vpack.c.bf16 %v2878, %v2876
        %v2911 = vpack.c.bf16 %v2879, %v2877
        %v2912 = vld [vmem:[#allocation8] sm:$0xf]
        %v2913 = vld [vmem:[#allocation8 + $0x4] sm:$0xf]
        %v2914 = vld [vmem:[#allocation8 + $0x8] sm:$0xf]
        %v2915 = vld [vmem:[#allocation8 + $0xc] sm:$0xf]
        %v2916 = vld [vmem:[#allocation8 + $0x10] sm:$0xf]
        %v2917 = vld [vmem:[#allocation8 + $0x14] sm:$0xf]
        %v2918 = vld [vmem:[#allocation8 + $0x18] sm:$0xf]
        %v2919 = vld [vmem:[#allocation8 + $0x1c] sm:$0xf]
        %v2920 = vld [vmem:[#allocation8 + $0x20] sm:$0xf]
        %v2921 = vld [vmem:[#allocation8 + $0x24] sm:$0xf]
        %v2922 = vld [vmem:[#allocation8 + $0x28] sm:$0xf]
        %v2923 = vld [vmem:[#allocation8 + $0x2c] sm:$0xf]
        %v2924 = vld [vmem:[#allocation8 + $0x30] sm:$0xf]
        %v2925 = vld [vmem:[#allocation8 + $0x34] sm:$0xf]
        %v2926 = vld [vmem:[#allocation8 + $0x38] sm:$0xf]
        %v2927 = vld [vmem:[#allocation8 + $0x3c] sm:$0xf]
        %v2928 = vld [vmem:[#allocation8 + $0x40] sm:$0xf]
        %v2929 = vld [vmem:[#allocation8 + $0x44] sm:$0xf]
        %v2930 = vld [vmem:[#allocation8 + $0x48] sm:$0xf]
        %v2931 = vld [vmem:[#allocation8 + $0x4c] sm:$0xf]
        %v2932 = vld [vmem:[#allocation8 + $0x50] sm:$0xf]
        %v2933 = vld [vmem:[#allocation8 + $0x54] sm:$0xf]
        %v2934 = vld [vmem:[#allocation8 + $0x58] sm:$0xf]
        %v2935 = vld [vmem:[#allocation8 + $0x5c] sm:$0xf]
        %v2936 = vld [vmem:[#allocation8 + $0x60] sm:$0xf]
        %v2937 = vld [vmem:[#allocation8 + $0x64] sm:$0xf]
        %v2938 = vld [vmem:[#allocation8 + $0x68] sm:$0xf]
        %v2939 = vld [vmem:[#allocation8 + $0x6c] sm:$0xf]
        %v2940 = vld [vmem:[#allocation8 + $0x70] sm:$0xf]
        %v2941 = vld [vmem:[#allocation8 + $0x74] sm:$0xf]
        %v2942 = vld [vmem:[#allocation8 + $0x78] sm:$0xf]
        %v2943 = vld [vmem:[#allocation8 + $0x7c] sm:$0xf]
        %v2944 = vld [vmem:[#allocation10] sm:$0x1]
        %v2946 = vperm.slane %v2944, 0
        %v2980 = vunpack.c.l.b16 %v2912
        %v2981 = vunpack.c.l.b16 %v2913
        %v2982 = vunpack.c.l.b16 %v2914
        %v2983 = vunpack.c.l.b16 %v2915
        %v2984 = vunpack.c.l.b16 %v2916
        %v2985 = vunpack.c.l.b16 %v2917
        %v2986 = vunpack.c.l.b16 %v2918
        %v2987 = vunpack.c.l.b16 %v2919
        %v2988 = vunpack.c.l.b16 %v2920
        %v2989 = vunpack.c.l.b16 %v2921
        %v2990 = vunpack.c.l.b16 %v2922
        %v2991 = vunpack.c.l.b16 %v2923
        %v2992 = vunpack.c.l.b16 %v2924
        %v2993 = vunpack.c.l.b16 %v2925
        %v2994 = vunpack.c.l.b16 %v2926
        %v2995 = vunpack.c.l.b16 %v2927
        %v2996 = vunpack.c.l.b16 %v2928
        %v2997 = vunpack.c.l.b16 %v2929
        %v2998 = vunpack.c.l.b16 %v2930
        %v2999 = vunpack.c.l.b16 %v2931
        %v3000 = vunpack.c.l.b16 %v2932
        %v3001 = vunpack.c.l.b16 %v2933
        %v3002 = vunpack.c.l.b16 %v2934
        %v3003 = vunpack.c.l.b16 %v2935
        %v3004 = vunpack.c.l.b16 %v2936
        %v3005 = vunpack.c.l.b16 %v2937
        %v3006 = vunpack.c.l.b16 %v2938
        %v3007 = vunpack.c.l.b16 %v2939
        %v3008 = vunpack.c.l.b16 %v2940
        %v3009 = vunpack.c.l.b16 %v2941
        %v3010 = vunpack.c.l.b16 %v2942
        %v3011 = vunpack.c.l.b16 %v2943
        %v3012 = vpack.c.b16 %v2981, %v2980
        %v3013 = vpack.c.b16 %v2983, %v2982
        %v3014 = vpack.c.b16 %v2985, %v2984
        %v3015 = vpack.c.b16 %v2987, %v2986
        %v3016 = vpack.c.b16 %v2989, %v2988
        %v3017 = vpack.c.b16 %v2991, %v2990
        %v3018 = vpack.c.b16 %v2993, %v2992
        %v3019 = vpack.c.b16 %v2995, %v2994
        %v3020 = vpack.c.b16 %v2997, %v2996
        %v3021 = vpack.c.b16 %v2999, %v2998
        %v3022 = vpack.c.b16 %v3001, %v3000
        %v3023 = vpack.c.b16 %v3003, %v3002
        %v3024 = vpack.c.b16 %v3005, %v3004
        %v3025 = vpack.c.b16 %v3007, %v3006
        %v3026 = vpack.c.b16 %v3009, %v3008
        %v3027 = vpack.c.b16 %v3011, %v3010
        %3044 = vmatpush.bf16.msra.mxu0 %v3019
        %3045 = vmatpush.bf16.msra.mxu0 %v3018
        %3046 = vmatpush.bf16.msra.mxu0 %v3017
        %3047 = vmatpush.bf16.msra.mxu0 %v3016
        %3048 = vmatpush.bf16.msra.mxu0 %v3015
        %3049 = vmatpush.bf16.msra.mxu0 %v3014
        %3050 = vmatpush.bf16.msra.mxu0 %v3013
        %3051 = vmatpush.bf16.msra.mxu0 %v3012
        %3052 = vmatmul.bf16.gmra.mxu0 %v2880
        %v3053 = vpop.f32.mrf.mxu0
        %v3054 = vadd.f32 %v2946, %v3053
        %v3055 = vpop.f32.mrf.mxu0
        %v3056 = vadd.f32 %v2946, %v3055
        %3057 = vmatmul.bf16.gmra.mxu0 %v2882
        %v3058 = vpop.f32.mrf.mxu0
        %v3059 = vadd.f32 %v2946, %v3058
        %v3060 = vpop.f32.mrf.mxu0
        %v3061 = vadd.f32 %v2946, %v3060
        %3062 = vmatmul.bf16.gmra.mxu0 %v2884
        %v3063 = vpop.f32.mrf.mxu0
        %v3064 = vadd.f32 %v2946, %v3063
        %v3065 = vpop.f32.mrf.mxu0
        %v3066 = vadd.f32 %v2946, %v3065
        %3067 = vmatmul.bf16.gmra.mxu0 %v2886
        %v3068 = vpop.f32.mrf.mxu0
        %v3069 = vadd.f32 %v2946, %v3068
        %v3070 = vpop.f32.mrf.mxu0
        %v3071 = vadd.f32 %v2946, %v3070
        %3072 = vmatmul.bf16.gmra.mxu0 %v2888
        %v3073 = vpop.f32.mrf.mxu0
        %v3074 = vadd.f32 %v2946, %v3073
        %v3075 = vpop.f32.mrf.mxu0
        %v3076 = vadd.f32 %v2946, %v3075
        %3077 = vmatmul.bf16.gmra.mxu0 %v2890
        %v3078 = vpop.f32.mrf.mxu0
        %v3079 = vadd.f32 %v2946, %v3078
        %v3080 = vpop.f32.mrf.mxu0
        %v3081 = vadd.f32 %v2946, %v3080
        %3082 = vmatmul.bf16.gmra.mxu0 %v2892
        %v3083 = vpop.f32.mrf.mxu0
        %v3084 = vadd.f32 %v2946, %v3083
        %v3085 = vpop.f32.mrf.mxu0
        %v3086 = vadd.f32 %v2946, %v3085
        %3087 = vmatmul.bf16.gmra.mxu0 %v2894
        %v3088 = vpop.f32.mrf.mxu0
        %v3089 = vadd.f32 %v2946, %v3088
        %v3090 = vpop.f32.mrf.mxu0
        %v3091 = vadd.f32 %v2946, %v3090
        %3092 = vmatmul.bf16.gmra.mxu0 %v2896
        %v3093 = vpop.f32.mrf.mxu0
        %v3094 = vadd.f32 %v2946, %v3093
        %v3095 = vpop.f32.mrf.mxu0
        %v3096 = vadd.f32 %v2946, %v3095
        %3097 = vmatmul.bf16.gmra.mxu0 %v2898
        %v3098 = vpop.f32.mrf.mxu0
        %v3099 = vadd.f32 %v2946, %v3098
        %v3100 = vpop.f32.mrf.mxu0
        %v3101 = vadd.f32 %v2946, %v3100
        %3102 = vmatmul.bf16.gmra.mxu0 %v2900
        %v3103 = vpop.f32.mrf.mxu0
        %v3104 = vadd.f32 %v2946, %v3103
        %v3105 = vpop.f32.mrf.mxu0
        %v3106 = vadd.f32 %v2946, %v3105
        %3107 = vmatmul.bf16.gmra.mxu0 %v2902
        %v3108 = vpop.f32.mrf.mxu0
        %v3109 = vadd.f32 %v2946, %v3108
        %v3110 = vpop.f32.mrf.mxu0
        %v3111 = vadd.f32 %v2946, %v3110
        %3112 = vmatmul.bf16.gmra.mxu0 %v2904
        %v3113 = vpop.f32.mrf.mxu0
        %v3114 = vadd.f32 %v2946, %v3113
        %v3115 = vpop.f32.mrf.mxu0
        %v3116 = vadd.f32 %v2946, %v3115
        %3117 = vmatmul.bf16.gmra.mxu0 %v2906
        %v3118 = vpop.f32.mrf.mxu0
        %v3119 = vadd.f32 %v2946, %v3118
        %v3120 = vpop.f32.mrf.mxu0
        %v3121 = vadd.f32 %v2946, %v3120
        %3122 = vmatmul.bf16.gmra.mxu0 %v2908
        %v3123 = vpop.f32.mrf.mxu0
        %v3124 = vadd.f32 %v2946, %v3123
        %v3125 = vpop.f32.mrf.mxu0
        %v3126 = vadd.f32 %v2946, %v3125
        %3127 = vmatmul.bf16.gmra.mxu0 %v2910
        %v3128 = vpop.f32.mrf.mxu0
        %v3129 = vadd.f32 %v2946, %v3128
        %v3130 = vpop.f32.mrf.mxu0
        %v3131 = vadd.f32 %v2946, %v3130
        %3132 = vdwg.mxu0
        %3133 = vmatpush.bf16.msra.mxu0 %v3027
        %3134 = vmatpush.bf16.msra.mxu0 %v3026
        %3135 = vmatpush.bf16.msra.mxu0 %v3025
        %3136 = vmatpush.bf16.msra.mxu0 %v3024
        %3137 = vmatpush.bf16.msra.mxu0 %v3023
        %3138 = vmatpush.bf16.msra.mxu0 %v3022
        %3139 = vmatpush.bf16.msra.mxu0 %v3021
        %3140 = vmatpush.bf16.msra.mxu0 %v3020
        %3141 = vmatmul.bf16.gmra.mxu0 %v2881
        %v3142 = vpop.f32.mrf.mxu0
        %v3143 = vadd.f32 %v3054, %v3142
        %v3144 = vpop.f32.mrf.mxu0
        %v3145 = vadd.f32 %v3056, %v3144
        %3146 = vmatmul.bf16.gmra.mxu0 %v2883
        %v3147 = vpop.f32.mrf.mxu0
        %v3148 = vadd.f32 %v3059, %v3147
        %v3149 = vpop.f32.mrf.mxu0
        %v3150 = vadd.f32 %v3061, %v3149
        %3151 = vmatmul.bf16.gmra.mxu0 %v2885
        %v3152 = vpop.f32.mrf.mxu0
        %v3153 = vadd.f32 %v3064, %v3152
        %v3154 = vpop.f32.mrf.mxu0
        %v3155 = vadd.f32 %v3066, %v3154
        %3156 = vmatmul.bf16.gmra.mxu0 %v2887
        %v3157 = vpop.f32.mrf.mxu0
        %v3158 = vadd.f32 %v3069, %v3157
        %v3159 = vpop.f32.mrf.mxu0
        %v3160 = vadd.f32 %v3071, %v3159
        %3161 = vmatmul.bf16.gmra.mxu0 %v2889
        %v3162 = vpop.f32.mrf.mxu0
        %v3163 = vadd.f32 %v3074, %v3162
        %v3164 = vpop.f32.mrf.mxu0
        %v3165 = vadd.f32 %v3076, %v3164
        %3166 = vmatmul.bf16.gmra.mxu0 %v2891
        %v3167 = vpop.f32.mrf.mxu0
        %v3168 = vadd.f32 %v3079, %v3167
        %v3169 = vpop.f32.mrf.mxu0
        %v3170 = vadd.f32 %v3081, %v3169
        %3171 = vmatmul.bf16.gmra.mxu0 %v2893
        %v3172 = vpop.f32.mrf.mxu0
        %v3173 = vadd.f32 %v3084, %v3172
        %v3174 = vpop.f32.mrf.mxu0
        %v3175 = vadd.f32 %v3086, %v3174
        %3176 = vmatmul.bf16.gmra.mxu0 %v2895
        %v3177 = vpop.f32.mrf.mxu0
        %v3178 = vadd.f32 %v3089, %v3177
        %v3179 = vpop.f32.mrf.mxu0
        %v3180 = vadd.f32 %v3091, %v3179
        %3181 = vmatmul.bf16.gmra.mxu0 %v2897
        %v3182 = vpop.f32.mrf.mxu0
        %v3183 = vadd.f32 %v3094, %v3182
        %v3184 = vpop.f32.mrf.mxu0
        %v3185 = vadd.f32 %v3096, %v3184
        %3186 = vmatmul.bf16.gmra.mxu0 %v2899
        %v3187 = vpop.f32.mrf.mxu0
        %v3188 = vadd.f32 %v3099, %v3187
        %v3189 = vpop.f32.mrf.mxu0
        %v3190 = vadd.f32 %v3101, %v3189
        %3191 = vmatmul.bf16.gmra.mxu0 %v2901
        %v3192 = vpop.f32.mrf.mxu0
        %v3193 = vadd.f32 %v3104, %v3192
        %v3194 = vpop.f32.mrf.mxu0
        %v3195 = vadd.f32 %v3106, %v3194
        %3196 = vmatmul.bf16.gmra.mxu0 %v2903
        %v3197 = vpop.f32.mrf.mxu0
        %v3198 = vadd.f32 %v3109, %v3197
        %v3199 = vpop.f32.mrf.mxu0
        %v3200 = vadd.f32 %v3111, %v3199
        %3201 = vmatmul.bf16.gmra.mxu0 %v2905
        %v3202 = vpop.f32.mrf.mxu0
        %v3203 = vadd.f32 %v3114, %v3202
        %v3204 = vpop.f32.mrf.mxu0
        %v3205 = vadd.f32 %v3116, %v3204
        %3206 = vmatmul.bf16.gmra.mxu0 %v2907
        %v3207 = vpop.f32.mrf.mxu0
        %v3208 = vadd.f32 %v3119, %v3207
        %v3209 = vpop.f32.mrf.mxu0
        %v3210 = vadd.f32 %v3121, %v3209
        %3211 = vmatmul.bf16.gmra.mxu0 %v2909
        %v3212 = vpop.f32.mrf.mxu0
        %v3213 = vadd.f32 %v3124, %v3212
        %v3214 = vpop.f32.mrf.mxu0
        %v3215 = vadd.f32 %v3126, %v3214
        %3216 = vmatmul.bf16.gmra.mxu0 %v2911
        %v3217 = vpop.f32.mrf.mxu0
        %v3218 = vadd.f32 %v3129, %v3217
        %v3219 = vpop.f32.mrf.mxu0
        %v3220 = vadd.f32 %v3131, %v3219
        %3221 = vdwg.mxu0
        %vm3222 = vcmp.gt.f32.partialorder %v3143, 0.0
        %vm3223 = vcmp.gt.f32.partialorder %v3145, 0.0
        %vm3224 = vcmp.gt.f32.partialorder %v3148, 0.0
        %vm3225 = vcmp.gt.f32.partialorder %v3150, 0.0
        %vm3226 = vcmp.gt.f32.partialorder %v3153, 0.0
        %vm3227 = vcmp.gt.f32.partialorder %v3155, 0.0
        %vm3228 = vcmp.gt.f32.partialorder %v3158, 0.0
        %vm3229 = vcmp.gt.f32.partialorder %v3160, 0.0
        %vm3230 = vcmp.gt.f32.partialorder %v3163, 0.0
        %vm3231 = vcmp.gt.f32.partialorder %v3165, 0.0
        %vm3232 = vcmp.gt.f32.partialorder %v3168, 0.0
        %vm3233 = vcmp.gt.f32.partialorder %v3170, 0.0
        %vm3234 = vcmp.gt.f32.partialorder %v3173, 0.0
        %vm3235 = vcmp.gt.f32.partialorder %v3175, 0.0
        %vm3236 = vcmp.gt.f32.partialorder %v3178, 0.0
        %vm3237 = vcmp.gt.f32.partialorder %v3180, 0.0
        %vm3238 = vcmp.gt.f32.partialorder %v3183, 0.0
        %vm3239 = vcmp.gt.f32.partialorder %v3185, 0.0
        %vm3240 = vcmp.gt.f32.partialorder %v3188, 0.0
        %vm3241 = vcmp.gt.f32.partialorder %v3190, 0.0
        %vm3242 = vcmp.gt.f32.partialorder %v3193, 0.0
        %vm3243 = vcmp.gt.f32.partialorder %v3195, 0.0
        %vm3244 = vcmp.gt.f32.partialorder %v3198, 0.0
        %vm3245 = vcmp.gt.f32.partialorder %v3200, 0.0
        %vm3246 = vcmp.gt.f32.partialorder %v3203, 0.0
        %vm3247 = vcmp.gt.f32.partialorder %v3205, 0.0
        %vm3248 = vcmp.gt.f32.partialorder %v3208, 0.0
        %vm3249 = vcmp.gt.f32.partialorder %v3210, 0.0
        %vm3250 = vcmp.gt.f32.partialorder %v3213, 0.0
        %vm3251 = vcmp.gt.f32.partialorder %v3215, 0.0
        %vm3252 = vcmp.gt.f32.partialorder %v3218, 0.0
        %vm3253 = vcmp.gt.f32.partialorder %v3220, 0.0
        %v3254 = vmul.f32 %v3143, 0.2
        %v3255 = vmul.f32 %v3145, 0.2
        %v3256 = vmul.f32 %v3148, 0.2
        %v3257 = vmul.f32 %v3150, 0.2
        %v3258 = vmul.f32 %v3153, 0.2
        %v3259 = vmul.f32 %v3155, 0.2
        %v3260 = vmul.f32 %v3158, 0.2
        %v3261 = vmul.f32 %v3160, 0.2
        %v3262 = vmul.f32 %v3163, 0.2
        %v3263 = vmul.f32 %v3165, 0.2
        %v3264 = vmul.f32 %v3168, 0.2
        %v3265 = vmul.f32 %v3170, 0.2
        %v3266 = vmul.f32 %v3173, 0.2
        %v3267 = vmul.f32 %v3175, 0.2
        %v3268 = vmul.f32 %v3178, 0.2
        %v3269 = vmul.f32 %v3180, 0.2
        %v3270 = vmul.f32 %v3183, 0.2
        %v3271 = vmul.f32 %v3185, 0.2
        %v3272 = vmul.f32 %v3188, 0.2
        %v3273 = vmul.f32 %v3190, 0.2
        %v3274 = vmul.f32 %v3193, 0.2
        %v3275 = vmul.f32 %v3195, 0.2
        %v3276 = vmul.f32 %v3198, 0.2
        %v3277 = vmul.f32 %v3200, 0.2
        %v3278 = vmul.f32 %v3203, 0.2
        %v3279 = vmul.f32 %v3205, 0.2
        %v3280 = vmul.f32 %v3208, 0.2
        %v3281 = vmul.f32 %v3210, 0.2
        %v3282 = vmul.f32 %v3213, 0.2
        %v3283 = vmul.f32 %v3215, 0.2
        %v3284 = vmul.f32 %v3218, 0.2
        %v3285 = vmul.f32 %v3220, 0.2
        %v3286 = vsel %vm3222, %v3143, %v3254
        %v3287 = vsel %vm3223, %v3145, %v3255
        %v3288 = vsel %vm3224, %v3148, %v3256
        %v3289 = vsel %vm3225, %v3150, %v3257
        %v3290 = vsel %vm3226, %v3153, %v3258
        %v3291 = vsel %vm3227, %v3155, %v3259
        %v3292 = vsel %vm3228, %v3158, %v3260
        %v3293 = vsel %vm3229, %v3160, %v3261
        %v3294 = vsel %vm3230, %v3163, %v3262
        %v3295 = vsel %vm3231, %v3165, %v3263
        %v3296 = vsel %vm3232, %v3168, %v3264
        %v3297 = vsel %vm3233, %v3170, %v3265
        %v3298 = vsel %vm3234, %v3173, %v3266
        %v3299 = vsel %vm3235, %v3175, %v3267
        %v3300 = vsel %vm3236, %v3178, %v3268
        %v3301 = vsel %vm3237, %v3180, %v3269
        %v3302 = vsel %vm3238, %v3183, %v3270
        %v3303 = vsel %vm3239, %v3185, %v3271
        %v3304 = vsel %vm3240, %v3188, %v3272
        %v3305 = vsel %vm3241, %v3190, %v3273
        %v3306 = vsel %vm3242, %v3193, %v3274
        %v3307 = vsel %vm3243, %v3195, %v3275
        %v3308 = vsel %vm3244, %v3198, %v3276
        %v3309 = vsel %vm3245, %v3200, %v3277
        %v3310 = vsel %vm3246, %v3203, %v3278
        %v3311 = vsel %vm3247, %v3205, %v3279
        %v3312 = vsel %vm3248, %v3208, %v3280
        %v3313 = vsel %vm3249, %v3210, %v3281
        %v3314 = vsel %vm3250, %v3213, %v3282
        %v3315 = vsel %vm3251, %v3215, %v3283
        %v3316 = vsel %vm3252, %v3218, %v3284
        %v3317 = vsel %vm3253, %v3220, %v3285
        %v3318 = vpack.c.bf16 %v3287, %v3286
        %v3319 = vpack.c.bf16 %v3289, %v3288
        %v3320 = vpack.c.bf16 %v3291, %v3290
        %v3321 = vpack.c.bf16 %v3293, %v3292
        %v3322 = vpack.c.bf16 %v3295, %v3294
        %v3323 = vpack.c.bf16 %v3297, %v3296
        %v3324 = vpack.c.bf16 %v3299, %v3298
        %v3325 = vpack.c.bf16 %v3301, %v3300
        %v3326 = vpack.c.bf16 %v3303, %v3302
        %v3327 = vpack.c.bf16 %v3305, %v3304
        %v3328 = vpack.c.bf16 %v3307, %v3306
        %v3329 = vpack.c.bf16 %v3309, %v3308
        %v3330 = vpack.c.bf16 %v3311, %v3310
        %v3331 = vpack.c.bf16 %v3313, %v3312
        %v3332 = vpack.c.bf16 %v3315, %v3314
        %v3333 = vpack.c.bf16 %v3317, %v3316
        %v3334 = vld [vmem:[%s5] sm:$0xf]
        %v3335 = vld [vmem:[%s5 + $0x4] sm:$0xf]
        %v3336 = vld [vmem:[%s5 + $0x8] sm:$0xf]
        %v3337 = vld [vmem:[%s5 + $0xc] sm:$0xf]
        %v3338 = vld [vmem:[%s5 + $0x10] sm:$0xf]
        %v3339 = vld [vmem:[%s5 + $0x14] sm:$0xf]
        %v3340 = vld [vmem:[%s5 + $0x18] sm:$0xf]
        %v3341 = vld [vmem:[%s5 + $0x1c] sm:$0xf]
        %v3342 = vld [vmem:[%s5 + $0x20] sm:$0xf]
        %v3343 = vld [vmem:[%s5 + $0x24] sm:$0xf]
        %v3344 = vld [vmem:[%s5 + $0x28] sm:$0xf]
        %v3345 = vld [vmem:[%s5 + $0x2c] sm:$0xf]
        %v3346 = vld [vmem:[%s5 + $0x30] sm:$0xf]
        %v3347 = vld [vmem:[%s5 + $0x34] sm:$0xf]
        %v3348 = vld [vmem:[%s5 + $0x38] sm:$0xf]
        %v3349 = vld [vmem:[%s5 + $0x3c] sm:$0xf]
        %v3350 = vld [vmem:[#allocation11] sm:$0x1]
        %v3352 = vperm.slane %v3350, 0
        %v3370 = vunpack.c.l.b16 %v3334
        %v3371 = vunpack.c.l.b16 %v3335
        %v3372 = vunpack.c.l.b16 %v3336
        %v3373 = vunpack.c.l.b16 %v3337
        %v3374 = vunpack.c.l.b16 %v3338
        %v3375 = vunpack.c.l.b16 %v3339
        %v3376 = vunpack.c.l.b16 %v3340
        %v3377 = vunpack.c.l.b16 %v3341
        %v3378 = vunpack.c.l.b16 %v3342
        %v3379 = vunpack.c.l.b16 %v3343
        %v3380 = vunpack.c.l.b16 %v3344
        %v3381 = vunpack.c.l.b16 %v3345
        %v3382 = vunpack.c.l.b16 %v3346
        %v3383 = vunpack.c.l.b16 %v3347
        %v3384 = vunpack.c.l.b16 %v3348
        %v3385 = vunpack.c.l.b16 %v3349
        %v3386 = vpack.c.b16 %v3371, %v3370
        %v3387 = vpack.c.b16 %v3373, %v3372
        %v3388 = vpack.c.b16 %v3375, %v3374
        %v3389 = vpack.c.b16 %v3377, %v3376
        %v3390 = vpack.c.b16 %v3379, %v3378
        %v3391 = vpack.c.b16 %v3381, %v3380
        %v3392 = vpack.c.b16 %v3383, %v3382
        %v3393 = vpack.c.b16 %v3385, %v3384
        %3402 = vmatpush.bf16.msra.mxu0 %v3393
        %3403 = vmatpush.bf16.msra.mxu0 %v3392
        %3404 = vmatpush.bf16.msra.mxu0 %v3391
        %3405 = vmatpush.bf16.msra.mxu0 %v3390
        %3406 = vmatpush.bf16.msra.mxu0 %v3389
        %3407 = vmatpush.bf16.msra.mxu0 %v3388
        %3408 = vmatpush.bf16.msra.mxu0 %v3387
        %3409 = vmatpush.bf16.msra.mxu0 %v3386
        %3410 = vmatmul.bf16.gmra.mxu0 %v3318
        %v3411 = vpop.f32.mrf.mxu0
        %v3412 = vadd.f32 %v3352, %v3411
        %v3413 = vpop.f32.mrf.mxu0
        %v3414 = vadd.f32 %v3352, %v3413
        %3415 = vmatmul.bf16.gmra.mxu0 %v3319
        %v3416 = vpop.f32.mrf.mxu0
        %v3417 = vadd.f32 %v3352, %v3416
        %v3418 = vpop.f32.mrf.mxu0
        %v3419 = vadd.f32 %v3352, %v3418
        %3420 = vmatmul.bf16.gmra.mxu0 %v3320
        %v3421 = vpop.f32.mrf.mxu0
        %v3422 = vadd.f32 %v3352, %v3421
        %v3423 = vpop.f32.mrf.mxu0
        %v3424 = vadd.f32 %v3352, %v3423
        %3425 = vmatmul.bf16.gmra.mxu0 %v3321
        %v3426 = vpop.f32.mrf.mxu0
        %v3427 = vadd.f32 %v3352, %v3426
        %v3428 = vpop.f32.mrf.mxu0
        %v3429 = vadd.f32 %v3352, %v3428
        %3430 = vmatmul.bf16.gmra.mxu0 %v3322
        %v3431 = vpop.f32.mrf.mxu0
        %v3432 = vadd.f32 %v3352, %v3431
        %v3433 = vpop.f32.mrf.mxu0
        %v3434 = vadd.f32 %v3352, %v3433
        %3435 = vmatmul.bf16.gmra.mxu0 %v3323
        %v3436 = vpop.f32.mrf.mxu0
        %v3437 = vadd.f32 %v3352, %v3436
        %v3438 = vpop.f32.mrf.mxu0
        %v3439 = vadd.f32 %v3352, %v3438
        %3440 = vmatmul.bf16.gmra.mxu0 %v3324
        %v3441 = vpop.f32.mrf.mxu0
        %v3442 = vadd.f32 %v3352, %v3441
        %v3443 = vpop.f32.mrf.mxu0
        %v3444 = vadd.f32 %v3352, %v3443
        %3445 = vmatmul.bf16.gmra.mxu0 %v3325
        %v3446 = vpop.f32.mrf.mxu0
        %v3447 = vadd.f32 %v3352, %v3446
        %v3448 = vpop.f32.mrf.mxu0
        %v3449 = vadd.f32 %v3352, %v3448
        %3450 = vmatmul.bf16.gmra.mxu0 %v3326
        %v3451 = vpop.f32.mrf.mxu0
        %v3452 = vadd.f32 %v3352, %v3451
        %v3453 = vpop.f32.mrf.mxu0
        %v3454 = vadd.f32 %v3352, %v3453
        %3455 = vmatmul.bf16.gmra.mxu0 %v3327
        %v3456 = vpop.f32.mrf.mxu0
        %v3457 = vadd.f32 %v3352, %v3456
        %v3458 = vpop.f32.mrf.mxu0
        %v3459 = vadd.f32 %v3352, %v3458
        %3460 = vmatmul.bf16.gmra.mxu0 %v3328
        %v3461 = vpop.f32.mrf.mxu0
        %v3462 = vadd.f32 %v3352, %v3461
        %v3463 = vpop.f32.mrf.mxu0
        %v3464 = vadd.f32 %v3352, %v3463
        %3465 = vmatmul.bf16.gmra.mxu0 %v3329
        %v3466 = vpop.f32.mrf.mxu0
        %v3467 = vadd.f32 %v3352, %v3466
        %v3468 = vpop.f32.mrf.mxu0
        %v3469 = vadd.f32 %v3352, %v3468
        %3470 = vmatmul.bf16.gmra.mxu0 %v3330
        %v3471 = vpop.f32.mrf.mxu0
        %v3472 = vadd.f32 %v3352, %v3471
        %v3473 = vpop.f32.mrf.mxu0
        %v3474 = vadd.f32 %v3352, %v3473
        %3475 = vmatmul.bf16.gmra.mxu0 %v3331
        %v3476 = vpop.f32.mrf.mxu0
        %v3477 = vadd.f32 %v3352, %v3476
        %v3478 = vpop.f32.mrf.mxu0
        %v3479 = vadd.f32 %v3352, %v3478
        %3480 = vmatmul.bf16.gmra.mxu0 %v3332
        %v3481 = vpop.f32.mrf.mxu0
        %v3482 = vadd.f32 %v3352, %v3481
        %v3483 = vpop.f32.mrf.mxu0
        %v3484 = vadd.f32 %v3352, %v3483
        %3485 = vmatmul.bf16.gmra.mxu0 %v3333
        %v3486 = vpop.f32.mrf.mxu0
        %v3487 = vadd.f32 %v3352, %v3486
        %v3488 = vpop.f32.mrf.mxu0
        %v3489 = vadd.f32 %v3352, %v3488
        %3490 = vdwg.mxu0
        %vm3491 = vcmp.gt.f32.partialorder %v3412, 0.0
        %vm3492 = vcmp.gt.f32.partialorder %v3414, 0.0
        %vm3493 = vcmp.gt.f32.partialorder %v3417, 0.0
        %vm3494 = vcmp.gt.f32.partialorder %v3419, 0.0
        %vm3495 = vcmp.gt.f32.partialorder %v3422, 0.0
        %vm3496 = vcmp.gt.f32.partialorder %v3424, 0.0
        %vm3497 = vcmp.gt.f32.partialorder %v3427, 0.0
        %vm3498 = vcmp.gt.f32.partialorder %v3429, 0.0
        %vm3499 = vcmp.gt.f32.partialorder %v3432, 0.0
        %vm3500 = vcmp.gt.f32.partialorder %v3434, 0.0
        %vm3501 = vcmp.gt.f32.partialorder %v3437, 0.0
        %vm3502 = vcmp.gt.f32.partialorder %v3439, 0.0
        %vm3503 = vcmp.gt.f32.partialorder %v3442, 0.0
        %vm3504 = vcmp.gt.f32.partialorder %v3444, 0.0
        %vm3505 = vcmp.gt.f32.partialorder %v3447, 0.0
        %vm3506 = vcmp.gt.f32.partialorder %v3449, 0.0
        %vm3507 = vcmp.gt.f32.partialorder %v3452, 0.0
        %vm3508 = vcmp.gt.f32.partialorder %v3454, 0.0
        %vm3509 = vcmp.gt.f32.partialorder %v3457, 0.0
        %vm3510 = vcmp.gt.f32.partialorder %v3459, 0.0
        %vm3511 = vcmp.gt.f32.partialorder %v3462, 0.0
        %vm3512 = vcmp.gt.f32.partialorder %v3464, 0.0
        %vm3513 = vcmp.gt.f32.partialorder %v3467, 0.0
        %vm3514 = vcmp.gt.f32.partialorder %v3469, 0.0
        %vm3515 = vcmp.gt.f32.partialorder %v3472, 0.0
        %vm3516 = vcmp.gt.f32.partialorder %v3474, 0.0
        %vm3517 = vcmp.gt.f32.partialorder %v3477, 0.0
        %vm3518 = vcmp.gt.f32.partialorder %v3479, 0.0
        %vm3519 = vcmp.gt.f32.partialorder %v3482, 0.0
        %vm3520 = vcmp.gt.f32.partialorder %v3484, 0.0
        %vm3521 = vcmp.gt.f32.partialorder %v3487, 0.0
        %vm3522 = vcmp.gt.f32.partialorder %v3489, 0.0
        %v3523 = vmul.f32 %v3412, 0.2
        %v3524 = vmul.f32 %v3414, 0.2
        %v3525 = vmul.f32 %v3417, 0.2
        %v3526 = vmul.f32 %v3419, 0.2
        %v3527 = vmul.f32 %v3422, 0.2
        %v3528 = vmul.f32 %v3424, 0.2
        %v3529 = vmul.f32 %v3427, 0.2
        %v3530 = vmul.f32 %v3429, 0.2
        %v3531 = vmul.f32 %v3432, 0.2
        %v3532 = vmul.f32 %v3434, 0.2
        %v3533 = vmul.f32 %v3437, 0.2
        %v3534 = vmul.f32 %v3439, 0.2
        %v3535 = vmul.f32 %v3442, 0.2
        %v3536 = vmul.f32 %v3444, 0.2
        %v3537 = vmul.f32 %v3447, 0.2
        %v3538 = vmul.f32 %v3449, 0.2
        %v3539 = vmul.f32 %v3452, 0.2
        %v3540 = vmul.f32 %v3454, 0.2
        %v3541 = vmul.f32 %v3457, 0.2
        %v3542 = vmul.f32 %v3459, 0.2
        %v3543 = vmul.f32 %v3462, 0.2
        %v3544 = vmul.f32 %v3464, 0.2
        %v3545 = vmul.f32 %v3467, 0.2
        %v3546 = vmul.f32 %v3469, 0.2
        %v3547 = vmul.f32 %v3472, 0.2
        %v3548 = vmul.f32 %v3474, 0.2
        %v3549 = vmul.f32 %v3477, 0.2
        %v3550 = vmul.f32 %v3479, 0.2
        %v3551 = vmul.f32 %v3482, 0.2
        %v3552 = vmul.f32 %v3484, 0.2
        %v3553 = vmul.f32 %v3487, 0.2
        %v3554 = vmul.f32 %v3489, 0.2
        %v3555 = vsel %vm3491, %v3412, %v3523
        %v3556 = vsel %vm3492, %v3414, %v3524
        %v3557 = vsel %vm3493, %v3417, %v3525
        %v3558 = vsel %vm3494, %v3419, %v3526
        %v3559 = vsel %vm3495, %v3422, %v3527
        %v3560 = vsel %vm3496, %v3424, %v3528
        %v3561 = vsel %vm3497, %v3427, %v3529
        %v3562 = vsel %vm3498, %v3429, %v3530
        %v3563 = vsel %vm3499, %v3432, %v3531
        %v3564 = vsel %vm3500, %v3434, %v3532
        %v3565 = vsel %vm3501, %v3437, %v3533
        %v3566 = vsel %vm3502, %v3439, %v3534
        %v3567 = vsel %vm3503, %v3442, %v3535
        %v3568 = vsel %vm3504, %v3444, %v3536
        %v3569 = vsel %vm3505, %v3447, %v3537
        %v3570 = vsel %vm3506, %v3449, %v3538
        %v3571 = vsel %vm3507, %v3452, %v3539
        %v3572 = vsel %vm3508, %v3454, %v3540
        %v3573 = vsel %vm3509, %v3457, %v3541
        %v3574 = vsel %vm3510, %v3459, %v3542
        %v3575 = vsel %vm3511, %v3462, %v3543
        %v3576 = vsel %vm3512, %v3464, %v3544
        %v3577 = vsel %vm3513, %v3467, %v3545
        %v3578 = vsel %vm3514, %v3469, %v3546
        %v3579 = vsel %vm3515, %v3472, %v3547
        %v3580 = vsel %vm3516, %v3474, %v3548
        %v3581 = vsel %vm3517, %v3477, %v3549
        %v3582 = vsel %vm3518, %v3479, %v3550
        %v3583 = vsel %vm3519, %v3482, %v3551
        %v3584 = vsel %vm3520, %v3484, %v3552
        %v3585 = vsel %vm3521, %v3487, %v3553
        %v3586 = vsel %vm3522, %v3489, %v3554
        %v3587 = vld [vmem:[#allocation13] sm:$0x1]
        %v3589 = vperm.slane %v3587, 0
        %v3591 = vmul.f32 %v3555, %v3589
        %v3592 = vmul.f32 %v3556, %v3589
        %v3593 = vmul.f32 %v3557, %v3589
        %v3594 = vmul.f32 %v3558, %v3589
        %v3595 = vmul.f32 %v3559, %v3589
        %v3596 = vmul.f32 %v3560, %v3589
        %v3597 = vmul.f32 %v3561, %v3589
        %v3598 = vmul.f32 %v3562, %v3589
        %v3599 = vmul.f32 %v3563, %v3589
        %v3600 = vmul.f32 %v3564, %v3589
        %v3601 = vmul.f32 %v3565, %v3589
        %v3602 = vmul.f32 %v3566, %v3589
        %v3603 = vmul.f32 %v3567, %v3589
        %v3604 = vmul.f32 %v3568, %v3589
        %v3605 = vmul.f32 %v3569, %v3589
        %v3606 = vmul.f32 %v3570, %v3589
        %v3607 = vmul.f32 %v3571, %v3589
        %v3608 = vmul.f32 %v3572, %v3589
        %v3609 = vmul.f32 %v3573, %v3589
        %v3610 = vmul.f32 %v3574, %v3589
        %v3611 = vmul.f32 %v3575, %v3589
        %v3612 = vmul.f32 %v3576, %v3589
        %v3613 = vmul.f32 %v3577, %v3589
        %v3614 = vmul.f32 %v3578, %v3589
        %v3615 = vmul.f32 %v3579, %v3589
        %v3616 = vmul.f32 %v3580, %v3589
        %v3617 = vmul.f32 %v3581, %v3589
        %v3618 = vmul.f32 %v3582, %v3589
        %v3619 = vmul.f32 %v3583, %v3589
        %v3620 = vmul.f32 %v3584, %v3589
        %v3621 = vmul.f32 %v3585, %v3589
        %v3622 = vmul.f32 %v3586, %v3589
        %vm3623 = vcmask 523264
        %v3624 = vsel %vm3623, %v3591, 0.0
        %3625 = vadd.xlane.f32.xlu0 %v3624
        %v3626 = vpop.xlane.xlu0 %3625
        %v3627 = vsel %vm3623, %v3592, 0.0
        %3628 = vadd.xlane.f32.xlu0 %v3627
        %v3629 = vpop.xlane.xlu0 %3628
        %v3630 = vsel %vm3623, %v3593, 0.0
        %3631 = vadd.xlane.f32.xlu0 %v3630
        %v3632 = vpop.xlane.xlu0 %3631
        %v3633 = vsel %vm3623, %v3594, 0.0
        %3634 = vadd.xlane.f32.xlu0 %v3633
        %v3635 = vpop.xlane.xlu0 %3634
        %v3636 = vsel %vm3623, %v3595, 0.0
        %3637 = vadd.xlane.f32.xlu0 %v3636
        %v3638 = vpop.xlane.xlu0 %3637
        %v3639 = vsel %vm3623, %v3596, 0.0
        %3640 = vadd.xlane.f32.xlu0 %v3639
        %v3641 = vpop.xlane.xlu0 %3640
        %v3642 = vsel %vm3623, %v3597, 0.0
        %3643 = vadd.xlane.f32.xlu0 %v3642
        %v3644 = vpop.xlane.xlu0 %3643
        %v3645 = vsel %vm3623, %v3598, 0.0
        %3646 = vadd.xlane.f32.xlu0 %v3645
        %v3647 = vpop.xlane.xlu0 %3646
        %v3648 = vsel %vm3623, %v3599, 0.0
        %3649 = vadd.xlane.f32.xlu0 %v3648
        %v3650 = vpop.xlane.xlu0 %3649
        %v3651 = vsel %vm3623, %v3600, 0.0
        %3652 = vadd.xlane.f32.xlu0 %v3651
        %v3653 = vpop.xlane.xlu0 %3652
        %v3654 = vsel %vm3623, %v3601, 0.0
        %3655 = vadd.xlane.f32.xlu0 %v3654
        %v3656 = vpop.xlane.xlu0 %3655
        %v3657 = vsel %vm3623, %v3602, 0.0
        %3658 = vadd.xlane.f32.xlu0 %v3657
        %v3659 = vpop.xlane.xlu0 %3658
        %v3660 = vsel %vm3623, %v3603, 0.0
        %3661 = vadd.xlane.f32.xlu0 %v3660
        %v3662 = vpop.xlane.xlu0 %3661
        %v3663 = vsel %vm3623, %v3604, 0.0
        %3664 = vadd.xlane.f32.xlu0 %v3663
        %v3665 = vpop.xlane.xlu0 %3664
        %v3666 = vsel %vm3623, %v3605, 0.0
        %3667 = vadd.xlane.f32.xlu0 %v3666
        %v3668 = vpop.xlane.xlu0 %3667
        %v3669 = vsel %vm3623, %v3606, 0.0
        %3670 = vadd.xlane.f32.xlu0 %v3669
        %v3671 = vpop.xlane.xlu0 %3670
        %v3672 = vsel %vm3623, %v3607, 0.0
        %3673 = vadd.xlane.f32.xlu0 %v3672
        %v3674 = vpop.xlane.xlu0 %3673
        %v3675 = vsel %vm3623, %v3608, 0.0
        %3676 = vadd.xlane.f32.xlu0 %v3675
        %v3677 = vpop.xlane.xlu0 %3676
        %v3678 = vsel %vm3623, %v3609, 0.0
        %3679 = vadd.xlane.f32.xlu0 %v3678
        %v3680 = vpop.xlane.xlu0 %3679
        %v3681 = vsel %vm3623, %v3610, 0.0
        %3682 = vadd.xlane.f32.xlu0 %v3681
        %v3683 = vpop.xlane.xlu0 %3682
        %v3684 = vsel %vm3623, %v3611, 0.0
        %3685 = vadd.xlane.f32.xlu0 %v3684
        %v3686 = vpop.xlane.xlu0 %3685
        %v3687 = vsel %vm3623, %v3612, 0.0
        %3688 = vadd.xlane.f32.xlu0 %v3687
        %v3689 = vpop.xlane.xlu0 %3688
        %v3690 = vsel %vm3623, %v3613, 0.0
        %3691 = vadd.xlane.f32.xlu0 %v3690
        %v3692 = vpop.xlane.xlu0 %3691
        %v3693 = vsel %vm3623, %v3614, 0.0
        %3694 = vadd.xlane.f32.xlu0 %v3693
        %v3695 = vpop.xlane.xlu0 %3694
        %v3696 = vsel %vm3623, %v3615, 0.0
        %3697 = vadd.xlane.f32.xlu0 %v3696
        %v3698 = vpop.xlane.xlu0 %3697
        %v3699 = vsel %vm3623, %v3616, 0.0
        %3700 = vadd.xlane.f32.xlu0 %v3699
        %v3701 = vpop.xlane.xlu0 %3700
        %v3702 = vsel %vm3623, %v3617, 0.0
        %3703 = vadd.xlane.f32.xlu0 %v3702
        %v3704 = vpop.xlane.xlu0 %3703
        %v3705 = vsel %vm3623, %v3618, 0.0
        %3706 = vadd.xlane.f32.xlu0 %v3705
        %v3707 = vpop.xlane.xlu0 %3706
        %v3708 = vsel %vm3623, %v3619, 0.0
        %3709 = vadd.xlane.f32.xlu0 %v3708
        %v3710 = vpop.xlane.xlu0 %3709
        %v3711 = vsel %vm3623, %v3620, 0.0
        %3712 = vadd.xlane.f32.xlu0 %v3711
        %v3713 = vpop.xlane.xlu0 %3712
        %v3714 = vsel %vm3623, %v3621, 0.0
        %3715 = vadd.xlane.f32.xlu0 %v3714
        %v3716 = vpop.xlane.xlu0 %3715
        %v3717 = vsel %vm3623, %v3622, 0.0
        %3718 = vadd.xlane.f32.xlu0 %v3717
        %v3719 = vpop.xlane.xlu0 %3718
        %v3720 = vld [vmem:[#allocation2] sm:$0x1]
        %v3722 = vperm.slane %v3720, 0
        %v3724 = vadd.f32 %v3626, %v3722
        %v3725 = vadd.f32 %v3629, %v3722
        %v3726 = vadd.f32 %v3632, %v3722
        %v3727 = vadd.f32 %v3635, %v3722
        %v3728 = vadd.f32 %v3638, %v3722
        %v3729 = vadd.f32 %v3641, %v3722
        %v3730 = vadd.f32 %v3644, %v3722
        %v3731 = vadd.f32 %v3647, %v3722
        %v3732 = vadd.f32 %v3650, %v3722
        %v3733 = vadd.f32 %v3653, %v3722
        %v3734 = vadd.f32 %v3656, %v3722
        %v3735 = vadd.f32 %v3659, %v3722
        %v3736 = vadd.f32 %v3662, %v3722
        %v3737 = vadd.f32 %v3665, %v3722
        %v3738 = vadd.f32 %v3668, %v3722
        %v3739 = vadd.f32 %v3671, %v3722
        %v3740 = vadd.f32 %v3674, %v3722
        %v3741 = vadd.f32 %v3677, %v3722
        %v3742 = vadd.f32 %v3680, %v3722
        %v3743 = vadd.f32 %v3683, %v3722
        %v3744 = vadd.f32 %v3686, %v3722
        %v3745 = vadd.f32 %v3689, %v3722
        %v3746 = vadd.f32 %v3692, %v3722
        %v3747 = vadd.f32 %v3695, %v3722
        %v3748 = vadd.f32 %v3698, %v3722
        %v3749 = vadd.f32 %v3701, %v3722
        %v3750 = vadd.f32 %v3704, %v3722
        %v3751 = vadd.f32 %v3707, %v3722
        %v3752 = vadd.f32 %v3710, %v3722
        %v3753 = vadd.f32 %v3713, %v3722
        %v3754 = vadd.f32 %v3716, %v3722
        %v3755 = vadd.f32 %v3719, %v3722
        %v3756 = vand.u32 2147483647, %v3724
        %v3757 = vand.u32 2147483647, %v3725
        %v3758 = vand.u32 2147483647, %v3726
        %v3759 = vand.u32 2147483647, %v3727
        %v3760 = vand.u32 2147483647, %v3728
        %v3761 = vand.u32 2147483647, %v3729
        %v3762 = vand.u32 2147483647, %v3730
        %v3763 = vand.u32 2147483647, %v3731
        %v3764 = vand.u32 2147483647, %v3732
        %v3765 = vand.u32 2147483647, %v3733
        %v3766 = vand.u32 2147483647, %v3734
        %v3767 = vand.u32 2147483647, %v3735
        %v3768 = vand.u32 2147483647, %v3736
        %v3769 = vand.u32 2147483647, %v3737
        %v3770 = vand.u32 2147483647, %v3738
        %v3771 = vand.u32 2147483647, %v3739
        %v3772 = vand.u32 2147483647, %v3740
        %v3773 = vand.u32 2147483647, %v3741
        %v3774 = vand.u32 2147483647, %v3742
        %v3775 = vand.u32 2147483647, %v3743
        %v3776 = vand.u32 2147483647, %v3744
        %v3777 = vand.u32 2147483647, %v3745
        %v3778 = vand.u32 2147483647, %v3746
        %v3779 = vand.u32 2147483647, %v3747
        %v3780 = vand.u32 2147483647, %v3748
        %v3781 = vand.u32 2147483647, %v3749
        %v3782 = vand.u32 2147483647, %v3750
        %v3783 = vand.u32 2147483647, %v3751
        %v3784 = vand.u32 2147483647, %v3752
        %v3785 = vand.u32 2147483647, %v3753
        %v3786 = vand.u32 2147483647, %v3754
        %v3787 = vand.u32 2147483647, %v3755
        %v3788 = vsub.f32 0.0, %v3756
        %v3789 = vsub.f32 0.0, %v3757
        %v3790 = vsub.f32 0.0, %v3758
        %v3791 = vsub.f32 0.0, %v3759
        %v3792 = vsub.f32 0.0, %v3760
        %v3793 = vsub.f32 0.0, %v3761
        %v3794 = vsub.f32 0.0, %v3762
        %v3795 = vsub.f32 0.0, %v3763
        %v3796 = vsub.f32 0.0, %v3764
        %v3797 = vsub.f32 0.0, %v3765
        %v3798 = vsub.f32 0.0, %v3766
        %v3799 = vsub.f32 0.0, %v3767
        %v3800 = vsub.f32 0.0, %v3768
        %v3801 = vsub.f32 0.0, %v3769
        %v3802 = vsub.f32 0.0, %v3770
        %v3803 = vsub.f32 0.0, %v3771
        %v3804 = vsub.f32 0.0, %v3772
        %v3805 = vsub.f32 0.0, %v3773
        %v3806 = vsub.f32 0.0, %v3774
        %v3807 = vsub.f32 0.0, %v3775
        %v3808 = vsub.f32 0.0, %v3776
        %v3809 = vsub.f32 0.0, %v3777
        %v3810 = vsub.f32 0.0, %v3778
        %v3811 = vsub.f32 0.0, %v3779
        %v3812 = vsub.f32 0.0, %v3780
        %v3813 = vsub.f32 0.0, %v3781
        %v3814 = vsub.f32 0.0, %v3782
        %v3815 = vsub.f32 0.0, %v3783
        %v3816 = vsub.f32 0.0, %v3784
        %v3817 = vsub.f32 0.0, %v3785
        %v3818 = vsub.f32 0.0, %v3786
        %v3819 = vsub.f32 0.0, %v3787
        %v3820 = vmul.f32 %v3788, 1.442695
        %v3821 = vpow.pop %v3820
        %v3822 = vmul.f32 %v3789, 1.442695
        %v3823 = vpow.pop %v3822
        %v3824 = vmul.f32 %v3790, 1.442695
        %v3825 = vpow.pop %v3824
        %v3826 = vmul.f32 %v3791, 1.442695
        %v3827 = vpow.pop %v3826
        %v3828 = vmul.f32 %v3792, 1.442695
        %v3829 = vpow.pop %v3828
        %v3830 = vmul.f32 %v3793, 1.442695
        %v3831 = vpow.pop %v3830
        %v3832 = vmul.f32 %v3794, 1.442695
        %v3833 = vpow.pop %v3832
        %v3834 = vmul.f32 %v3795, 1.442695
        %v3835 = vpow.pop %v3834
        %v3836 = vmul.f32 %v3796, 1.442695
        %v3837 = vpow.pop %v3836
        %v3838 = vmul.f32 %v3797, 1.442695
        %v3839 = vpow.pop %v3838
        %v3840 = vmul.f32 %v3798, 1.442695
        %v3841 = vpow.pop %v3840
        %v3842 = vmul.f32 %v3799, 1.442695
        %v3843 = vpow.pop %v3842
        %v3844 = vmul.f32 %v3800, 1.442695
        %v3845 = vpow.pop %v3844
        %v3846 = vmul.f32 %v3801, 1.442695
        %v3847 = vpow.pop %v3846
        %v3848 = vmul.f32 %v3802, 1.442695
        %v3849 = vpow.pop %v3848
        %v3850 = vmul.f32 %v3803, 1.442695
        %v3851 = vpow.pop %v3850
        %v3852 = vmul.f32 %v3804, 1.442695
        %v3853 = vpow.pop %v3852
        %v3854 = vmul.f32 %v3805, 1.442695
        %v3855 = vpow.pop %v3854
        %v3856 = vmul.f32 %v3806, 1.442695
        %v3857 = vpow.pop %v3856
        %v3858 = vmul.f32 %v3807, 1.442695
        %v3859 = vpow.pop %v3858
        %v3860 = vmul.f32 %v3808, 1.442695
        %v3861 = vpow.pop %v3860
        %v3862 = vmul.f32 %v3809, 1.442695
        %v3863 = vpow.pop %v3862
        %v3864 = vmul.f32 %v3810, 1.442695
        %v3865 = vpow.pop %v3864
        %v3866 = vmul.f32 %v3811, 1.442695
        %v3867 = vpow.pop %v3866
        %v3868 = vmul.f32 %v3812, 1.442695
        %v3869 = vpow.pop %v3868
        %v3870 = vmul.f32 %v3813, 1.442695
        %v3871 = vpow.pop %v3870
        %v3872 = vmul.f32 %v3814, 1.442695
        %v3873 = vpow.pop %v3872
        %v3874 = vmul.f32 %v3815, 1.442695
        %v3875 = vpow.pop %v3874
        %v3876 = vmul.f32 %v3816, 1.442695
        %v3877 = vpow.pop %v3876
        %v3878 = vmul.f32 %v3817, 1.442695
        %v3879 = vpow.pop %v3878
        %v3880 = vmul.f32 %v3818, 1.442695
        %v3881 = vpow.pop %v3880
        %v3882 = vmul.f32 %v3819, 1.442695
        %v3883 = vpow.pop %v3882
        %vm3884 = vcmp.ge.f32.partialorder %v3724, 0.0
        %vm3885 = vcmp.ge.f32.partialorder %v3725, 0.0
        %vm3886 = vcmp.ge.f32.partialorder %v3726, 0.0
        %vm3887 = vcmp.ge.f32.partialorder %v3727, 0.0
        %vm3888 = vcmp.ge.f32.partialorder %v3728, 0.0
        %vm3889 = vcmp.ge.f32.partialorder %v3729, 0.0
        %vm3890 = vcmp.ge.f32.partialorder %v3730, 0.0
        %vm3891 = vcmp.ge.f32.partialorder %v3731, 0.0
        %vm3892 = vcmp.ge.f32.partialorder %v3732, 0.0
        %vm3893 = vcmp.ge.f32.partialorder %v3733, 0.0
        %vm3894 = vcmp.ge.f32.partialorder %v3734, 0.0
        %vm3895 = vcmp.ge.f32.partialorder %v3735, 0.0
        %vm3896 = vcmp.ge.f32.partialorder %v3736, 0.0
        %vm3897 = vcmp.ge.f32.partialorder %v3737, 0.0
        %vm3898 = vcmp.ge.f32.partialorder %v3738, 0.0
        %vm3899 = vcmp.ge.f32.partialorder %v3739, 0.0
        %vm3900 = vcmp.ge.f32.partialorder %v3740, 0.0
        %vm3901 = vcmp.ge.f32.partialorder %v3741, 0.0
        %vm3902 = vcmp.ge.f32.partialorder %v3742, 0.0
        %vm3903 = vcmp.ge.f32.partialorder %v3743, 0.0
        %vm3904 = vcmp.ge.f32.partialorder %v3744, 0.0
        %vm3905 = vcmp.ge.f32.partialorder %v3745, 0.0
        %vm3906 = vcmp.ge.f32.partialorder %v3746, 0.0
        %vm3907 = vcmp.ge.f32.partialorder %v3747, 0.0
        %vm3908 = vcmp.ge.f32.partialorder %v3748, 0.0
        %vm3909 = vcmp.ge.f32.partialorder %v3749, 0.0
        %vm3910 = vcmp.ge.f32.partialorder %v3750, 0.0
        %vm3911 = vcmp.ge.f32.partialorder %v3751, 0.0
        %vm3912 = vcmp.ge.f32.partialorder %v3752, 0.0
        %vm3913 = vcmp.ge.f32.partialorder %v3753, 0.0
        %vm3914 = vcmp.ge.f32.partialorder %v3754, 0.0
        %vm3915 = vcmp.ge.f32.partialorder %v3755, 0.0
        %v3916 = vsel %vm3884, 1.0, %v3821
        %v3917 = vsel %vm3885, 1.0, %v3823
        %v3918 = vsel %vm3886, 1.0, %v3825
        %v3919 = vsel %vm3887, 1.0, %v3827
        %v3920 = vsel %vm3888, 1.0, %v3829
        %v3921 = vsel %vm3889, 1.0, %v3831
        %v3922 = vsel %vm3890, 1.0, %v3833
        %v3923 = vsel %vm3891, 1.0, %v3835
        %v3924 = vsel %vm3892, 1.0, %v3837
        %v3925 = vsel %vm3893, 1.0, %v3839
        %v3926 = vsel %vm3894, 1.0, %v3841
        %v3927 = vsel %vm3895, 1.0, %v3843
        %v3928 = vsel %vm3896, 1.0, %v3845
        %v3929 = vsel %vm3897, 1.0, %v3847
        %v3930 = vsel %vm3898, 1.0, %v3849
        %v3931 = vsel %vm3899, 1.0, %v3851
        %v3932 = vsel %vm3900, 1.0, %v3853
        %v3933 = vsel %vm3901, 1.0, %v3855
        %v3934 = vsel %vm3902, 1.0, %v3857
        %v3935 = vsel %vm3903, 1.0, %v3859
        %v3936 = vsel %vm3904, 1.0, %v3861
        %v3937 = vsel %vm3905, 1.0, %v3863
        %v3938 = vsel %vm3906, 1.0, %v3865
        %v3939 = vsel %vm3907, 1.0, %v3867
        %v3940 = vsel %vm3908, 1.0, %v3869
        %v3941 = vsel %vm3909, 1.0, %v3871
        %v3942 = vsel %vm3910, 1.0, %v3873
        %v3943 = vsel %vm3911, 1.0, %v3875
        %v3944 = vsel %vm3912, 1.0, %v3877
        %v3945 = vsel %vm3913, 1.0, %v3879
        %v3946 = vsel %vm3914, 1.0, %v3881
        %v3947 = vsel %vm3915, 1.0, %v3883
        %v3948 = vadd.f32 %v3821, 1.0
        %v3949 = vadd.f32 %v3823, 1.0
        %v3950 = vadd.f32 %v3825, 1.0
        %v3951 = vadd.f32 %v3827, 1.0
        %v3952 = vadd.f32 %v3829, 1.0
        %v3953 = vadd.f32 %v3831, 1.0
        %v3954 = vadd.f32 %v3833, 1.0
        %v3955 = vadd.f32 %v3835, 1.0
        %v3956 = vadd.f32 %v3837, 1.0
        %v3957 = vadd.f32 %v3839, 1.0
        %v3958 = vadd.f32 %v3841, 1.0
        %v3959 = vadd.f32 %v3843, 1.0
        %v3960 = vadd.f32 %v3845, 1.0
        %v3961 = vadd.f32 %v3847, 1.0
        %v3962 = vadd.f32 %v3849, 1.0
        %v3963 = vadd.f32 %v3851, 1.0
        %v3964 = vadd.f32 %v3853, 1.0
        %v3965 = vadd.f32 %v3855, 1.0
        %v3966 = vadd.f32 %v3857, 1.0
        %v3967 = vadd.f32 %v3859, 1.0
        %v3968 = vadd.f32 %v3861, 1.0
        %v3969 = vadd.f32 %v3863, 1.0
        %v3970 = vadd.f32 %v3865, 1.0
        %v3971 = vadd.f32 %v3867, 1.0
        %v3972 = vadd.f32 %v3869, 1.0
        %v3973 = vadd.f32 %v3871, 1.0
        %v3974 = vadd.f32 %v3873, 1.0
        %v3975 = vadd.f32 %v3875, 1.0
        %v3976 = vadd.f32 %v3877, 1.0
        %v3977 = vadd.f32 %v3879, 1.0
        %v3978 = vadd.f32 %v3881, 1.0
        %v3979 = vadd.f32 %v3883, 1.0
        %v3980 = vrcp.pop %v3948
        %v3981 = vmul.f32 %v3948, %v3980
        %v3982 = vsub.f32 1.0, %v3981
        %v3983 = vmul.f32 %v3980, %v3982
        %v3984 = vadd.f32 %v3980, %v3983
        %vm3985 = vweird.f32 %v3948
        %vm3986 = vweird.f32 %v3980
        %vm3987 = vmor %vm3985, %vm3986
        %v3988 = vsel %vm3987, %v3980, %v3984
        %v3989 = vand.u32 2147483647, %v3948
        %vm3990 = vcmp.eq.f32.partialorder %v3989, 8.507059e+37
        %v3991 = vand.u32 %v3948, 2147483648
        %v3992 = vor.u32 1.1754944e-38, %v3991
        %v3993 = vsel %vm3990, %v3992, %v3988
        %v3994 = vmul.f32 %v3916, %v3993
        %v3995 = vrcp.pop %v3949
        %v3996 = vmul.f32 %v3949, %v3995
        %v3997 = vsub.f32 1.0, %v3996
        %v3998 = vmul.f32 %v3995, %v3997
        %v3999 = vadd.f32 %v3995, %v3998
        %vm4000 = vweird.f32 %v3949
        %vm4001 = vweird.f32 %v3995
        %vm4002 = vmor %vm4000, %vm4001
        %v4003 = vsel %vm4002, %v3995, %v3999
        %v4004 = vand.u32 2147483647, %v3949
        %vm4005 = vcmp.eq.f32.partialorder %v4004, 8.507059e+37
        %v4006 = vand.u32 %v3949, 2147483648
        %v4007 = vor.u32 1.1754944e-38, %v4006
        %v4008 = vsel %vm4005, %v4007, %v4003
        %v4009 = vmul.f32 %v3917, %v4008
        %v4010 = vrcp.pop %v3950
        %v4011 = vmul.f32 %v3950, %v4010
        %v4012 = vsub.f32 1.0, %v4011
        %v4013 = vmul.f32 %v4010, %v4012
        %v4014 = vadd.f32 %v4010, %v4013
        %vm4015 = vweird.f32 %v3950
        %vm4016 = vweird.f32 %v4010
        %vm4017 = vmor %vm4015, %vm4016
        %v4018 = vsel %vm4017, %v4010, %v4014
        %v4019 = vand.u32 2147483647, %v3950
        %vm4020 = vcmp.eq.f32.partialorder %v4019, 8.507059e+37
        %v4021 = vand.u32 %v3950, 2147483648
        %v4022 = vor.u32 1.1754944e-38, %v4021
        %v4023 = vsel %vm4020, %v4022, %v4018
        %v4024 = vmul.f32 %v3918, %v4023
        %v4025 = vrcp.pop %v3951
        %v4026 = vmul.f32 %v3951, %v4025
        %v4027 = vsub.f32 1.0, %v4026
        %v4028 = vmul.f32 %v4025, %v4027
        %v4029 = vadd.f32 %v4025, %v4028
        %vm4030 = vweird.f32 %v3951
        %vm4031 = vweird.f32 %v4025
        %vm4032 = vmor %vm4030, %vm4031
        %v4033 = vsel %vm4032, %v4025, %v4029
        %v4034 = vand.u32 2147483647, %v3951
        %vm4035 = vcmp.eq.f32.partialorder %v4034, 8.507059e+37
        %v4036 = vand.u32 %v3951, 2147483648
        %v4037 = vor.u32 1.1754944e-38, %v4036
        %v4038 = vsel %vm4035, %v4037, %v4033
        %v4039 = vmul.f32 %v3919, %v4038
        %v4040 = vrcp.pop %v3952
        %v4041 = vmul.f32 %v3952, %v4040
        %v4042 = vsub.f32 1.0, %v4041
        %v4043 = vmul.f32 %v4040, %v4042
        %v4044 = vadd.f32 %v4040, %v4043
        %vm4045 = vweird.f32 %v3952
        %vm4046 = vweird.f32 %v4040
        %vm4047 = vmor %vm4045, %vm4046
        %v4048 = vsel %vm4047, %v4040, %v4044
        %v4049 = vand.u32 2147483647, %v3952
        %vm4050 = vcmp.eq.f32.partialorder %v4049, 8.507059e+37
        %v4051 = vand.u32 %v3952, 2147483648
        %v4052 = vor.u32 1.1754944e-38, %v4051
        %v4053 = vsel %vm4050, %v4052, %v4048
        %v4054 = vmul.f32 %v3920, %v4053
        %v4055 = vrcp.pop %v3953
        %v4056 = vmul.f32 %v3953, %v4055
        %v4057 = vsub.f32 1.0, %v4056
        %v4058 = vmul.f32 %v4055, %v4057
        %v4059 = vadd.f32 %v4055, %v4058
        %vm4060 = vweird.f32 %v3953
        %vm4061 = vweird.f32 %v4055
        %vm4062 = vmor %vm4060, %vm4061
        %v4063 = vsel %vm4062, %v4055, %v4059
        %v4064 = vand.u32 2147483647, %v3953
        %vm4065 = vcmp.eq.f32.partialorder %v4064, 8.507059e+37
        %v4066 = vand.u32 %v3953, 2147483648
        %v4067 = vor.u32 1.1754944e-38, %v4066
        %v4068 = vsel %vm4065, %v4067, %v4063
        %v4069 = vmul.f32 %v3921, %v4068
        %v4070 = vrcp.pop %v3954
        %v4071 = vmul.f32 %v3954, %v4070
        %v4072 = vsub.f32 1.0, %v4071
        %v4073 = vmul.f32 %v4070, %v4072
        %v4074 = vadd.f32 %v4070, %v4073
        %vm4075 = vweird.f32 %v3954
        %vm4076 = vweird.f32 %v4070
        %vm4077 = vmor %vm4075, %vm4076
        %v4078 = vsel %vm4077, %v4070, %v4074
        %v4079 = vand.u32 2147483647, %v3954
        %vm4080 = vcmp.eq.f32.partialorder %v4079, 8.507059e+37
        %v4081 = vand.u32 %v3954, 2147483648
        %v4082 = vor.u32 1.1754944e-38, %v4081
        %v4083 = vsel %vm4080, %v4082, %v4078
        %v4084 = vmul.f32 %v3922, %v4083
        %v4085 = vrcp.pop %v3955
        %v4086 = vmul.f32 %v3955, %v4085
        %v4087 = vsub.f32 1.0, %v4086
        %v4088 = vmul.f32 %v4085, %v4087
        %v4089 = vadd.f32 %v4085, %v4088
        %vm4090 = vweird.f32 %v3955
        %vm4091 = vweird.f32 %v4085
        %vm4092 = vmor %vm4090, %vm4091
        %v4093 = vsel %vm4092, %v4085, %v4089
        %v4094 = vand.u32 2147483647, %v3955
        %vm4095 = vcmp.eq.f32.partialorder %v4094, 8.507059e+37
        %v4096 = vand.u32 %v3955, 2147483648
        %v4097 = vor.u32 1.1754944e-38, %v4096
        %v4098 = vsel %vm4095, %v4097, %v4093
        %v4099 = vmul.f32 %v3923, %v4098
        %v4100 = vrcp.pop %v3956
        %v4101 = vmul.f32 %v3956, %v4100
        %v4102 = vsub.f32 1.0, %v4101
        %v4103 = vmul.f32 %v4100, %v4102
        %v4104 = vadd.f32 %v4100, %v4103
        %vm4105 = vweird.f32 %v3956
        %vm4106 = vweird.f32 %v4100
        %vm4107 = vmor %vm4105, %vm4106
        %v4108 = vsel %vm4107, %v4100, %v4104
        %v4109 = vand.u32 2147483647, %v3956
        %vm4110 = vcmp.eq.f32.partialorder %v4109, 8.507059e+37
        %v4111 = vand.u32 %v3956, 2147483648
        %v4112 = vor.u32 1.1754944e-38, %v4111
        %v4113 = vsel %vm4110, %v4112, %v4108
        %v4114 = vmul.f32 %v3924, %v4113
        %v4115 = vrcp.pop %v3957
        %v4116 = vmul.f32 %v3957, %v4115
        %v4117 = vsub.f32 1.0, %v4116
        %v4118 = vmul.f32 %v4115, %v4117
        %v4119 = vadd.f32 %v4115, %v4118
        %vm4120 = vweird.f32 %v3957
        %vm4121 = vweird.f32 %v4115
        %vm4122 = vmor %vm4120, %vm4121
        %v4123 = vsel %vm4122, %v4115, %v4119
        %v4124 = vand.u32 2147483647, %v3957
        %vm4125 = vcmp.eq.f32.partialorder %v4124, 8.507059e+37
        %v4126 = vand.u32 %v3957, 2147483648
        %v4127 = vor.u32 1.1754944e-38, %v4126
        %v4128 = vsel %vm4125, %v4127, %v4123
        %v4129 = vmul.f32 %v3925, %v4128
        %v4130 = vrcp.pop %v3958
        %v4131 = vmul.f32 %v3958, %v4130
        %v4132 = vsub.f32 1.0, %v4131
        %v4133 = vmul.f32 %v4130, %v4132
        %v4134 = vadd.f32 %v4130, %v4133
        %vm4135 = vweird.f32 %v3958
        %vm4136 = vweird.f32 %v4130
        %vm4137 = vmor %vm4135, %vm4136
        %v4138 = vsel %vm4137, %v4130, %v4134
        %v4139 = vand.u32 2147483647, %v3958
        %vm4140 = vcmp.eq.f32.partialorder %v4139, 8.507059e+37
        %v4141 = vand.u32 %v3958, 2147483648
        %v4142 = vor.u32 1.1754944e-38, %v4141
        %v4143 = vsel %vm4140, %v4142, %v4138
        %v4144 = vmul.f32 %v3926, %v4143
        %v4145 = vrcp.pop %v3959
        %v4146 = vmul.f32 %v3959, %v4145
        %v4147 = vsub.f32 1.0, %v4146
        %v4148 = vmul.f32 %v4145, %v4147
        %v4149 = vadd.f32 %v4145, %v4148
        %vm4150 = vweird.f32 %v3959
        %vm4151 = vweird.f32 %v4145
        %vm4152 = vmor %vm4150, %vm4151
        %v4153 = vsel %vm4152, %v4145, %v4149
        %v4154 = vand.u32 2147483647, %v3959
        %vm4155 = vcmp.eq.f32.partialorder %v4154, 8.507059e+37
        %v4156 = vand.u32 %v3959, 2147483648
        %v4157 = vor.u32 1.1754944e-38, %v4156
        %v4158 = vsel %vm4155, %v4157, %v4153
        %v4159 = vmul.f32 %v3927, %v4158
        %v4160 = vrcp.pop %v3960
        %v4161 = vmul.f32 %v3960, %v4160
        %v4162 = vsub.f32 1.0, %v4161
        %v4163 = vmul.f32 %v4160, %v4162
        %v4164 = vadd.f32 %v4160, %v4163
        %vm4165 = vweird.f32 %v3960
        %vm4166 = vweird.f32 %v4160
        %vm4167 = vmor %vm4165, %vm4166
        %v4168 = vsel %vm4167, %v4160, %v4164
        %v4169 = vand.u32 2147483647, %v3960
        %vm4170 = vcmp.eq.f32.partialorder %v4169, 8.507059e+37
        %v4171 = vand.u32 %v3960, 2147483648
        %v4172 = vor.u32 1.1754944e-38, %v4171
        %v4173 = vsel %vm4170, %v4172, %v4168
        %v4174 = vmul.f32 %v3928, %v4173
        %v4175 = vrcp.pop %v3961
        %v4176 = vmul.f32 %v3961, %v4175
        %v4177 = vsub.f32 1.0, %v4176
        %v4178 = vmul.f32 %v4175, %v4177
        %v4179 = vadd.f32 %v4175, %v4178
        %vm4180 = vweird.f32 %v3961
        %vm4181 = vweird.f32 %v4175
        %vm4182 = vmor %vm4180, %vm4181
        %v4183 = vsel %vm4182, %v4175, %v4179
        %v4184 = vand.u32 2147483647, %v3961
        %vm4185 = vcmp.eq.f32.partialorder %v4184, 8.507059e+37
        %v4186 = vand.u32 %v3961, 2147483648
        %v4187 = vor.u32 1.1754944e-38, %v4186
        %v4188 = vsel %vm4185, %v4187, %v4183
        %v4189 = vmul.f32 %v3929, %v4188
        %v4190 = vrcp.pop %v3962
        %v4191 = vmul.f32 %v3962, %v4190
        %v4192 = vsub.f32 1.0, %v4191
        %v4193 = vmul.f32 %v4190, %v4192
        %v4194 = vadd.f32 %v4190, %v4193
        %vm4195 = vweird.f32 %v3962
        %vm4196 = vweird.f32 %v4190
        %vm4197 = vmor %vm4195, %vm4196
        %v4198 = vsel %vm4197, %v4190, %v4194
        %v4199 = vand.u32 2147483647, %v3962
        %vm4200 = vcmp.eq.f32.partialorder %v4199, 8.507059e+37
        %v4201 = vand.u32 %v3962, 2147483648
        %v4202 = vor.u32 1.1754944e-38, %v4201
        %v4203 = vsel %vm4200, %v4202, %v4198
        %v4204 = vmul.f32 %v3930, %v4203
        %v4205 = vrcp.pop %v3963
        %v4206 = vmul.f32 %v3963, %v4205
        %v4207 = vsub.f32 1.0, %v4206
        %v4208 = vmul.f32 %v4205, %v4207
        %v4209 = vadd.f32 %v4205, %v4208
        %vm4210 = vweird.f32 %v3963
        %vm4211 = vweird.f32 %v4205
        %vm4212 = vmor %vm4210, %vm4211
        %v4213 = vsel %vm4212, %v4205, %v4209
        %v4214 = vand.u32 2147483647, %v3963
        %vm4215 = vcmp.eq.f32.partialorder %v4214, 8.507059e+37
        %v4216 = vand.u32 %v3963, 2147483648
        %v4217 = vor.u32 1.1754944e-38, %v4216
        %v4218 = vsel %vm4215, %v4217, %v4213
        %v4219 = vmul.f32 %v3931, %v4218
        %v4220 = vrcp.pop %v3964
        %v4221 = vmul.f32 %v3964, %v4220
        %v4222 = vsub.f32 1.0, %v4221
        %v4223 = vmul.f32 %v4220, %v4222
        %v4224 = vadd.f32 %v4220, %v4223
        %vm4225 = vweird.f32 %v3964
        %vm4226 = vweird.f32 %v4220
        %vm4227 = vmor %vm4225, %vm4226
        %v4228 = vsel %vm4227, %v4220, %v4224
        %v4229 = vand.u32 2147483647, %v3964
        %vm4230 = vcmp.eq.f32.partialorder %v4229, 8.507059e+37
        %v4231 = vand.u32 %v3964, 2147483648
        %v4232 = vor.u32 1.1754944e-38, %v4231
        %v4233 = vsel %vm4230, %v4232, %v4228
        %v4234 = vmul.f32 %v3932, %v4233
        %v4235 = vrcp.pop %v3965
        %v4236 = vmul.f32 %v3965, %v4235
        %v4237 = vsub.f32 1.0, %v4236
        %v4238 = vmul.f32 %v4235, %v4237
        %v4239 = vadd.f32 %v4235, %v4238
        %vm4240 = vweird.f32 %v3965
        %vm4241 = vweird.f32 %v4235
        %vm4242 = vmor %vm4240, %vm4241
        %v4243 = vsel %vm4242, %v4235, %v4239
        %v4244 = vand.u32 2147483647, %v3965
        %vm4245 = vcmp.eq.f32.partialorder %v4244, 8.507059e+37
        %v4246 = vand.u32 %v3965, 2147483648
        %v4247 = vor.u32 1.1754944e-38, %v4246
        %v4248 = vsel %vm4245, %v4247, %v4243
        %v4249 = vmul.f32 %v3933, %v4248
        %v4250 = vrcp.pop %v3966
        %v4251 = vmul.f32 %v3966, %v4250
        %v4252 = vsub.f32 1.0, %v4251
        %v4253 = vmul.f32 %v4250, %v4252
        %v4254 = vadd.f32 %v4250, %v4253
        %vm4255 = vweird.f32 %v3966
        %vm4256 = vweird.f32 %v4250
        %vm4257 = vmor %vm4255, %vm4256
        %v4258 = vsel %vm4257, %v4250, %v4254
        %v4259 = vand.u32 2147483647, %v3966
        %vm4260 = vcmp.eq.f32.partialorder %v4259, 8.507059e+37
        %v4261 = vand.u32 %v3966, 2147483648
        %v4262 = vor.u32 1.1754944e-38, %v4261
        %v4263 = vsel %vm4260, %v4262, %v4258
        %v4264 = vmul.f32 %v3934, %v4263
        %v4265 = vrcp.pop %v3967
        %v4266 = vmul.f32 %v3967, %v4265
        %v4267 = vsub.f32 1.0, %v4266
        %v4268 = vmul.f32 %v4265, %v4267
        %v4269 = vadd.f32 %v4265, %v4268
        %vm4270 = vweird.f32 %v3967
        %vm4271 = vweird.f32 %v4265
        %vm4272 = vmor %vm4270, %vm4271
        %v4273 = vsel %vm4272, %v4265, %v4269
        %v4274 = vand.u32 2147483647, %v3967
        %vm4275 = vcmp.eq.f32.partialorder %v4274, 8.507059e+37
        %v4276 = vand.u32 %v3967, 2147483648
        %v4277 = vor.u32 1.1754944e-38, %v4276
        %v4278 = vsel %vm4275, %v4277, %v4273
        %v4279 = vmul.f32 %v3935, %v4278
        %v4280 = vrcp.pop %v3968
        %v4281 = vmul.f32 %v3968, %v4280
        %v4282 = vsub.f32 1.0, %v4281
        %v4283 = vmul.f32 %v4280, %v4282
        %v4284 = vadd.f32 %v4280, %v4283
        %vm4285 = vweird.f32 %v3968
        %vm4286 = vweird.f32 %v4280
        %vm4287 = vmor %vm4285, %vm4286
        %v4288 = vsel %vm4287, %v4280, %v4284
        %v4289 = vand.u32 2147483647, %v3968
        %vm4290 = vcmp.eq.f32.partialorder %v4289, 8.507059e+37
        %v4291 = vand.u32 %v3968, 2147483648
        %v4292 = vor.u32 1.1754944e-38, %v4291
        %v4293 = vsel %vm4290, %v4292, %v4288
        %v4294 = vmul.f32 %v3936, %v4293
        %v4295 = vrcp.pop %v3969
        %v4296 = vmul.f32 %v3969, %v4295
        %v4297 = vsub.f32 1.0, %v4296
        %v4298 = vmul.f32 %v4295, %v4297
        %v4299 = vadd.f32 %v4295, %v4298
        %vm4300 = vweird.f32 %v3969
        %vm4301 = vweird.f32 %v4295
        %vm4302 = vmor %vm4300, %vm4301
        %v4303 = vsel %vm4302, %v4295, %v4299
        %v4304 = vand.u32 2147483647, %v3969
        %vm4305 = vcmp.eq.f32.partialorder %v4304, 8.507059e+37
        %v4306 = vand.u32 %v3969, 2147483648
        %v4307 = vor.u32 1.1754944e-38, %v4306
        %v4308 = vsel %vm4305, %v4307, %v4303
        %v4309 = vmul.f32 %v3937, %v4308
        %v4310 = vrcp.pop %v3970
        %v4311 = vmul.f32 %v3970, %v4310
        %v4312 = vsub.f32 1.0, %v4311
        %v4313 = vmul.f32 %v4310, %v4312
        %v4314 = vadd.f32 %v4310, %v4313
        %vm4315 = vweird.f32 %v3970
        %vm4316 = vweird.f32 %v4310
        %vm4317 = vmor %vm4315, %vm4316
        %v4318 = vsel %vm4317, %v4310, %v4314
        %v4319 = vand.u32 2147483647, %v3970
        %vm4320 = vcmp.eq.f32.partialorder %v4319, 8.507059e+37
        %v4321 = vand.u32 %v3970, 2147483648
        %v4322 = vor.u32 1.1754944e-38, %v4321
        %v4323 = vsel %vm4320, %v4322, %v4318
        %v4324 = vmul.f32 %v3938, %v4323
        %v4325 = vrcp.pop %v3971
        %v4326 = vmul.f32 %v3971, %v4325
        %v4327 = vsub.f32 1.0, %v4326
        %v4328 = vmul.f32 %v4325, %v4327
        %v4329 = vadd.f32 %v4325, %v4328
        %vm4330 = vweird.f32 %v3971
        %vm4331 = vweird.f32 %v4325
        %vm4332 = vmor %vm4330, %vm4331
        %v4333 = vsel %vm4332, %v4325, %v4329
        %v4334 = vand.u32 2147483647, %v3971
        %vm4335 = vcmp.eq.f32.partialorder %v4334, 8.507059e+37
        %v4336 = vand.u32 %v3971, 2147483648
        %v4337 = vor.u32 1.1754944e-38, %v4336
        %v4338 = vsel %vm4335, %v4337, %v4333
        %v4339 = vmul.f32 %v3939, %v4338
        %v4340 = vrcp.pop %v3972
        %v4341 = vmul.f32 %v3972, %v4340
        %v4342 = vsub.f32 1.0, %v4341
        %v4343 = vmul.f32 %v4340, %v4342
        %v4344 = vadd.f32 %v4340, %v4343
        %vm4345 = vweird.f32 %v3972
        %vm4346 = vweird.f32 %v4340
        %vm4347 = vmor %vm4345, %vm4346
        %v4348 = vsel %vm4347, %v4340, %v4344
        %v4349 = vand.u32 2147483647, %v3972
        %vm4350 = vcmp.eq.f32.partialorder %v4349, 8.507059e+37
        %v4351 = vand.u32 %v3972, 2147483648
        %v4352 = vor.u32 1.1754944e-38, %v4351
        %v4353 = vsel %vm4350, %v4352, %v4348
        %v4354 = vmul.f32 %v3940, %v4353
        %v4355 = vrcp.pop %v3973
        %v4356 = vmul.f32 %v3973, %v4355
        %v4357 = vsub.f32 1.0, %v4356
        %v4358 = vmul.f32 %v4355, %v4357
        %v4359 = vadd.f32 %v4355, %v4358
        %vm4360 = vweird.f32 %v3973
        %vm4361 = vweird.f32 %v4355
        %vm4362 = vmor %vm4360, %vm4361
        %v4363 = vsel %vm4362, %v4355, %v4359
        %v4364 = vand.u32 2147483647, %v3973
        %vm4365 = vcmp.eq.f32.partialorder %v4364, 8.507059e+37
        %v4366 = vand.u32 %v3973, 2147483648
        %v4367 = vor.u32 1.1754944e-38, %v4366
        %v4368 = vsel %vm4365, %v4367, %v4363
        %v4369 = vmul.f32 %v3941, %v4368
        %v4370 = vrcp.pop %v3974
        %v4371 = vmul.f32 %v3974, %v4370
        %v4372 = vsub.f32 1.0, %v4371
        %v4373 = vmul.f32 %v4370, %v4372
        %v4374 = vadd.f32 %v4370, %v4373
        %vm4375 = vweird.f32 %v3974
        %vm4376 = vweird.f32 %v4370
        %vm4377 = vmor %vm4375, %vm4376
        %v4378 = vsel %vm4377, %v4370, %v4374
        %v4379 = vand.u32 2147483647, %v3974
        %vm4380 = vcmp.eq.f32.partialorder %v4379, 8.507059e+37
        %v4381 = vand.u32 %v3974, 2147483648
        %v4382 = vor.u32 1.1754944e-38, %v4381
        %v4383 = vsel %vm4380, %v4382, %v4378
        %v4384 = vmul.f32 %v3942, %v4383
        %v4385 = vrcp.pop %v3975
        %v4386 = vmul.f32 %v3975, %v4385
        %v4387 = vsub.f32 1.0, %v4386
        %v4388 = vmul.f32 %v4385, %v4387
        %v4389 = vadd.f32 %v4385, %v4388
        %vm4390 = vweird.f32 %v3975
        %vm4391 = vweird.f32 %v4385
        %vm4392 = vmor %vm4390, %vm4391
        %v4393 = vsel %vm4392, %v4385, %v4389
        %v4394 = vand.u32 2147483647, %v3975
        %vm4395 = vcmp.eq.f32.partialorder %v4394, 8.507059e+37
        %v4396 = vand.u32 %v3975, 2147483648
        %v4397 = vor.u32 1.1754944e-38, %v4396
        %v4398 = vsel %vm4395, %v4397, %v4393
        %v4399 = vmul.f32 %v3943, %v4398
        %v4400 = vrcp.pop %v3976
        %v4401 = vmul.f32 %v3976, %v4400
        %v4402 = vsub.f32 1.0, %v4401
        %v4403 = vmul.f32 %v4400, %v4402
        %v4404 = vadd.f32 %v4400, %v4403
        %vm4405 = vweird.f32 %v3976
        %vm4406 = vweird.f32 %v4400
        %vm4407 = vmor %vm4405, %vm4406
        %v4408 = vsel %vm4407, %v4400, %v4404
        %v4409 = vand.u32 2147483647, %v3976
        %vm4410 = vcmp.eq.f32.partialorder %v4409, 8.507059e+37
        %v4411 = vand.u32 %v3976, 2147483648
        %v4412 = vor.u32 1.1754944e-38, %v4411
        %v4413 = vsel %vm4410, %v4412, %v4408
        %v4414 = vmul.f32 %v3944, %v4413
        %v4415 = vrcp.pop %v3977
        %v4416 = vmul.f32 %v3977, %v4415
        %v4417 = vsub.f32 1.0, %v4416
        %v4418 = vmul.f32 %v4415, %v4417
        %v4419 = vadd.f32 %v4415, %v4418
        %vm4420 = vweird.f32 %v3977
        %vm4421 = vweird.f32 %v4415
        %vm4422 = vmor %vm4420, %vm4421
        %v4423 = vsel %vm4422, %v4415, %v4419
        %v4424 = vand.u32 2147483647, %v3977
        %vm4425 = vcmp.eq.f32.partialorder %v4424, 8.507059e+37
        %v4426 = vand.u32 %v3977, 2147483648
        %v4427 = vor.u32 1.1754944e-38, %v4426
        %v4428 = vsel %vm4425, %v4427, %v4423
        %v4429 = vmul.f32 %v3945, %v4428
        %v4430 = vrcp.pop %v3978
        %v4431 = vmul.f32 %v3978, %v4430
        %v4432 = vsub.f32 1.0, %v4431
        %v4433 = vmul.f32 %v4430, %v4432
        %v4434 = vadd.f32 %v4430, %v4433
        %vm4435 = vweird.f32 %v3978
        %vm4436 = vweird.f32 %v4430
        %vm4437 = vmor %vm4435, %vm4436
        %v4438 = vsel %vm4437, %v4430, %v4434
        %v4439 = vand.u32 2147483647, %v3978
        %vm4440 = vcmp.eq.f32.partialorder %v4439, 8.507059e+37
        %v4441 = vand.u32 %v3978, 2147483648
        %v4442 = vor.u32 1.1754944e-38, %v4441
        %v4443 = vsel %vm4440, %v4442, %v4438
        %v4444 = vmul.f32 %v3946, %v4443
        %v4445 = vrcp.pop %v3979
        %v4446 = vmul.f32 %v3979, %v4445
        %v4447 = vsub.f32 1.0, %v4446
        %v4448 = vmul.f32 %v4445, %v4447
        %v4449 = vadd.f32 %v4445, %v4448
        %vm4450 = vweird.f32 %v3979
        %vm4451 = vweird.f32 %v4445
        %vm4452 = vmor %vm4450, %vm4451
        %v4453 = vsel %vm4452, %v4445, %v4449
        %v4454 = vand.u32 2147483647, %v3979
        %vm4455 = vcmp.eq.f32.partialorder %v4454, 8.507059e+37
        %v4456 = vand.u32 %v3979, 2147483648
        %v4457 = vor.u32 1.1754944e-38, %v4456
        %v4458 = vsel %vm4455, %v4457, %v4453
        %v4459 = vmul.f32 %v3947, %v4458
        %vm4460 = vcmask 7168
        %4461 = vst.msk [vmem:[%s450] sm:$0xff] %vm4460, %v3994
        %4462 = vst.msk [vmem:[%s450 + $0x8] sm:$0xff] %vm4460, %v4009
        %4463 = vst.msk [vmem:[%s450 + $0x10] sm:$0xff] %vm4460, %v4024
        %4464 = vst.msk [vmem:[%s450 + $0x18] sm:$0xff] %vm4460, %v4039
        %4465 = vst.msk [vmem:[%s450 + $0x20] sm:$0xff] %vm4460, %v4054
        %4466 = vst.msk [vmem:[%s450 + $0x28] sm:$0xff] %vm4460, %v4069
        %4467 = vst.msk [vmem:[%s450 + $0x30] sm:$0xff] %vm4460, %v4084
        %4468 = vst.msk [vmem:[%s450 + $0x38] sm:$0xff] %vm4460, %v4099
        %4469 = vst.msk [vmem:[%s450 + $0x40] sm:$0xff] %vm4460, %v4114
        %4470 = vst.msk [vmem:[%s450 + $0x48] sm:$0xff] %vm4460, %v4129
        %4471 = vst.msk [vmem:[%s450 + $0x50] sm:$0xff] %vm4460, %v4144
        %4472 = vst.msk [vmem:[%s450 + $0x58] sm:$0xff] %vm4460, %v4159
        %4473 = vst.msk [vmem:[%s450 + $0x60] sm:$0xff] %vm4460, %v4174
        %4474 = vst.msk [vmem:[%s450 + $0x68] sm:$0xff] %vm4460, %v4189
        %4475 = vst.msk [vmem:[%s450 + $0x70] sm:$0xff] %vm4460, %v4204
        %4476 = vst.msk [vmem:[%s450 + $0x78] sm:$0xff] %vm4460, %v4219
        %4477 = vst.msk [vmem:[%s450 + $0x80] sm:$0xff] %vm4460, %v4234
        %4478 = vst.msk [vmem:[%s450 + $0x88] sm:$0xff] %vm4460, %v4249
        %4479 = vst.msk [vmem:[%s450 + $0x90] sm:$0xff] %vm4460, %v4264
        %4480 = vst.msk [vmem:[%s450 + $0x98] sm:$0xff] %vm4460, %v4279
        %4481 = vst.msk [vmem:[%s450 + $0xa0] sm:$0xff] %vm4460, %v4294
        %4482 = vst.msk [vmem:[%s450 + $0xa8] sm:$0xff] %vm4460, %v4309
        %4483 = vst.msk [vmem:[%s450 + $0xb0] sm:$0xff] %vm4460, %v4324
        %4484 = vst.msk [vmem:[%s450 + $0xb8] sm:$0xff] %vm4460, %v4339
        %4485 = vst.msk [vmem:[%s450 + $0xc0] sm:$0xff] %vm4460, %v4354
        %4486 = vst.msk [vmem:[%s450 + $0xc8] sm:$0xff] %vm4460, %v4369
        %4487 = vst.msk [vmem:[%s450 + $0xd0] sm:$0xff] %vm4460, %v4384
        %4488 = vst.msk [vmem:[%s450 + $0xd8] sm:$0xff] %vm4460, %v4399
        %4489 = vst.msk [vmem:[%s450 + $0xe0] sm:$0xff] %vm4460, %v4414
        %4490 = vst.msk [vmem:[%s450 + $0xe8] sm:$0xff] %vm4460, %v4429
        %4491 = vst.msk [vmem:[%s450 + $0xf0] sm:$0xff] %vm4460, %v4444
        %4492 = vst.msk [vmem:[%s450 + $0xf8] sm:$0xff] %vm4460, %v4459
        %s4493 = sand.u32 %s230, 1
        %s4494 = sand.u32 %s230, 1
        %s4495 = smul.addr %s4494, 256
        %s4496 = scalar_lea.vmem [#allocation14], %s4495
        // Predicated region
        $region85: #{tpu_custom_call.1} parent=55 // pred_check
          %p4497 = pneg %p240
        $region86: #{tpu_custom_call.1} parent=55 // pred_check_branch
          %4499 = sbr.rel (%p4497) target = $region88
        $region87: #{tpu_custom_call.1} parent=55 // pred_region
          %s4500 = smul.u32 32, %s28
          %s4501 = ssub.s32 38, %s4500
          %p4502 = scmp.lt.s32.totalorder %s4501, 32
          %s4503 = scalar_select %p4502, %s4501, 32
          %s4504 = smul.u32 8, %s4503
          %p4505 = scmp.ne.s32.totalorder 0, %s4504
          %s4506 = smul.addr %s4500, 8
          %s4507 = scalar_lea.vmem %s9, %s4506
          // Predicated region
          $region89: #{tpu_custom_call.1} parent=87 // pred_check
            %p4508 = pneg %p4505
          $region90: #{tpu_custom_call.1} parent=87 // pred_check_branch
            %4510 = sbr.rel (%p4508) target = $region92
          $region91: #{tpu_custom_call.1} parent=87 // pred_region
            // Predicated region
            $region93: #{tpu_custom_call.1} parent=91 // pred_check
              _
            $region94: #{tpu_custom_call.1} parent=91 // pred_check_branch
              %4512 = sbr.rel (0) target = $region96
            $region95: #{tpu_custom_call.1} parent=91 // pred_region
              // Predicated region
              $region115: #{tpu_custom_call.1} parent=95 // pred_check
                _
              $region116: #{tpu_custom_call.1} parent=95 // pred_check_branch
                %4624 = sbr.rel (0) target = $region118
              $region117: #{tpu_custom_call.1} parent=95 // pred_region
                %s4625 = sshrl.u32 %s4503, 5
                // While loop
                $region119: #{tpu_custom_call.1} parent=117 // loop_pre_header
                  _
                $region120: #{tpu_custom_call.1} parent=117 // loop_header
                  %s4627 = sphi 0, %s4629
                  %p4628 = scmp.ge.s32.totalorder %s4627, %s4625
                  %s4632 = sphi 0, %s4701
                  %s4633 = sphi %s4496, %s4704
                  %s4634 = sphi %s4507, %s4705
                $region121: #{tpu_custom_call.1} parent=117 // loop_header_branch
                  %4631 = sbr.rel (%p4628) target = $region125
                $region122: #{tpu_custom_call.1} parent=117 // loop_body
                  %v4635 = vld [vmem:[%s4633] sm:$0xff]
                  %4636 = vst [vmem:[%s4634] sm:$0xff] %v4635
                  %v4637 = vld [vmem:[%s4633 + $0x8] sm:$0xff]
                  %4638 = vst [vmem:[%s4634 + $0x8] sm:$0xff] %v4637
                  %v4639 = vld [vmem:[%s4633 + $0x10] sm:$0xff]
                  %4640 = vst [vmem:[%s4634 + $0x10] sm:$0xff] %v4639
                  %v4641 = vld [vmem:[%s4633 + $0x18] sm:$0xff]
                  %4642 = vst [vmem:[%s4634 + $0x18] sm:$0xff] %v4641
                  %v4643 = vld [vmem:[%s4633 + $0x20] sm:$0xff]
                  %4644 = vst [vmem:[%s4634 + $0x20] sm:$0xff] %v4643
                  %v4645 = vld [vmem:[%s4633 + $0x28] sm:$0xff]
                  %4646 = vst [vmem:[%s4634 + $0x28] sm:$0xff] %v4645
                  %v4647 = vld [vmem:[%s4633 + $0x30] sm:$0xff]
                  %4648 = vst [vmem:[%s4634 + $0x30] sm:$0xff] %v4647
                  %v4649 = vld [vmem:[%s4633 + $0x38] sm:$0xff]
                  %4650 = vst [vmem:[%s4634 + $0x38] sm:$0xff] %v4649
                  %v4651 = vld [vmem:[%s4633 + $0x40] sm:$0xff]
                  %4652 = vst [vmem:[%s4634 + $0x40] sm:$0xff] %v4651
                  %v4653 = vld [vmem:[%s4633 + $0x48] sm:$0xff]
                  %4654 = vst [vmem:[%s4634 + $0x48] sm:$0xff] %v4653
                  %v4655 = vld [vmem:[%s4633 + $0x50] sm:$0xff]
                  %4656 = vst [vmem:[%s4634 + $0x50] sm:$0xff] %v4655
                  %v4657 = vld [vmem:[%s4633 + $0x58] sm:$0xff]
                  %4658 = vst [vmem:[%s4634 + $0x58] sm:$0xff] %v4657
                  %v4659 = vld [vmem:[%s4633 + $0x60] sm:$0xff]
                  %4660 = vst [vmem:[%s4634 + $0x60] sm:$0xff] %v4659
                  %v4661 = vld [vmem:[%s4633 + $0x68] sm:$0xff]
                  %4662 = vst [vmem:[%s4634 + $0x68] sm:$0xff] %v4661
                  %v4663 = vld [vmem:[%s4633 + $0x70] sm:$0xff]
                  %4664 = vst [vmem:[%s4634 + $0x70] sm:$0xff] %v4663
                  %v4665 = vld [vmem:[%s4633 + $0x78] sm:$0xff]
                  %4666 = vst [vmem:[%s4634 + $0x78] sm:$0xff] %v4665
                  %v4667 = vld [vmem:[%s4633 + $0x80] sm:$0xff]
                  %4668 = vst [vmem:[%s4634 + $0x80] sm:$0xff] %v4667
                  %v4669 = vld [vmem:[%s4633 + $0x88] sm:$0xff]
                  %4670 = vst [vmem:[%s4634 + $0x88] sm:$0xff] %v4669
                  %v4671 = vld [vmem:[%s4633 + $0x90] sm:$0xff]
                  %4672 = vst [vmem:[%s4634 + $0x90] sm:$0xff] %v4671
                  %v4673 = vld [vmem:[%s4633 + $0x98] sm:$0xff]
                  %4674 = vst [vmem:[%s4634 + $0x98] sm:$0xff] %v4673
                  %v4675 = vld [vmem:[%s4633 + $0xa0] sm:$0xff]
                  %4676 = vst [vmem:[%s4634 + $0xa0] sm:$0xff] %v4675
                  %v4677 = vld [vmem:[%s4633 + $0xa8] sm:$0xff]
                  %4678 = vst [vmem:[%s4634 + $0xa8] sm:$0xff] %v4677
                  %v4679 = vld [vmem:[%s4633 + $0xb0] sm:$0xff]
                  %4680 = vst [vmem:[%s4634 + $0xb0] sm:$0xff] %v4679
                  %v4681 = vld [vmem:[%s4633 + $0xb8] sm:$0xff]
                  %4682 = vst [vmem:[%s4634 + $0xb8] sm:$0xff] %v4681
                  %v4683 = vld [vmem:[%s4633 + $0xc0] sm:$0xff]
                  %4684 = vst [vmem:[%s4634 + $0xc0] sm:$0xff] %v4683
                  %v4685 = vld [vmem:[%s4633 + $0xc8] sm:$0xff]
                  %4686 = vst [vmem:[%s4634 + $0xc8] sm:$0xff] %v4685
                  %v4687 = vld [vmem:[%s4633 + $0xd0] sm:$0xff]
                  %4688 = vst [vmem:[%s4634 + $0xd0] sm:$0xff] %v4687
                  %v4689 = vld [vmem:[%s4633 + $0xd8] sm:$0xff]
                  %4690 = vst [vmem:[%s4634 + $0xd8] sm:$0xff] %v4689
                  %v4691 = vld [vmem:[%s4633 + $0xe0] sm:$0xff]
                  %4692 = vst [vmem:[%s4634 + $0xe0] sm:$0xff] %v4691
                  %v4693 = vld [vmem:[%s4633 + $0xe8] sm:$0xff]
                  %4694 = vst [vmem:[%s4634 + $0xe8] sm:$0xff] %v4693
                  %v4695 = vld [vmem:[%s4633 + $0xf0] sm:$0xff]
                  %4696 = vst [vmem:[%s4634 + $0xf0] sm:$0xff] %v4695
                  %v4697 = vld [vmem:[%s4633 + $0xf8] sm:$0xff]
                  %4698 = vst [vmem:[%s4634 + $0xf8] sm:$0xff] %v4697
                  %s4699 = sadd.s32 1, %s4632
                  %p4700 = scmp.ge.s32.totalorder %s4699, %s4625
                  %s4701 = scalar_select %p4700, 0, %s4699
                  %s4702 = smul.u32 %s4701, 256
                  %s4703 = smul.u32 %s4701, 256
                  %s4704 = scalar_lea.vmem %s4496, %s4702 [#allocation14]
                  %s4705 = scalar_lea.vmem %s4507, %s4703
                $region123: #{tpu_custom_call.1} parent=117 // loop_footer
                  %s4629 = sadd.s32 %s4627, 1
                $region124: #{tpu_custom_call.1} parent=117 // loop_footer_branch
                  %4626 = sbr.rel target = $region120
                $region125: #{tpu_custom_call.1} parent=117 // loop_exit
                  _
                %s4706 = sshrl.u32 %s4503, 5
                %s4707 = sand.u32 %s4503, 31
                %s4708 = smul.u32 %s4706, 32
                %s4709 = smul.u32 8, %s4708
                %s4710 = scalar_lea.vmem %s4496, %s4709 [#allocation14]
                %s4711 = smul.u32 8, %s4708
                %s4712 = scalar_lea.vmem %s4507, %s4711
                // While loop
                $region126: #{tpu_custom_call.1} parent=117 // loop_pre_header
                  _
                $region127: #{tpu_custom_call.1} parent=117 // loop_header
                  %s4714 = sphi 0, %s4716
                  %p4715 = scmp.ge.s32.totalorder %s4714, %s4707
                  %s4719 = sphi 0, %s4726
                  %s4720 = sphi %s4710, %s4729
                  %s4721 = sphi %s4712, %s4730
                $region128: #{tpu_custom_call.1} parent=117 // loop_header_branch
                  %4718 = sbr.rel (%p4715) target = $region132
                $region129: #{tpu_custom_call.1} parent=117 // loop_body
                  %v4722 = vld [vmem:[%s4720] sm:$0xff]
                  %4723 = vst [vmem:[%s4721] sm:$0xff] %v4722
                  %s4724 = sadd.s32 1, %s4719
                  %p4725 = scmp.ge.s32.totalorder %s4724, %s4707
                  %s4726 = scalar_select %p4725, 0, %s4724
                  %s4727 = smul.u32 %s4726, 8
                  %s4728 = smul.u32 %s4726, 8
                  %s4729 = scalar_lea.vmem %s4710, %s4727 [#allocation14]
                  %s4730 = scalar_lea.vmem %s4712, %s4728
                $region130: #{tpu_custom_call.1} parent=117 // loop_footer
                  %s4716 = sadd.s32 %s4714, 1
                $region131: #{tpu_custom_call.1} parent=117 // loop_footer_branch
                  %4713 = sbr.rel target = $region127
                $region132: #{tpu_custom_call.1} parent=117 // loop_exit
                  _
              $region118: #{tpu_custom_call.1} parent=95 // pred_fallthru
                _
              // Predicated region
              $region133: #{tpu_custom_call.1} parent=95 // pred_check
                _
              $region134: #{tpu_custom_call.1} parent=95 // pred_check_branch
                %4732 = sbr.rel target = $region136
              $region135: #{tpu_custom_call.1} parent=95 // pred_region
                _
              $region136: #{tpu_custom_call.1} parent=95 // pred_fallthru
                _
            $region96: #{tpu_custom_call.1} parent=91 // pred_fallthru
              _
            // Predicated region
            $region97: #{tpu_custom_call.1} parent=91 // pred_check
              _
            $region98: #{tpu_custom_call.1} parent=91 // pred_check_branch
              %4514 = sbr.rel target = $region100
            $region99: #{tpu_custom_call.1} parent=91 // pred_region
              %s4516 = ssub.s32 256, 1
              %s4517 = sshrl.u32 %s4503, 5
              // While loop
              $region101: #{tpu_custom_call.1} parent=99 // loop_pre_header
                _
              $region102: #{tpu_custom_call.1} parent=99 // loop_header
                %s4519 = sphi 0, %s4521
                %p4520 = scmp.ge.s32.totalorder %s4519, %s4517
                %s4524 = sphi 0, %s4593
                %s4525 = sphi %s4496, %s4596
                %s4526 = sphi %s4507, %s4597
              $region103: #{tpu_custom_call.1} parent=99 // loop_header_branch
                %4523 = sbr.rel (%p4520) target = $region107
              $region104: #{tpu_custom_call.1} parent=99 // loop_body
                %v4527 = vld [vmem:[%s4525] sm:%s4516]
                %4528 = vst [vmem:[%s4526] sm:%s4516] %v4527
                %v4529 = vld [vmem:[%s4525 + $0x8] sm:%s4516]
                %4530 = vst [vmem:[%s4526 + $0x8] sm:%s4516] %v4529
                %v4531 = vld [vmem:[%s4525 + $0x10] sm:%s4516]
                %4532 = vst [vmem:[%s4526 + $0x10] sm:%s4516] %v4531
                %v4533 = vld [vmem:[%s4525 + $0x18] sm:%s4516]
                %4534 = vst [vmem:[%s4526 + $0x18] sm:%s4516] %v4533
                %v4535 = vld [vmem:[%s4525 + $0x20] sm:%s4516]
                %4536 = vst [vmem:[%s4526 + $0x20] sm:%s4516] %v4535
                %v4537 = vld [vmem:[%s4525 + $0x28] sm:%s4516]
                %4538 = vst [vmem:[%s4526 + $0x28] sm:%s4516] %v4537
                %v4539 = vld [vmem:[%s4525 + $0x30] sm:%s4516]
                %4540 = vst [vmem:[%s4526 + $0x30] sm:%s4516] %v4539
                %v4541 = vld [vmem:[%s4525 + $0x38] sm:%s4516]
                %4542 = vst [vmem:[%s4526 + $0x38] sm:%s4516] %v4541
                %v4543 = vld [vmem:[%s4525 + $0x40] sm:%s4516]
                %4544 = vst [vmem:[%s4526 + $0x40] sm:%s4516] %v4543
                %v4545 = vld [vmem:[%s4525 + $0x48] sm:%s4516]
                %4546 = vst [vmem:[%s4526 + $0x48] sm:%s4516] %v4545
                %v4547 = vld [vmem:[%s4525 + $0x50] sm:%s4516]
                %4548 = vst [vmem:[%s4526 + $0x50] sm:%s4516] %v4547
                %v4549 = vld [vmem:[%s4525 + $0x58] sm:%s4516]
                %4550 = vst [vmem:[%s4526 + $0x58] sm:%s4516] %v4549
                %v4551 = vld [vmem:[%s4525 + $0x60] sm:%s4516]
                %4552 = vst [vmem:[%s4526 + $0x60] sm:%s4516] %v4551
                %v4553 = vld [vmem:[%s4525 + $0x68] sm:%s4516]
                %4554 = vst [vmem:[%s4526 + $0x68] sm:%s4516] %v4553
                %v4555 = vld [vmem:[%s4525 + $0x70] sm:%s4516]
                %4556 = vst [vmem:[%s4526 + $0x70] sm:%s4516] %v4555
                %v4557 = vld [vmem:[%s4525 + $0x78] sm:%s4516]
                %4558 = vst [vmem:[%s4526 + $0x78] sm:%s4516] %v4557
                %v4559 = vld [vmem:[%s4525 + $0x80] sm:%s4516]
                %4560 = vst [vmem:[%s4526 + $0x80] sm:%s4516] %v4559
                %v4561 = vld [vmem:[%s4525 + $0x88] sm:%s4516]
                %4562 = vst [vmem:[%s4526 + $0x88] sm:%s4516] %v4561
                %v4563 = vld [vmem:[%s4525 + $0x90] sm:%s4516]
                %4564 = vst [vmem:[%s4526 + $0x90] sm:%s4516] %v4563
                %v4565 = vld [vmem:[%s4525 + $0x98] sm:%s4516]
                %4566 = vst [vmem:[%s4526 + $0x98] sm:%s4516] %v4565
                %v4567 = vld [vmem:[%s4525 + $0xa0] sm:%s4516]
                %4568 = vst [vmem:[%s4526 + $0xa0] sm:%s4516] %v4567
                %v4569 = vld [vmem:[%s4525 + $0xa8] sm:%s4516]
                %4570 = vst [vmem:[%s4526 + $0xa8] sm:%s4516] %v4569
                %v4571 = vld [vmem:[%s4525 + $0xb0] sm:%s4516]
                %4572 = vst [vmem:[%s4526 + $0xb0] sm:%s4516] %v4571
                %v4573 = vld [vmem:[%s4525 + $0xb8] sm:%s4516]
                %4574 = vst [vmem:[%s4526 + $0xb8] sm:%s4516] %v4573
                %v4575 = vld [vmem:[%s4525 + $0xc0] sm:%s4516]
                %4576 = vst [vmem:[%s4526 + $0xc0] sm:%s4516] %v4575
                %v4577 = vld [vmem:[%s4525 + $0xc8] sm:%s4516]
                %4578 = vst [vmem:[%s4526 + $0xc8] sm:%s4516] %v4577
                %v4579 = vld [vmem:[%s4525 + $0xd0] sm:%s4516]
                %4580 = vst [vmem:[%s4526 + $0xd0] sm:%s4516] %v4579
                %v4581 = vld [vmem:[%s4525 + $0xd8] sm:%s4516]
                %4582 = vst [vmem:[%s4526 + $0xd8] sm:%s4516] %v4581
                %v4583 = vld [vmem:[%s4525 + $0xe0] sm:%s4516]
                %4584 = vst [vmem:[%s4526 + $0xe0] sm:%s4516] %v4583
                %v4585 = vld [vmem:[%s4525 + $0xe8] sm:%s4516]
                %4586 = vst [vmem:[%s4526 + $0xe8] sm:%s4516] %v4585
                %v4587 = vld [vmem:[%s4525 + $0xf0] sm:%s4516]
                %4588 = vst [vmem:[%s4526 + $0xf0] sm:%s4516] %v4587
                %v4589 = vld [vmem:[%s4525 + $0xf8] sm:%s4516]
                %4590 = vst [vmem:[%s4526 + $0xf8] sm:%s4516] %v4589
                %s4591 = sadd.s32 1, %s4524
                %p4592 = scmp.ge.s32.totalorder %s4591, %s4517
                %s4593 = scalar_select %p4592, 0, %s4591
                %s4594 = smul.u32 %s4593, 256
                %s4595 = smul.u32 %s4593, 256
                %s4596 = scalar_lea.vmem %s4496, %s4594 [#allocation14]
                %s4597 = scalar_lea.vmem %s4507, %s4595
              $region105: #{tpu_custom_call.1} parent=99 // loop_footer
                %s4521 = sadd.s32 %s4519, 1
              $region106: #{tpu_custom_call.1} parent=99 // loop_footer_branch
                %4518 = sbr.rel target = $region102
              $region107: #{tpu_custom_call.1} parent=99 // loop_exit
                _
              %s4598 = sshrl.u32 %s4503, 5
              %s4599 = sand.u32 %s4503, 31
              %s4600 = smul.u32 %s4598, 32
              %s4601 = smul.u32 8, %s4600
              %s4602 = scalar_lea.vmem %s4496, %s4601 [#allocation14]
              %s4603 = smul.u32 8, %s4600
              %s4604 = scalar_lea.vmem %s4507, %s4603
              // While loop
              $region108: #{tpu_custom_call.1} parent=99 // loop_pre_header
                _
              $region109: #{tpu_custom_call.1} parent=99 // loop_header
                %s4606 = sphi 0, %s4608
                %p4607 = scmp.ge.s32.totalorder %s4606, %s4599
                %s4611 = sphi 0, %s4618
                %s4612 = sphi %s4602, %s4621
                %s4613 = sphi %s4604, %s4622
              $region110: #{tpu_custom_call.1} parent=99 // loop_header_branch
                %4610 = sbr.rel (%p4607) target = $region114
              $region111: #{tpu_custom_call.1} parent=99 // loop_body
                %v4614 = vld [vmem:[%s4612] sm:%s4516]
                %4615 = vst [vmem:[%s4613] sm:%s4516] %v4614
                %s4616 = sadd.s32 1, %s4611
                %p4617 = scmp.ge.s32.totalorder %s4616, %s4599
                %s4618 = scalar_select %p4617, 0, %s4616
                %s4619 = smul.u32 %s4618, 8
                %s4620 = smul.u32 %s4618, 8
                %s4621 = scalar_lea.vmem %s4602, %s4619 [#allocation14]
                %s4622 = scalar_lea.vmem %s4604, %s4620
              $region112: #{tpu_custom_call.1} parent=99 // loop_footer
                %s4608 = sadd.s32 %s4606, 1
              $region113: #{tpu_custom_call.1} parent=99 // loop_footer_branch
                %4605 = sbr.rel target = $region109
              $region114: #{tpu_custom_call.1} parent=99 // loop_exit
                _
            $region100: #{tpu_custom_call.1} parent=91 // pred_fallthru
              _
          $region92: #{tpu_custom_call.1} parent=87 // pred_fallthru
            _
          %4733 = vnop
        $region88: #{tpu_custom_call.1} parent=55 // pred_fallthru
          _
      $region56: #{tpu_custom_call.1} parent=5 // pred_fallthru
        _
      %p4734 = scmp.le.s32.totalorder 2, %s23
      // Predicated region
      $region137: #{tpu_custom_call.1} parent=5 // pred_check
        %p4735 = pneg %p4734
      $region138: #{tpu_custom_call.1} parent=5 // pred_check_branch
        %4737 = sbr.rel (%p4735) target = $region140
      $region139: #{tpu_custom_call.1} parent=5 // pred_region
        %s4738 = ssub.s32 %s23, 2
        // Predicated region
        $region141: #{tpu_custom_call.1} parent=139 // pred_check
          %p4739 = pneg %p246
        $region142: #{tpu_custom_call.1} parent=139 // pred_check_branch
          %4741 = sbr.rel (%p4739) target = $region144
        $region143: #{tpu_custom_call.1} parent=139 // pred_region
          %s4742 = sand.u32 %s231, 1
          %s4743 = sand.u32 %s231, 1
          %s4744 = smul.addr %s4743, 256
          %s4745 = scalar_lea.vmem [#allocation14], %s4744
        $region144: #{tpu_custom_call.1} parent=139 // pred_fallthru
          _
      $region140: #{tpu_custom_call.1} parent=5 // pred_fallthru
        _
    $region6: #{tpu_custom_call.1} parent=1 // loop_footer
      %s27 = sadd.s32 1, %s23
    $region7: #{tpu_custom_call.1} parent=1 // loop_footer_branch
      %22 = sbr.rel target = $region3
    $region8: #{tpu_custom_call.1} parent=1 // loop_exit
      _
    %4746 = vsyncpa [#allocation4], 1
    %s4747 = scalar_lea.sflag [#allocation4], 1
    %4748 = vsyncpa %s4747, 1
    %4749 = vsyncpa [#allocation6], 1
    %4750 = vsyncpa [#allocation9], 1
    %4751 = vsyncpa [#allocation12], 1

</llo_original>
